<compile_context>
chip_gen: v7x
topology: tpu7x:2x2x1
jax: 0.10.0
libtpu: 0.0.40
codegen_flags: <defaults>
</compile_context>

<pallas_src>
import jax
import jax.numpy as jnp
from jax.experimental import pallas as pl
from jax.experimental.pallas import tpu as pltpu

D_IN = 784      # 28*28
D_H1 = 784
D_H2 = 256
D_OUT = 10

H1P = 896       # fc1 output dim padded to 7*128 (lane-dense)
H2P = 256       # already 2*128
NOP = 128       # fc3 output dim padded to 128 (lane-dense store)


def _round_up(x, m):
    return ((x + m - 1) // m) * m


def mlp_kernel(x_ref, w1_ref, b1_ref, w2_ref, b2_ref, w3_ref, b3_ref, o_ref):
    # x: (bm, 784) f32 -> bf16 on the VPU; weights pre-transposed (in, out) bf16.
    x = x_ref[...].astype(jnp.bfloat16)

    # fc1 + ReLU  (bf16 operands, f32 accumulation on the MXU, bias in f32)
    h1 = jnp.dot(x, w1_ref[...], preferred_element_type=jnp.float32)
    h1 = jnp.maximum(h1 + b1_ref[...], 0.0).astype(jnp.bfloat16)

    # fc2 + ReLU
    h2 = jnp.dot(h1, w2_ref[...], preferred_element_type=jnp.float32)
    h2 = jnp.maximum(h2 + b2_ref[...], 0.0).astype(jnp.bfloat16)

    # fc3 (no activation), lane-dense (bm, 128) f32 store
    out = jnp.dot(h2, w3_ref[...], preferred_element_type=jnp.float32)
    o_ref[...] = (out + b3_ref[...]).astype(o_ref.dtype)


def prepare_params(params):
    """One-time weight prep (hoisted out of the per-call path).

    torch Linear stores W as (out, in); the kernel wants (in, out), bf16, with
    output dims lane-padded to multiples of 128.  Zero padding is an exact
    no-op for the math.  Biases stay f32 (added to the f32 accumulator).
    """
    w1, b1, w2, b2, w3, b3 = params
    w1t = (jnp.zeros((D_IN, H1P), jnp.float32)
           .at[:, :D_H1].set(w1.T)).astype(jnp.bfloat16)           # (784, 896)
    w2t = (jnp.zeros((H1P, H2P), jnp.float32)
           .at[:D_H1, :].set(w2.T)).astype(jnp.bfloat16)           # (896, 256)
    w3t = (jnp.zeros((H2P, NOP), jnp.float32)
           .at[:, :D_OUT].set(w3.T)).astype(jnp.bfloat16)          # (256, 128)
    b1r = jnp.zeros((1, H1P), jnp.float32).at[:, :D_H1].set(b1[None, :])
    b2r = b2.reshape(1, H2P).astype(jnp.float32)
    b3r = jnp.zeros((1, NOP), jnp.float32).at[:, :D_OUT].set(b3[None, :])
    return (w1t, b1r, w2t, b2r, w3t, b3r)


def _choose_bm(B, bm_max=512):
    """Batch tile: as large as possible, but with >= 2 roughly balanced tiles
    whenever the batch allows (keeps both v7x TensorCores busy), and a multiple
    of 16 (bf16 sublane granule)."""
    bm_max = max(16, _round_up(bm_max, 16))
    if B < 32:
        return 16
    return min(bm_max, _round_up((B + 1) // 2, 16))


def net_forward(x_nchw, prepared, *, bm_max=512):
    """x_nchw: (B, 1, 28, 28) float32.  Returns (B, 10) float32 logits."""
    B = x_nchw.shape[0]
    x = x_nchw.reshape(B, -1).astype(jnp.float32)      # == torch x.view(B, -1)
    assert x.shape[1] == D_IN

    bm = _choose_bm(B, bm_max)
    B_run = B
    if B < bm:  # tiny-batch corner: pad to one well-formed 16-row block
        x = jnp.pad(x, ((0, bm - B), (0, 0)))
        B_run = bm
    grid_b = (B_run + bm - 1) // bm    # ragged final tile handled by OOB masking

    w1t, b1r, w2t, b2r, w3t, b3r = prepared

    inv = lambda shape: pl.BlockSpec(shape, lambda i: (0, 0))   # grid-invariant

    out_padded = pl.pallas_call(
        mlp_kernel,
        out_shape=jax.ShapeDtypeStruct((B_run, NOP), jnp.float32),
        grid_spec=pltpu.PrefetchScalarGridSpec(
            num_scalar_prefetch=0,
            grid=(grid_b,),
            in_specs=[
                pl.BlockSpec((bm, D_IN), lambda i: (i, 0)),   # x batch tile (f32)
                inv((D_IN, H1P)),                             # w1^T bf16
                inv((1, H1P)),                                # b1   f32 (padded)
                inv((H1P, H2P)),                              # w2^T bf16
                inv((1, H2P)),                                # b2   f32
                inv((H2P, NOP)),                              # w3^T bf16
                inv((1, NOP)),                                # b3   f32 (padded)
            ],
            out_specs=pl.BlockSpec((bm, NOP), lambda i: (i, 0)),
        ),
        compiler_params=pltpu.CompilerParams(
            dimension_semantics=("parallel",),     # batch tiles shard across v7x TCs
            vmem_limit_bytes=32 * 1024 * 1024,     # keep under v7x's 64 MiB VMEM
        ),
    )(x, w1t, b1r, w2t, b2r, w3t, b3r)

    # Strip (possible) tiny-batch padding and the 10 -> 128 lane padding.
    return out_padded[:B, :D_OUT]


def init_params(key):
    """Deterministic synthetic params, PyTorch Linear shapes: W (out, in), b (out,)."""
    ks = jax.random.split(key, 6)

    def lin(kw, kb, fan_in, fan_out):
        bound = 1.0 / jnp.sqrt(fan_in)
        w = jax.random.uniform(kw, (fan_out, fan_in), jnp.float32, -bound, bound)
        b = jax.random.uniform(kb, (fan_out,), jnp.float32, -bound, bound)
        return w, b

    w1, b1 = lin(ks[0], ks[1], D_IN, D_H1)
    w2, b2 = lin(ks[2], ks[3], D_H1, D_H2)
    w3, b3 = lin(ks[4], ks[5], D_H2, D_OUT)
    return (w1, b1, w2, b2, w3, b3)


def reference_forward(x_nchw, params, compute_dtype=jnp.float32):
    """Pure-JAX reference.  compute_dtype=bf16 mirrors the kernel's MXU dtype
    (bf16 operands, f32 accumulation) for a tight numerical comparison."""
    w1, b1, w2, b2, w3, b3 = params
    x = x_nchw.reshape(x_nchw.shape[0], -1).astype(compute_dtype)
    h1 = jnp.dot(x, w1.T.astype(compute_dtype),
                 preferred_element_type=jnp.float32) + b1
    h1 = jnp.maximum(h1, 0.0).astype(compute_dtype)
    h2 = jnp.dot(h1, w2.T.astype(compute_dtype),
                 preferred_element_type=jnp.float32) + b2
    h2 = jnp.maximum(h2, 0.0).astype(compute_dtype)
    return jnp.dot(h2, w3.T.astype(compute_dtype),
                   preferred_element_type=jnp.float32) + b3


if __name__ == "__main__":
    key = jax.random.PRNGKey(0)
    k_params, k_x = jax.random.split(key)

    params = init_params(k_params)
    prepared = prepare_params(params)          # one-time, hoisted weight prep

    # Small MNIST-like batch; B=48 exercises a 2-tile "parallel" grid (bm=32)
    # and a ragged final tile handled by Pallas OOB masking (no batch padding).
    B = 48
    x = jax.random.normal(k_x, (B, 1, 28, 28), jnp.float32)

    forward = jax.jit(net_forward)
    out = jax.block_until_ready(forward(x, prepared))
    assert out.shape == (B, 10)

    # Primary check: reference computed with the same bf16-operand / f32-accum
    # arithmetic as the kernel.
    ref_bf16 = reference_forward(x, params, compute_dtype=jnp.bfloat16)
    assert jnp.allclose(out, ref_bf16, atol=5e-3, rtol=5e-3), \
        "mismatch vs bf16-matched reference"

    # Sanity check against the full-f32 reference (loose tolerance: bf16 operands).
    ref_f32 = reference_forward(x, params, compute_dtype=jnp.float32)
    assert jnp.allclose(out, ref_f32, atol=5e-2, rtol=5e-2), \
        "mismatch vs f32 reference"

    print("KERNEL_OK")
</pallas_src>

<mosaic_0001>
module attributes {stable_mosaic.version = 11 : i64} {
  func.func @mlp_kernel(%arg0: i32, %arg1: memref<32x784xf32, #tpu.memory_space<vmem>>, %arg2: memref<784x896xbf16, #tpu.memory_space<vmem>>, %arg3: memref<1x896xf32, #tpu.memory_space<vmem>>, %arg4: memref<896x256xbf16, #tpu.memory_space<vmem>>, %arg5: memref<1x256xf32, #tpu.memory_space<vmem>>, %arg6: memref<256x128xbf16, #tpu.memory_space<vmem>>, %arg7: memref<1x128xf32, #tpu.memory_space<vmem>>, %arg8: memref<32x128xf32, #tpu.memory_space<vmem>>) attributes {dimension_semantics = [#tpu.dimension_semantics<parallel>], iteration_bounds = array<i64: 2>, scalar_prefetch = 0 : i64, scratch_operands = 0 : i64, tpu.core_type = #tpu.core_type<tc>, window_params = [{transform_indices = @transform_0, window_bounds = array<i64: 32, 784>}, {pipeline_mode = #tpu.pipeline_mode<synchronous>, transform_indices = @transform_1, window_bounds = array<i64: 784, 896>}, {pipeline_mode = #tpu.pipeline_mode<synchronous>, transform_indices = @transform_2, window_bounds = array<i64: 1, 896>}, {pipeline_mode = #tpu.pipeline_mode<synchronous>, transform_indices = @transform_3, window_bounds = array<i64: 896, 256>}, {pipeline_mode = #tpu.pipeline_mode<synchronous>, transform_indices = @transform_4, window_bounds = array<i64: 1, 256>}, {pipeline_mode = #tpu.pipeline_mode<synchronous>, transform_indices = @transform_5, window_bounds = array<i64: 256, 128>}, {pipeline_mode = #tpu.pipeline_mode<synchronous>, transform_indices = @transform_6, window_bounds = array<i64: 1, 128>}, {transform_indices = @transform_7, window_bounds = array<i64: 32, 128>}]} {
    %c0 = arith.constant 0 : index
    %c0_0 = arith.constant 0 : index
    %0 = vector.load %arg1[%c0, %c0_0] : memref<32x784xf32, #tpu.memory_space<vmem>>, vector<32x784xf32>
    %1 = arith.truncf %0 : vector<32x784xf32> to vector<32x784xbf16>
    %c0_1 = arith.constant 0 : index
    %c0_2 = arith.constant 0 : index
    %2 = vector.load %arg2[%c0_1, %c0_2] : memref<784x896xbf16, #tpu.memory_space<vmem>>, vector<784x896xbf16>
    %cst = arith.constant dense<0.000000e+00> : vector<32x896xf32>
    %3 = tpu.matmul %1, %2, %cst {dimension_numbers = #tpu.dot_dimension_numbers<[1], [0], [0], [1], [0, 0, 1, 1], [], []>} : vector<32x784xbf16>, vector<784x896xbf16>, vector<32x896xf32> -> vector<32x896xf32>
    %c0_3 = arith.constant 0 : index
    %c0_4 = arith.constant 0 : index
    %4 = vector.load %arg3[%c0_3, %c0_4] : memref<1x896xf32, #tpu.memory_space<vmem>>, vector<1x896xf32>
    %5 = vector.broadcast %4 : vector<1x896xf32> to vector<32x896xf32>
    %6 = arith.addf %3, %5 : vector<32x896xf32>
    %cst_5 = arith.constant 0.000000e+00 : f32
    %7 = vector.broadcast %cst_5 : f32 to vector<32x896xf32>
    %8 = arith.maximumf %6, %7 : vector<32x896xf32>
    %9 = arith.truncf %8 : vector<32x896xf32> to vector<32x896xbf16>
    %c0_6 = arith.constant 0 : index
    %c0_7 = arith.constant 0 : index
    %10 = vector.load %arg4[%c0_6, %c0_7] : memref<896x256xbf16, #tpu.memory_space<vmem>>, vector<896x256xbf16>
    %cst_8 = arith.constant dense<0.000000e+00> : vector<32x256xf32>
    %11 = tpu.matmul %9, %10, %cst_8 {dimension_numbers = #tpu.dot_dimension_numbers<[1], [0], [0], [1], [0, 0, 1, 1], [], []>} : vector<32x896xbf16>, vector<896x256xbf16>, vector<32x256xf32> -> vector<32x256xf32>
    %c0_9 = arith.constant 0 : index
    %c0_10 = arith.constant 0 : index
    %12 = vector.load %arg5[%c0_9, %c0_10] : memref<1x256xf32, #tpu.memory_space<vmem>>, vector<1x256xf32>
    %13 = vector.broadcast %12 : vector<1x256xf32> to vector<32x256xf32>
    %14 = arith.addf %11, %13 : vector<32x256xf32>
    %cst_11 = arith.constant 0.000000e+00 : f32
    %15 = vector.broadcast %cst_11 : f32 to vector<32x256xf32>
    %16 = arith.maximumf %14, %15 : vector<32x256xf32>
    %17 = arith.truncf %16 : vector<32x256xf32> to vector<32x256xbf16>
    %c0_12 = arith.constant 0 : index
    %c0_13 = arith.constant 0 : index
    %18 = vector.load %arg6[%c0_12, %c0_13] : memref<256x128xbf16, #tpu.memory_space<vmem>>, vector<256x128xbf16>
    %cst_14 = arith.constant dense<0.000000e+00> : vector<32x128xf32>
    %19 = tpu.matmul %17, %18, %cst_14 {dimension_numbers = #tpu.dot_dimension_numbers<[1], [0], [0], [1], [0, 0, 1, 1], [], []>} : vector<32x256xbf16>, vector<256x128xbf16>, vector<32x128xf32> -> vector<32x128xf32>
    %c0_15 = arith.constant 0 : index
    %c0_16 = arith.constant 0 : index
    %20 = vector.load %arg7[%c0_15, %c0_16] : memref<1x128xf32, #tpu.memory_space<vmem>>, vector<1x128xf32>
    %21 = vector.broadcast %20 : vector<1x128xf32> to vector<32x128xf32>
    %22 = arith.addf %19, %21 : vector<32x128xf32>
    %c0_17 = arith.constant 0 : index
    %c0_18 = arith.constant 0 : index
    %23 = vector.load %arg8[%c0_17, %c0_18] : memref<32x128xf32, #tpu.memory_space<vmem>>, vector<32x128xf32>
    tpu.vector_store %arg8[%c0_17, %c0_18], %22 {strides = array<i32>} : memref<32x128xf32, #tpu.memory_space<vmem>>, vector<32x128xf32>,
    return
  }
  func.func @transform_0(%arg0: i32) -> (i32, i32) {
    %c0_i32 = arith.constant 0 : i32
    %c0_i32_0 = arith.constant 0 : i32
    return %arg0, %c0_i32 : i32, i32
  }
  func.func @transform_1(%arg0: i32) -> (i32, i32) {
    %c0_i32 = arith.constant 0 : i32
    %c0_i32_0 = arith.constant 0 : i32
    %c0_i32_1 = arith.constant 0 : i32
    return %c0_i32, %c0_i32_0 : i32, i32
  }
  func.func @transform_2(%arg0: i32) -> (i32, i32) {
    %c0_i32 = arith.constant 0 : i32
    %c0_i32_0 = arith.constant 0 : i32
    %c0_i32_1 = arith.constant 0 : i32
    return %c0_i32, %c0_i32_0 : i32, i32
  }
  func.func @transform_3(%arg0: i32) -> (i32, i32) {
    %c0_i32 = arith.constant 0 : i32
    %c0_i32_0 = arith.constant 0 : i32
    %c0_i32_1 = arith.constant 0 : i32
    return %c0_i32, %c0_i32_0 : i32, i32
  }
  func.func @transform_4(%arg0: i32) -> (i32, i32) {
    %c0_i32 = arith.constant 0 : i32
    %c0_i32_0 = arith.constant 0 : i32
    %c0_i32_1 = arith.constant 0 : i32
    return %c0_i32, %c0_i32_0 : i32, i32
  }
  func.func @transform_5(%arg0: i32) -> (i32, i32) {
    %c0_i32 = arith.constant 0 : i32
    %c0_i32_0 = arith.constant 0 : i32
    %c0_i32_1 = arith.constant 0 : i32
    return %c0_i32, %c0_i32_0 : i32, i32
  }
  func.func @transform_6(%arg0: i32) -> (i32, i32) {
    %c0_i32 = arith.constant 0 : i32
    %c0_i32_0 = arith.constant 0 : i32
    %c0_i32_1 = arith.constant 0 : i32
    return %c0_i32, %c0_i32_0 : i32, i32
  }
  func.func @transform_7(%arg0: i32) -> (i32, i32) {
    %c0_i32 = arith.constant 0 : i32
    %c0_i32_0 = arith.constant 0 : i32
    return %arg0, %c0_i32 : i32, i32
  }
}

</mosaic_0001>

<llo_original>
// kernel: net_forward.1
$region0: #{net_forward.1}
  #allocation0 [shape = 'u32[]', space=smem, size = 0x4, offset = 0x4, fixed_abs, tag = 'smem constant byte address 0x4 - core index']
  #allocation1 [shape = 'u32[144,128]{1,0:T(1,128)}', space=vmem, size = 0x12000, scoped, tag = 'internal scratch']
  %s0 = inlined_call_operand.vmem [shape: f32[48,784], index: 0, kind: input, shape index: {}]
  %s1 = inlined_call_operand.hbm [shape: bf16[784,896], index: 1, kind: input, shape index: {}]
  %s2 = inlined_call_operand.hbm [shape: f32[1,896], index: 2, kind: input, shape index: {}]
  %s3 = inlined_call_operand.hbm [shape: bf16[896,256], index: 3, kind: input, shape index: {}]
  %s4 = inlined_call_operand.hbm [shape: f32[1,256], index: 4, kind: input, shape index: {}]
  %s5 = inlined_call_operand.hbm [shape: bf16[256,128], index: 5, kind: input, shape index: {}]
  %s6 = inlined_call_operand.hbm [shape: f32[1,128], index: 6, kind: input, shape index: {}]
  %s7 = inlined_call_operand.vmem [shape: f32[48,128], index: 7, kind: output, shape index: {}]
  %s8 = sld [smem:[#allocation0]]
  $region133: #{net_forward.1} parent=0
    _
  %s10 = ssub.s32 1, %s8
  %s11 = scalar_select 0, %s10, %s8
  $region1: #{net_forward.1} parent=0
    #allocation2 [shape = 'u8[1404928]{0}', space=vmem, size = 0x157000, scoped, tag = 'input window, operand 1, single buffered']
    #allocation3 [shape = 's32[2]{0}', space=sflag, size = 0x8, scoped, tag = 'scoped memory for net_forward.1']
    #allocation4 [shape = 'u8[3584]{0}', space=vmem, size = 0x1000, scoped, tag = 'input window, operand 2, single buffered']
    #allocation5 [shape = 's32[1]{0}', space=sflag, size = 0x4, scoped, tag = 'scoped memory for net_forward.1']
    #allocation6 [shape = 'u8[458752]{0}', space=vmem, size = 0x70000, scoped, tag = 'input window, operand 3, single buffered']
    #allocation7 [shape = 'u8[1024]{0}', space=vmem, size = 0x400, scoped, tag = 'input window, operand 4, single buffered']
    #allocation8 [shape = 's32[1]{0}', space=sflag, size = 0x4, scoped, tag = 'scoped memory for net_forward.1']
    #allocation9 [shape = 'u8[65536]{0}', space=vmem, size = 0x10000, scoped, tag = 'input window, operand 5, single buffered']
    #allocation10 [shape = 'u8[512]{0}', space=vmem, size = 0x400, scoped, tag = 'input window, operand 6, single buffered']
    #allocation11 [shape = 's32[1]{0}', space=sflag, size = 0x4, scoped, tag = 'scoped memory for net_forward.1']
    #allocation12 [shape = 'u8[32768]{0}', space=vmem, size = 0x8000, scoped, tag = 'output window, operand 0']
    %12 = vsyncpa [#allocation3], 0
    %13 = vsyncpa [#allocation5], 0
    %14 = vsyncpa [#allocation8], 0
    %15 = vsyncpa [#allocation11], 0
    loop: start=0, step=1, limit=4
    $region2: #{net_forward.1} parent=1 // loop_pre_header
      _
    $region3: #{net_forward.1} parent=1 // loop_header
      %s17 = sphi 0, %s21
      %p18 = scmp.ge.s32.totalorder %s17, 4
      %s27 = sphi 0, %s29
      %s30 = sphi 0, %s27
      %s31 = sphi 0, %s30
      %s47 = sphi 0, %s31
      %s51 = sphi 0, %s51
      %s53 = sphi 0, %s51
      %s54 = sphi 0, %s53
      %s68 = sphi 0, %s54
      %s72 = sphi 0, %s72
      %s74 = sphi 0, %s72
      %s75 = sphi 0, %s74
      %s89 = sphi 0, %s75
      %s93 = sphi 0, %s93
      %s95 = sphi 0, %s93
      %s96 = sphi 0, %s95
      %s110 = sphi 0, %s96
      %s114 = sphi 0, %s114
      %s116 = sphi 0, %s114
      %s117 = sphi 0, %s116
      %s131 = sphi 0, %s117
      %s135 = sphi 0, %s135
      %s137 = sphi 0, %s135
      %s138 = sphi 0, %s137
      %s152 = sphi 0, %s138
      %s156 = sphi 0, %s156
      %s158 = sphi 0, %s156
      %s159 = sphi 0, %s158
      %s173 = sphi 0, %s159
      %s179 = sphi 0, %s181
      %s182 = sphi 0, %s179
      %s183 = sphi 0, %s182
      %s199 = sphi 0, %s183
    $region4: #{net_forward.1} parent=1 // loop_header_branch
      %20 = sbr.rel (%p18) target = $region8
    $region5: #{net_forward.1} parent=1 // loop_body
      %s22 = ssub.s32 %s17, 1
      %s23 = ssub.s32 %s17, 2
      %s24 = sadd.s32 %s17, 1
      %s25 = ssub.s32 %s17, %s24
      %p26 = scmp.eq.s32.totalorder %s25, 0
      %s28 = sadd.s32 %s27, 1
      %s29 = scalar_select %p26, %s27, %s28
      %p32 = pneg %p26
      %p33 = scmp.eq.s32.totalorder %s17, 1
      %p34 = por %p32, %p33
      %p35 = scmp.ne.s32.totalorder %s27, %s30
      %p36 = scmp.eq.s32.totalorder %s17, 0
      %p37 = por %p35, %p36
      %p38 = scmp.ne.s32.totalorder %s27, %s30
      %p39 = scmp.eq.s32.totalorder %s22, 1
      %p40 = por %p38, %p39
      %p41 = scmp.ne.s32.totalorder %s30, %s31
      %p42 = scmp.eq.s32.totalorder %s22, 0
      %p43 = por %p41, %p42
      %p44 = scmp.ne.s32.totalorder %s30, %s31
      %p45 = scmp.eq.s32.totalorder %s23, 1
      %p46 = por %p44, %p45
      %p48 = scmp.ne.s32.totalorder %s31, %s47
      %p49 = scmp.eq.s32.totalorder %s23, 0
      %p50 = por %p48, %p49
      %s52 = sadd.s32 %s51, 1
      %p55 = scmp.eq.s32.totalorder %s17, 1
      %p56 = scmp.ne.s32.totalorder %s51, %s53
      %p57 = scmp.eq.s32.totalorder %s17, 0
      %p58 = por %p56, %p57
      %p59 = scmp.ne.s32.totalorder %s51, %s53
      %p60 = scmp.eq.s32.totalorder %s22, 1
      %p61 = por %p59, %p60
      %p62 = scmp.ne.s32.totalorder %s53, %s54
      %p63 = scmp.eq.s32.totalorder %s22, 0
      %p64 = por %p62, %p63
      %p65 = scmp.ne.s32.totalorder %s53, %s54
      %p66 = scmp.eq.s32.totalorder %s23, 1
      %p67 = por %p65, %p66
      %p69 = scmp.ne.s32.totalorder %s54, %s68
      %p70 = scmp.eq.s32.totalorder %s23, 0
      %p71 = por %p69, %p70
      %s73 = sadd.s32 %s72, 1
      %p76 = scmp.eq.s32.totalorder %s17, 1
      %p77 = scmp.ne.s32.totalorder %s72, %s74
      %p78 = scmp.eq.s32.totalorder %s17, 0
      %p79 = por %p77, %p78
      %p80 = scmp.ne.s32.totalorder %s72, %s74
      %p81 = scmp.eq.s32.totalorder %s22, 1
      %p82 = por %p80, %p81
      %p83 = scmp.ne.s32.totalorder %s74, %s75
      %p84 = scmp.eq.s32.totalorder %s22, 0
      %p85 = por %p83, %p84
      %p86 = scmp.ne.s32.totalorder %s74, %s75
      %p87 = scmp.eq.s32.totalorder %s23, 1
      %p88 = por %p86, %p87
      %p90 = scmp.ne.s32.totalorder %s75, %s89
      %p91 = scmp.eq.s32.totalorder %s23, 0
      %p92 = por %p90, %p91
      %s94 = sadd.s32 %s93, 1
      %p97 = scmp.eq.s32.totalorder %s17, 1
      %p98 = scmp.ne.s32.totalorder %s93, %s95
      %p99 = scmp.eq.s32.totalorder %s17, 0
      %p100 = por %p98, %p99
      %p101 = scmp.ne.s32.totalorder %s93, %s95
      %p102 = scmp.eq.s32.totalorder %s22, 1
      %p103 = por %p101, %p102
      %p104 = scmp.ne.s32.totalorder %s95, %s96
      %p105 = scmp.eq.s32.totalorder %s22, 0
      %p106 = por %p104, %p105
      %p107 = scmp.ne.s32.totalorder %s95, %s96
      %p108 = scmp.eq.s32.totalorder %s23, 1
      %p109 = por %p107, %p108
      %p111 = scmp.ne.s32.totalorder %s96, %s110
      %p112 = scmp.eq.s32.totalorder %s23, 0
      %p113 = por %p111, %p112
      %s115 = sadd.s32 %s114, 1
      %p118 = scmp.eq.s32.totalorder %s17, 1
      %p119 = scmp.ne.s32.totalorder %s114, %s116
      %p120 = scmp.eq.s32.totalorder %s17, 0
      %p121 = por %p119, %p120
      %p122 = scmp.ne.s32.totalorder %s114, %s116
      %p123 = scmp.eq.s32.totalorder %s22, 1
      %p124 = por %p122, %p123
      %p125 = scmp.ne.s32.totalorder %s116, %s117
      %p126 = scmp.eq.s32.totalorder %s22, 0
      %p127 = por %p125, %p126
      %p128 = scmp.ne.s32.totalorder %s116, %s117
      %p129 = scmp.eq.s32.totalorder %s23, 1
      %p130 = por %p128, %p129
      %p132 = scmp.ne.s32.totalorder %s117, %s131
      %p133 = scmp.eq.s32.totalorder %s23, 0
      %p134 = por %p132, %p133
      %s136 = sadd.s32 %s135, 1
      %p139 = scmp.eq.s32.totalorder %s17, 1
      %p140 = scmp.ne.s32.totalorder %s135, %s137
      %p141 = scmp.eq.s32.totalorder %s17, 0
      %p142 = por %p140, %p141
      %p143 = scmp.ne.s32.totalorder %s135, %s137
      %p144 = scmp.eq.s32.totalorder %s22, 1
      %p145 = por %p143, %p144
      %p146 = scmp.ne.s32.totalorder %s137, %s138
      %p147 = scmp.eq.s32.totalorder %s22, 0
      %p148 = por %p146, %p147
      %p149 = scmp.ne.s32.totalorder %s137, %s138
      %p150 = scmp.eq.s32.totalorder %s23, 1
      %p151 = por %p149, %p150
      %p153 = scmp.ne.s32.totalorder %s138, %s152
      %p154 = scmp.eq.s32.totalorder %s23, 0
      %p155 = por %p153, %p154
      %s157 = sadd.s32 %s156, 1
      %p160 = scmp.eq.s32.totalorder %s17, 1
      %p161 = scmp.ne.s32.totalorder %s156, %s158
      %p162 = scmp.eq.s32.totalorder %s17, 0
      %p163 = por %p161, %p162
      %p164 = scmp.ne.s32.totalorder %s156, %s158
      %p165 = scmp.eq.s32.totalorder %s22, 1
      %p166 = por %p164, %p165
      %p167 = scmp.ne.s32.totalorder %s158, %s159
      %p168 = scmp.eq.s32.totalorder %s22, 0
      %p169 = por %p167, %p168
      %p170 = scmp.ne.s32.totalorder %s158, %s159
      %p171 = scmp.eq.s32.totalorder %s23, 1
      %p172 = por %p170, %p171
      %p174 = scmp.ne.s32.totalorder %s159, %s173
      %p175 = scmp.eq.s32.totalorder %s23, 0
      %p176 = por %p174, %p175
      %s177 = ssub.s32 %s17, %s24
      %p178 = scmp.eq.s32.totalorder %s177, 0
      %s180 = sadd.s32 %s179, 1
      %s181 = scalar_select %p178, %s179, %s180
      %p184 = pneg %p178
      %p185 = scmp.eq.s32.totalorder %s17, 1
      %p186 = por %p184, %p185
      %p187 = scmp.ne.s32.totalorder %s179, %s182
      %p188 = scmp.eq.s32.totalorder %s17, 0
      %p189 = por %p187, %p188
      %p190 = scmp.ne.s32.totalorder %s179, %s182
      %p191 = scmp.eq.s32.totalorder %s22, 1
      %p192 = por %p190, %p191
      %p193 = scmp.ne.s32.totalorder %s182, %s183
      %p194 = scmp.eq.s32.totalorder %s22, 0
      %p195 = por %p193, %p194
      %p196 = scmp.ne.s32.totalorder %s182, %s183
      %p197 = scmp.eq.s32.totalorder %s23, 1
      %p198 = por %p196, %p197
      %p200 = scmp.ne.s32.totalorder %s183, %s199
      %p201 = scmp.eq.s32.totalorder %s23, 0
      %p202 = por %p200, %p201
      %p203 = scmp.le.s32.totalorder 1, %s17
      %p204 = scmp.lt.s32.totalorder %s17, 3
      %p205 = pnand %p203, %p204
      %p206 = pneg %p205
      // Predicated region
      $region9: #{net_forward.1} parent=5 // pred_check
        _
      $region10: #{net_forward.1} parent=5 // pred_check_branch
        %208 = sbr.rel (%p205) target = $region12
      $region11: #{net_forward.1} parent=5 // pred_region
        %s209 = ssub.s32 %s17, 1
        // Predicated region
        $region13: #{net_forward.1} parent=11 // pred_check
          %p210 = pneg %p64
        $region14: #{net_forward.1} parent=11 // pred_check_branch
          %212 = sbr.rel (%p210) target = $region16
        $region15: #{net_forward.1} parent=11 // pred_region
          %s214 = ssub.s32 43904, 43904
          %215 = vsyncadd [#allocation3], %s214
          %s216 = sshll.u32 [#allocation2], 4
          %s217 = int_to_ptr.vmem [resolvable:$true] %s216
          %222 = dma.hbm_to_vmem [thread:$0]  %s1, 43904, %s217, [#allocation3], 448, 448, 28
        $region16: #{net_forward.1} parent=11 // pred_fallthru
          _
        // Predicated region
        $region17: #{net_forward.1} parent=11 // pred_check
          %p223 = pneg %p85
        $region18: #{net_forward.1} parent=11 // pred_check_branch
          %225 = sbr.rel (%p223) target = $region20
        $region19: #{net_forward.1} parent=11 // pred_region
          %s227 = ssub.s32 112, 112
          %228 = vsyncadd [#allocation5], %s227
          %s230 = sshll.u32 [#allocation4], 4
          %s231 = int_to_ptr.vmem [resolvable:$true] %s230
          %233 = dma.hbm_to_vmem [thread:$0]  %s2, 112, %s231, [#allocation5]
        $region20: #{net_forward.1} parent=11 // pred_fallthru
          _
        // Predicated region
        $region21: #{net_forward.1} parent=11 // pred_check
          %p234 = pneg %p106
        $region22: #{net_forward.1} parent=11 // pred_check_branch
          %236 = sbr.rel (%p234) target = $region24
        $region23: #{net_forward.1} parent=11 // pred_region
          %s238 = ssub.s32 14336, 14336
          %239 = vsyncadd [#allocation5], %s238
          %s240 = sshll.u32 [#allocation6], 4
          %s241 = int_to_ptr.vmem [resolvable:$true] %s240
          %246 = dma.hbm_to_vmem [thread:$0]  %s3, 14336, %s241, [#allocation5], 128, 128, 8
        $region24: #{net_forward.1} parent=11 // pred_fallthru
          _
        // Predicated region
        $region25: #{net_forward.1} parent=11 // pred_check
          %p247 = pneg %p127
        $region26: #{net_forward.1} parent=11 // pred_check_branch
          %249 = sbr.rel (%p247) target = $region28
        $region27: #{net_forward.1} parent=11 // pred_region
          %s251 = ssub.s32 32, 32
          %252 = vsyncadd [#allocation8], %s251
          %s254 = sshll.u32 [#allocation7], 4
          %s255 = int_to_ptr.vmem [resolvable:$true] %s254
          %257 = dma.hbm_to_vmem [thread:$0]  %s4, 32, %s255, [#allocation8]
        $region28: #{net_forward.1} parent=11 // pred_fallthru
          _
        // Predicated region
        $region29: #{net_forward.1} parent=11 // pred_check
          %p258 = pneg %p148
        $region30: #{net_forward.1} parent=11 // pred_check_branch
          %260 = sbr.rel (%p258) target = $region32
        $region31: #{net_forward.1} parent=11 // pred_region
          %s262 = ssub.s32 2048, 2048
          %263 = vsyncadd [#allocation8], %s262
          %s264 = sshll.u32 [#allocation9], 4
          %s265 = int_to_ptr.vmem [resolvable:$true] %s264
          %270 = dma.hbm_to_vmem [thread:$0]  %s5, 2048, %s265, [#allocation8], 64, 64, 4
        $region32: #{net_forward.1} parent=11 // pred_fallthru
          _
        // Predicated region
        $region33: #{net_forward.1} parent=11 // pred_check
          %p271 = pneg %p169
        $region34: #{net_forward.1} parent=11 // pred_check_branch
          %273 = sbr.rel (%p271) target = $region36
        $region35: #{net_forward.1} parent=11 // pred_region
          %s275 = ssub.s32 16, 16
          %276 = vsyncadd [#allocation11], %s275
          %s278 = sshll.u32 [#allocation10], 4
          %s279 = int_to_ptr.vmem [resolvable:$true] %s278
          %281 = dma.hbm_to_vmem [thread:$0]  %s6, 16, %s279, [#allocation11]
        $region36: #{net_forward.1} parent=11 // pred_fallthru
          _
      $region12: #{net_forward.1} parent=5 // pred_fallthru
        _
      %p282 = scmp.lt.s32.totalorder %s17, 2
      // Predicated region
      $region37: #{net_forward.1} parent=5 // pred_check
        %p283 = pneg %p282
      $region38: #{net_forward.1} parent=5 // pred_check_branch
        %285 = sbr.rel (%p283) target = $region40
      $region39: #{net_forward.1} parent=5 // pred_region
        // Predicated region
        $region41: #{net_forward.1} parent=39 // pred_check
          %p286 = pneg %p37
        $region42: #{net_forward.1} parent=39 // pred_check_branch
          %288 = sbr.rel (%p286) target = $region44
        $region43: #{net_forward.1} parent=39 // pred_region
          %s289 = smul.u32 4, %s17
          %s290 = ssub.s32 6, %s289
          %p291 = scmp.lt.s32.totalorder %s290, 4
          %s292 = scalar_select %p291, %s290, 4
          %s293 = smul.u32 128, %s292
          %s294 = smul.u32 %s293, 7
          %p295 = scmp.lt.s32.totalorder %s289, 5
          %s296 = scalar_select %p295, %s289, 5
          %s297 = smul.addr %s296, 7
          %s298 = smul.addr %s297, 8
          %s299 = scalar_lea.vmem %s0, %s298
          %s300 = smul.u32 4, %s17
          %s301 = ssub.s32 6, %s300
          %p302 = scmp.lt.s32.totalorder %s301, 4
          %s303 = scalar_select %p302, %s301, 4
          %s304 = smul.u32 128, %s303
          %s305 = smul.u32 %s304, 7
        $region44: #{net_forward.1} parent=39 // pred_fallthru
          _
      $region40: #{net_forward.1} parent=5 // pred_fallthru
        _
      %p306 = scmp.le.s32.totalorder 1, %s17
      %p307 = scmp.lt.s32.totalorder %s17, 3
      %p308 = pnand %p306, %p307
      %p309 = pneg %p308
      // Predicated region
      $region45: #{net_forward.1} parent=5 // pred_check
        _
      $region46: #{net_forward.1} parent=5 // pred_check_branch
        %311 = sbr.rel (%p308) target = $region48
      $region47: #{net_forward.1} parent=5 // pred_region
        %s312 = ssub.s32 %s17, 1
        // Predicated region
        $region49: #{net_forward.1} parent=47 // pred_check
          %p313 = pneg %p64
        $region50: #{net_forward.1} parent=47 // pred_check_branch
          %315 = sbr.rel (%p313) target = $region52
        $region51: #{net_forward.1} parent=47 // pred_region
          %316 = dma.done [#allocation3], 43904
        $region52: #{net_forward.1} parent=47 // pred_fallthru
          _
        // Predicated region
        $region53: #{net_forward.1} parent=47 // pred_check
          %p317 = pneg %p85
        $region54: #{net_forward.1} parent=47 // pred_check_branch
          %319 = sbr.rel (%p317) target = $region56
        $region55: #{net_forward.1} parent=47 // pred_region
          %320 = dma.done [#allocation5], 112
        $region56: #{net_forward.1} parent=47 // pred_fallthru
          _
        // Predicated region
        $region57: #{net_forward.1} parent=47 // pred_check
          %p321 = pneg %p106
        $region58: #{net_forward.1} parent=47 // pred_check_branch
          %323 = sbr.rel (%p321) target = $region60
        $region59: #{net_forward.1} parent=47 // pred_region
          %324 = dma.done [#allocation5], 14336
        $region60: #{net_forward.1} parent=47 // pred_fallthru
          _
        // Predicated region
        $region61: #{net_forward.1} parent=47 // pred_check
          %p325 = pneg %p127
        $region62: #{net_forward.1} parent=47 // pred_check_branch
          %327 = sbr.rel (%p325) target = $region64
        $region63: #{net_forward.1} parent=47 // pred_region
          %328 = dma.done [#allocation8], 32
        $region64: #{net_forward.1} parent=47 // pred_fallthru
          _
        // Predicated region
        $region65: #{net_forward.1} parent=47 // pred_check
          %p329 = pneg %p148
        $region66: #{net_forward.1} parent=47 // pred_check_branch
          %331 = sbr.rel (%p329) target = $region68
        $region67: #{net_forward.1} parent=47 // pred_region
          %332 = dma.done [#allocation8], 2048
        $region68: #{net_forward.1} parent=47 // pred_fallthru
          _
        // Predicated region
        $region69: #{net_forward.1} parent=47 // pred_check
          %p333 = pneg %p169
        $region70: #{net_forward.1} parent=47 // pred_check_branch
          %335 = sbr.rel (%p333) target = $region72
        $region71: #{net_forward.1} parent=47 // pred_region
          %336 = dma.done [#allocation11], 16
        $region72: #{net_forward.1} parent=47 // pred_fallthru
          _
        %s337 = smul.u32 4, %s22
        %s338 = ssub.s32 6, %s337
        %p339 = scmp.lt.s32.totalorder %s338, 4
        %s340 = scalar_select %p339, %s338, 4
        %s341 = smul.u32 128, %s340
        %s342 = smul.u32 %s341, 7
        %p343 = scmp.lt.s32.totalorder %s337, 5
        %s344 = scalar_select %p343, %s337, 5
        %s345 = smul.addr %s344, 7
        %s346 = smul.addr %s345, 8
        %s347 = scalar_lea.vmem %s0, %s346
        %p348 = pneg %p43
        %p349 = pneg %p40
        %p350 = pneg %p64
        %p351 = pneg %p61
        %p352 = pneg %p85
        %p353 = pneg %p82
        %p354 = pneg %p106
        %p355 = pneg %p103
        %p356 = pneg %p127
        %p357 = pneg %p124
        %p358 = pneg %p148
        %p359 = pneg %p145
        %p360 = pneg %p169
        %p361 = pneg %p166
        %p362 = pneg %p195
        %p363 = pneg %p192
        %s364 = sand.u32 %s182, 1
        %s365 = sand.u32 %s182, 1
        %s366 = smul.addr %s365, 32
        %s367 = scalar_lea.vmem [#allocation12], %s366
        %s368 = smul.u32 4, %s22
        %s369 = ssub.s32 6, %s368
        %p370 = scmp.lt.s32.totalorder %s369, 4
        %s371 = scalar_select %p370, %s369, 4
        %s372 = smul.u32 128, %s371
        %s373 = smul.u32 %s372, 7
        %p374 = scmp.lt.s32.totalorder %s368, 5
        %s375 = scalar_select %p374, %s368, 5
        %s376 = smul.addr %s375, 7
        %s377 = smul.addr %s376, 8
        %s378 = scalar_lea.vmem %s0, %s377
        %s379 = smul.u32 4, %s22
        %s380 = ssub.s32 6, %s379
        %p381 = scmp.lt.s32.totalorder %s380, 4
        %s382 = scalar_select %p381, %s380, 4
        %s383 = smul.u32 128, %s382
        %s384 = smul.u32 %s383, 7
        %s385 = smul.u32 4, %s22
        %s386 = ssub.s32 6, %s385
        %p387 = scmp.lt.s32.totalorder %s386, 4
        %s388 = scalar_select %p387, %s386, 4
        %s389 = smul.u32 128, %s388
        %v391 = vld [vmem:[%s378] sm:$0xff]
        %v392 = vld [vmem:[%s378 + $0x8] sm:$0xff]
        %v393 = vld [vmem:[%s378 + $0x10] sm:$0xff]
        %v394 = vld [vmem:[%s378 + $0x18] sm:$0xff]
        %v395 = vld [vmem:[%s378 + $0x20] sm:$0xff]
        %v396 = vld [vmem:[%s378 + $0x28] sm:$0xff]
        %v397 = vld [vmem:[%s378 + $0x30] sm:$0xff]
        %v398 = vld [vmem:[%s378 + $0x38] sm:$0xff]
        %v399 = vld [vmem:[%s378 + $0x40] sm:$0xff]
        %v400 = vld [vmem:[%s378 + $0x48] sm:$0xff]
        %v401 = vld [vmem:[%s378 + $0x50] sm:$0xff]
        %v402 = vld [vmem:[%s378 + $0x58] sm:$0xff]
        %v403 = vld [vmem:[%s378 + $0x60] sm:$0xff]
        %v404 = vld [vmem:[%s378 + $0x68] sm:$0xff]
        %v405 = vld [vmem:[%s378 + $0x70] sm:$0xff]
        %v406 = vld [vmem:[%s378 + $0x78] sm:$0xff]
        %v407 = vld [vmem:[%s378 + $0x80] sm:$0xff]
        %v408 = vld [vmem:[%s378 + $0x88] sm:$0xff]
        %v409 = vld [vmem:[%s378 + $0x90] sm:$0xff]
        %v410 = vld [vmem:[%s378 + $0x98] sm:$0xff]
        %v411 = vld [vmem:[%s378 + $0xa0] sm:$0xff]
        %v412 = vld [vmem:[%s378 + $0xa8] sm:$0xff]
        %v413 = vld [vmem:[%s378 + $0xb0] sm:$0xff]
        %v414 = vld [vmem:[%s378 + $0xb8] sm:$0xff]
        %v415 = vld [vmem:[%s378 + $0xc0] sm:$0xff]
        %v416 = vld [vmem:[%s378 + $0xc8] sm:$0xff]
        %v417 = vld [vmem:[%s378 + $0xd0] sm:$0xff]
        %v418 = vld [vmem:[%s378 + $0xd8] sm:$0xff]
        %v419 = vpack.c.bf16 %v398, %v391
        %v420 = vpack.c.bf16 %v399, %v392
        %v421 = vpack.c.bf16 %v400, %v393
        %v422 = vpack.c.bf16 %v401, %v394
        %v423 = vpack.c.bf16 %v402, %v395
        %v424 = vpack.c.bf16 %v403, %v396
        %v425 = vpack.c.bf16 %v404, %v397
        %v426 = vpack.c.bf16 %v412, %v405
        %v427 = vpack.c.bf16 %v413, %v406
        %v428 = vpack.c.bf16 %v414, %v407
        %v429 = vpack.c.bf16 %v415, %v408
        %v430 = vpack.c.bf16 %v416, %v409
        %v431 = vpack.c.bf16 %v417, %v410
        %v432 = vpack.c.bf16 %v418, %v411
        %v433 = vld [vmem:[#allocation2] sm:$0xff]
        %v434 = vld [vmem:[#allocation2 + $0x8] sm:$0xff]
        %v435 = vld [vmem:[#allocation2 + $0x10] sm:$0xff]
        %v436 = vld [vmem:[#allocation2 + $0x18] sm:$0xf]
        %v437 = vld [vmem:[#allocation2 + $0x1c] sm:$0xff]
        %v438 = vld [vmem:[#allocation2 + $0x24] sm:$0xff]
        %v439 = vld [vmem:[#allocation2 + $0x2c] sm:$0xff]
        %v440 = vld [vmem:[#allocation2 + $0x34] sm:$0xf]
        %v441 = vld [vmem:[#allocation2 + $0x38] sm:$0xff]
        %v442 = vld [vmem:[#allocation2 + $0x40] sm:$0xff]
        %v443 = vld [vmem:[#allocation2 + $0x48] sm:$0xff]
        %v444 = vld [vmem:[#allocation2 + $0x50] sm:$0xf]
        %v445 = vld [vmem:[#allocation2 + $0x54] sm:$0xff]
        %v446 = vld [vmem:[#allocation2 + $0x5c] sm:$0xff]
        %v447 = vld [vmem:[#allocation2 + $0x64] sm:$0xff]
        %v448 = vld [vmem:[#allocation2 + $0x6c] sm:$0xf]
        %v449 = vld [vmem:[#allocation2 + $0x70] sm:$0xff]
        %v450 = vld [vmem:[#allocation2 + $0x78] sm:$0xff]
        %v451 = vld [vmem:[#allocation2 + $0x80] sm:$0xff]
        %v452 = vld [vmem:[#allocation2 + $0x88] sm:$0xf]
        %v453 = vld [vmem:[#allocation2 + $0x8c] sm:$0xff]
        %v454 = vld [vmem:[#allocation2 + $0x94] sm:$0xff]
        %v455 = vld [vmem:[#allocation2 + $0x9c] sm:$0xff]
        %v456 = vld [vmem:[#allocation2 + $0xa4] sm:$0xf]
        %v457 = vld [vmem:[#allocation2 + $0xa8] sm:$0xff]
        %v458 = vld [vmem:[#allocation2 + $0xb0] sm:$0xff]
        %v459 = vld [vmem:[#allocation2 + $0xb8] sm:$0xff]
        %v460 = vld [vmem:[#allocation2 + $0xc0] sm:$0xf]
        %v461 = vld [vmem:[#allocation2 + $0xc4] sm:$0xff]
        %v462 = vld [vmem:[#allocation2 + $0xcc] sm:$0xff]
        %v463 = vld [vmem:[#allocation2 + $0xd4] sm:$0xff]
        %v464 = vld [vmem:[#allocation2 + $0xdc] sm:$0xf]
        %v465 = vld [vmem:[#allocation2 + $0xe0] sm:$0xff]
        %v466 = vld [vmem:[#allocation2 + $0xe8] sm:$0xff]
        %v467 = vld [vmem:[#allocation2 + $0xf0] sm:$0xff]
        %v468 = vld [vmem:[#allocation2 + $0xf8] sm:$0xf]
        %v469 = vld [vmem:[#allocation2 + $0xfc] sm:$0xff]
        %v470 = vld [vmem:[#allocation2 + $0x104] sm:$0xff]
        %v471 = vld [vmem:[#allocation2 + $0x10c] sm:$0xff]
        %v472 = vld [vmem:[#allocation2 + $0x114] sm:$0xf]
        %v473 = vld [vmem:[#allocation2 + $0x118] sm:$0xff]
        %v474 = vld [vmem:[#allocation2 + $0x120] sm:$0xff]
        %v475 = vld [vmem:[#allocation2 + $0x128] sm:$0xff]
        %v476 = vld [vmem:[#allocation2 + $0x130] sm:$0xf]
        %v477 = vld [vmem:[#allocation2 + $0x134] sm:$0xff]
        %v478 = vld [vmem:[#allocation2 + $0x13c] sm:$0xff]
        %v479 = vld [vmem:[#allocation2 + $0x144] sm:$0xff]
        %v480 = vld [vmem:[#allocation2 + $0x14c] sm:$0xf]
        %v481 = vld [vmem:[#allocation2 + $0x150] sm:$0xff]
        %v482 = vld [vmem:[#allocation2 + $0x158] sm:$0xff]
        %v483 = vld [vmem:[#allocation2 + $0x160] sm:$0xff]
        %v484 = vld [vmem:[#allocation2 + $0x168] sm:$0xf]
        %v485 = vld [vmem:[#allocation2 + $0x16c] sm:$0xff]
        %v486 = vld [vmem:[#allocation2 + $0x174] sm:$0xff]
        %v487 = vld [vmem:[#allocation2 + $0x17c] sm:$0xff]
        %v488 = vld [vmem:[#allocation2 + $0x184] sm:$0xf]
        %v489 = vld [vmem:[#allocation2 + $0x188] sm:$0xff]
        %v490 = vld [vmem:[#allocation2 + $0x190] sm:$0xff]
        %v491 = vld [vmem:[#allocation2 + $0x198] sm:$0xff]
        %v492 = vld [vmem:[#allocation2 + $0x1a0] sm:$0xf]
        %v493 = vld [vmem:[#allocation2 + $0x1a4] sm:$0xff]
        %v494 = vld [vmem:[#allocation2 + $0x1ac] sm:$0xff]
        %v495 = vld [vmem:[#allocation2 + $0x1b4] sm:$0xff]
        %v496 = vld [vmem:[#allocation2 + $0x1bc] sm:$0xf]
        %v497 = vld [vmem:[#allocation2 + $0x1c0] sm:$0xff]
        %v498 = vld [vmem:[#allocation2 + $0x1c8] sm:$0xff]
        %v499 = vld [vmem:[#allocation2 + $0x1d0] sm:$0xff]
        %v500 = vld [vmem:[#allocation2 + $0x1d8] sm:$0xf]
        %v501 = vld [vmem:[#allocation2 + $0x1dc] sm:$0xff]
        %v502 = vld [vmem:[#allocation2 + $0x1e4] sm:$0xff]
        %v503 = vld [vmem:[#allocation2 + $0x1ec] sm:$0xff]
        %v504 = vld [vmem:[#allocation2 + $0x1f4] sm:$0xf]
        %v505 = vld [vmem:[#allocation2 + $0x1f8] sm:$0xff]
        %v506 = vld [vmem:[#allocation2 + $0x200] sm:$0xff]
        %v507 = vld [vmem:[#allocation2 + $0x208] sm:$0xff]
        %v508 = vld [vmem:[#allocation2 + $0x210] sm:$0xf]
        %v509 = vld [vmem:[#allocation2 + $0x214] sm:$0xff]
        %v510 = vld [vmem:[#allocation2 + $0x21c] sm:$0xff]
        %v511 = vld [vmem:[#allocation2 + $0x224] sm:$0xff]
        %v512 = vld [vmem:[#allocation2 + $0x22c] sm:$0xf]
        %v513 = vld [vmem:[#allocation2 + $0x230] sm:$0xff]
        %v514 = vld [vmem:[#allocation2 + $0x238] sm:$0xff]
        %v515 = vld [vmem:[#allocation2 + $0x240] sm:$0xff]
        %v516 = vld [vmem:[#allocation2 + $0x248] sm:$0xf]
        %v517 = vld [vmem:[#allocation2 + $0x24c] sm:$0xff]
        %v518 = vld [vmem:[#allocation2 + $0x254] sm:$0xff]
        %v519 = vld [vmem:[#allocation2 + $0x25c] sm:$0xff]
        %v520 = vld [vmem:[#allocation2 + $0x264] sm:$0xf]
        %v521 = vld [vmem:[#allocation2 + $0x268] sm:$0xff]
        %v522 = vld [vmem:[#allocation2 + $0x270] sm:$0xff]
        %v523 = vld [vmem:[#allocation2 + $0x278] sm:$0xff]
        %v524 = vld [vmem:[#allocation2 + $0x280] sm:$0xf]
        %v525 = vld [vmem:[#allocation2 + $0x284] sm:$0xff]
        %v526 = vld [vmem:[#allocation2 + $0x28c] sm:$0xff]
        %v527 = vld [vmem:[#allocation2 + $0x294] sm:$0xff]
        %v528 = vld [vmem:[#allocation2 + $0x29c] sm:$0xf]
        %v529 = vld [vmem:[#allocation2 + $0x2a0] sm:$0xff]
        %v530 = vld [vmem:[#allocation2 + $0x2a8] sm:$0xff]
        %v531 = vld [vmem:[#allocation2 + $0x2b0] sm:$0xff]
        %v532 = vld [vmem:[#allocation2 + $0x2b8] sm:$0xf]
        %v533 = vld [vmem:[#allocation2 + $0x2bc] sm:$0xff]
        %v534 = vld [vmem:[#allocation2 + $0x2c4] sm:$0xff]
        %v535 = vld [vmem:[#allocation2 + $0x2cc] sm:$0xff]
        %v536 = vld [vmem:[#allocation2 + $0x2d4] sm:$0xf]
        %v537 = vld [vmem:[#allocation2 + $0x2d8] sm:$0xff]
        %v538 = vld [vmem:[#allocation2 + $0x2e0] sm:$0xff]
        %v539 = vld [vmem:[#allocation2 + $0x2e8] sm:$0xff]
        %v540 = vld [vmem:[#allocation2 + $0x2f0] sm:$0xf]
        %v541 = vld [vmem:[#allocation2 + $0x2f4] sm:$0xff]
        %v542 = vld [vmem:[#allocation2 + $0x2fc] sm:$0xff]
        %v543 = vld [vmem:[#allocation2 + $0x304] sm:$0xff]
        %v544 = vld [vmem:[#allocation2 + $0x30c] sm:$0xf]
        %v545 = vld [vmem:[#allocation2 + $0x310] sm:$0xff]
        %v546 = vld [vmem:[#allocation2 + $0x318] sm:$0xff]
        %v547 = vld [vmem:[#allocation2 + $0x320] sm:$0xff]
        %v548 = vld [vmem:[#allocation2 + $0x328] sm:$0xf]
        %v549 = vld [vmem:[#allocation2 + $0x32c] sm:$0xff]
        %v550 = vld [vmem:[#allocation2 + $0x334] sm:$0xff]
        %v551 = vld [vmem:[#allocation2 + $0x33c] sm:$0xff]
        %v552 = vld [vmem:[#allocation2 + $0x344] sm:$0xf]
        %v553 = vld [vmem:[#allocation2 + $0x348] sm:$0xff]
        %v554 = vld [vmem:[#allocation2 + $0x350] sm:$0xff]
        %v555 = vld [vmem:[#allocation2 + $0x358] sm:$0xff]
        %v556 = vld [vmem:[#allocation2 + $0x360] sm:$0xf]
        %v557 = vld [vmem:[#allocation2 + $0x364] sm:$0xff]
        %v558 = vld [vmem:[#allocation2 + $0x36c] sm:$0xff]
        %v559 = vld [vmem:[#allocation2 + $0x374] sm:$0xff]
        %v560 = vld [vmem:[#allocation2 + $0x37c] sm:$0xf]
        %v561 = vld [vmem:[#allocation2 + $0x380] sm:$0xff]
        %v562 = vld [vmem:[#allocation2 + $0x388] sm:$0xff]
        %v563 = vld [vmem:[#allocation2 + $0x390] sm:$0xff]
        %v564 = vld [vmem:[#allocation2 + $0x398] sm:$0xf]
        %v565 = vld [vmem:[#allocation2 + $0x39c] sm:$0xff]
        %v566 = vld [vmem:[#allocation2 + $0x3a4] sm:$0xff]
        %v567 = vld [vmem:[#allocation2 + $0x3ac] sm:$0xff]
        %v568 = vld [vmem:[#allocation2 + $0x3b4] sm:$0xf]
        %v569 = vld [vmem:[#allocation2 + $0x3b8] sm:$0xff]
        %v570 = vld [vmem:[#allocation2 + $0x3c0] sm:$0xff]
        %v571 = vld [vmem:[#allocation2 + $0x3c8] sm:$0xff]
        %v572 = vld [vmem:[#allocation2 + $0x3d0] sm:$0xf]
        %v573 = vld [vmem:[#allocation2 + $0x3d4] sm:$0xff]
        %v574 = vld [vmem:[#allocation2 + $0x3dc] sm:$0xff]
        %v575 = vld [vmem:[#allocation2 + $0x3e4] sm:$0xff]
        %v576 = vld [vmem:[#allocation2 + $0x3ec] sm:$0xf]
        %v577 = vld [vmem:[#allocation2 + $0x3f0] sm:$0xff]
        %v578 = vld [vmem:[#allocation2 + $0x3f8] sm:$0xff]
        %v579 = vld [vmem:[#allocation2 + $0x400] sm:$0xff]
        %v580 = vld [vmem:[#allocation2 + $0x408] sm:$0xf]
        %v581 = vld [vmem:[#allocation2 + $0x40c] sm:$0xff]
        %v582 = vld [vmem:[#allocation2 + $0x414] sm:$0xff]
        %v583 = vld [vmem:[#allocation2 + $0x41c] sm:$0xff]
        %v584 = vld [vmem:[#allocation2 + $0x424] sm:$0xf]
        %v585 = vld [vmem:[#allocation2 + $0x428] sm:$0xff]
        %v586 = vld [vmem:[#allocation2 + $0x430] sm:$0xff]
        %v587 = vld [vmem:[#allocation2 + $0x438] sm:$0xff]
        %v588 = vld [vmem:[#allocation2 + $0x440] sm:$0xf]
        %v589 = vld [vmem:[#allocation2 + $0x444] sm:$0xff]
        %v590 = vld [vmem:[#allocation2 + $0x44c] sm:$0xff]
        %v591 = vld [vmem:[#allocation2 + $0x454] sm:$0xff]
        %v592 = vld [vmem:[#allocation2 + $0x45c] sm:$0xf]
        %v593 = vld [vmem:[#allocation2 + $0x460] sm:$0xff]
        %v594 = vld [vmem:[#allocation2 + $0x468] sm:$0xff]
        %v595 = vld [vmem:[#allocation2 + $0x470] sm:$0xff]
        %v596 = vld [vmem:[#allocation2 + $0x478] sm:$0xf]
        %v597 = vld [vmem:[#allocation2 + $0x47c] sm:$0xff]
        %v598 = vld [vmem:[#allocation2 + $0x484] sm:$0xff]
        %v599 = vld [vmem:[#allocation2 + $0x48c] sm:$0xff]
        %v600 = vld [vmem:[#allocation2 + $0x494] sm:$0xf]
        %v601 = vld [vmem:[#allocation2 + $0x498] sm:$0xff]
        %v602 = vld [vmem:[#allocation2 + $0x4a0] sm:$0xff]
        %v603 = vld [vmem:[#allocation2 + $0x4a8] sm:$0xff]
        %v604 = vld [vmem:[#allocation2 + $0x4b0] sm:$0xf]
        %v605 = vld [vmem:[#allocation2 + $0x4b4] sm:$0xff]
        %v606 = vld [vmem:[#allocation2 + $0x4bc] sm:$0xff]
        %v607 = vld [vmem:[#allocation2 + $0x4c4] sm:$0xff]
        %v608 = vld [vmem:[#allocation2 + $0x4cc] sm:$0xf]
        %v609 = vld [vmem:[#allocation2 + $0x4d0] sm:$0xff]
        %v610 = vld [vmem:[#allocation2 + $0x4d8] sm:$0xff]
        %v611 = vld [vmem:[#allocation2 + $0x4e0] sm:$0xff]
        %v612 = vld [vmem:[#allocation2 + $0x4e8] sm:$0xf]
        %v613 = vld [vmem:[#allocation2 + $0x4ec] sm:$0xff]
        %v614 = vld [vmem:[#allocation2 + $0x4f4] sm:$0xff]
        %v615 = vld [vmem:[#allocation2 + $0x4fc] sm:$0xff]
        %v616 = vld [vmem:[#allocation2 + $0x504] sm:$0xf]
        %v617 = vld [vmem:[#allocation2 + $0x508] sm:$0xff]
        %v618 = vld [vmem:[#allocation2 + $0x510] sm:$0xff]
        %v619 = vld [vmem:[#allocation2 + $0x518] sm:$0xff]
        %v620 = vld [vmem:[#allocation2 + $0x520] sm:$0xf]
        %v621 = vld [vmem:[#allocation2 + $0x524] sm:$0xff]
        %v622 = vld [vmem:[#allocation2 + $0x52c] sm:$0xff]
        %v623 = vld [vmem:[#allocation2 + $0x534] sm:$0xff]
        %v624 = vld [vmem:[#allocation2 + $0x53c] sm:$0xf]
        %v625 = vld [vmem:[#allocation2 + $0x540] sm:$0xff]
        %v626 = vld [vmem:[#allocation2 + $0x548] sm:$0xff]
        %v627 = vld [vmem:[#allocation2 + $0x550] sm:$0xff]
        %v628 = vld [vmem:[#allocation2 + $0x558] sm:$0xf]
        %v629 = vld [vmem:[#allocation2 + $0x55c] sm:$0xff]
        %v630 = vld [vmem:[#allocation2 + $0x564] sm:$0xff]
        %v631 = vld [vmem:[#allocation2 + $0x56c] sm:$0xff]
        %v632 = vld [vmem:[#allocation2 + $0x574] sm:$0xf]
        %v633 = vld [vmem:[#allocation2 + $0x578] sm:$0xff]
        %v634 = vld [vmem:[#allocation2 + $0x580] sm:$0xff]
        %v635 = vld [vmem:[#allocation2 + $0x588] sm:$0xff]
        %v636 = vld [vmem:[#allocation2 + $0x590] sm:$0xf]
        %v637 = vld [vmem:[#allocation2 + $0x594] sm:$0xff]
        %v638 = vld [vmem:[#allocation2 + $0x59c] sm:$0xff]
        %v639 = vld [vmem:[#allocation2 + $0x5a4] sm:$0xff]
        %v640 = vld [vmem:[#allocation2 + $0x5ac] sm:$0xf]
        %v641 = vld [vmem:[#allocation2 + $0x5b0] sm:$0xff]
        %v642 = vld [vmem:[#allocation2 + $0x5b8] sm:$0xff]
        %v643 = vld [vmem:[#allocation2 + $0x5c0] sm:$0xff]
        %v644 = vld [vmem:[#allocation2 + $0x5c8] sm:$0xf]
        %v645 = vld [vmem:[#allocation2 + $0x5cc] sm:$0xff]
        %v646 = vld [vmem:[#allocation2 + $0x5d4] sm:$0xff]
        %v647 = vld [vmem:[#allocation2 + $0x5dc] sm:$0xff]
        %v648 = vld [vmem:[#allocation2 + $0x5e4] sm:$0xf]
        %v649 = vld [vmem:[#allocation2 + $0x5e8] sm:$0xff]
        %v650 = vld [vmem:[#allocation2 + $0x5f0] sm:$0xff]
        %v651 = vld [vmem:[#allocation2 + $0x5f8] sm:$0xff]
        %v652 = vld [vmem:[#allocation2 + $0x600] sm:$0xf]
        %v653 = vld [vmem:[#allocation2 + $0x604] sm:$0xff]
        %v654 = vld [vmem:[#allocation2 + $0x60c] sm:$0xff]
        %v655 = vld [vmem:[#allocation2 + $0x614] sm:$0xff]
        %v656 = vld [vmem:[#allocation2 + $0x61c] sm:$0xf]
        %v657 = vld [vmem:[#allocation2 + $0x620] sm:$0xff]
        %v658 = vld [vmem:[#allocation2 + $0x628] sm:$0xff]
        %v659 = vld [vmem:[#allocation2 + $0x630] sm:$0xff]
        %v660 = vld [vmem:[#allocation2 + $0x638] sm:$0xf]
        %v661 = vld [vmem:[#allocation2 + $0x63c] sm:$0xff]
        %v662 = vld [vmem:[#allocation2 + $0x644] sm:$0xff]
        %v663 = vld [vmem:[#allocation2 + $0x64c] sm:$0xff]
        %v664 = vld [vmem:[#allocation2 + $0x654] sm:$0xf]
        %v665 = vld [vmem:[#allocation2 + $0x658] sm:$0xff]
        %v666 = vld [vmem:[#allocation2 + $0x660] sm:$0xff]
        %v667 = vld [vmem:[#allocation2 + $0x668] sm:$0xff]
        %v668 = vld [vmem:[#allocation2 + $0x670] sm:$0xf]
        %v669 = vld [vmem:[#allocation2 + $0x674] sm:$0xff]
        %v670 = vld [vmem:[#allocation2 + $0x67c] sm:$0xff]
        %v671 = vld [vmem:[#allocation2 + $0x684] sm:$0xff]
        %v672 = vld [vmem:[#allocation2 + $0x68c] sm:$0xf]
        %v673 = vld [vmem:[#allocation2 + $0x690] sm:$0xff]
        %v674 = vld [vmem:[#allocation2 + $0x698] sm:$0xff]
        %v675 = vld [vmem:[#allocation2 + $0x6a0] sm:$0xff]
        %v676 = vld [vmem:[#allocation2 + $0x6a8] sm:$0xf]
        %v677 = vld [vmem:[#allocation2 + $0x6ac] sm:$0xff]
        %v678 = vld [vmem:[#allocation2 + $0x6b4] sm:$0xff]
        %v679 = vld [vmem:[#allocation2 + $0x6bc] sm:$0xff]
        %v680 = vld [vmem:[#allocation2 + $0x6c4] sm:$0xf]
        %v681 = vld [vmem:[#allocation2 + $0x6c8] sm:$0xff]
        %v682 = vld [vmem:[#allocation2 + $0x6d0] sm:$0xff]
        %v683 = vld [vmem:[#allocation2 + $0x6d8] sm:$0xff]
        %v684 = vld [vmem:[#allocation2 + $0x6e0] sm:$0xf]
        %v685 = vld [vmem:[#allocation2 + $0x6e4] sm:$0xff]
        %v686 = vld [vmem:[#allocation2 + $0x6ec] sm:$0xff]
        %v687 = vld [vmem:[#allocation2 + $0x6f4] sm:$0xff]
        %v688 = vld [vmem:[#allocation2 + $0x6fc] sm:$0xf]
        %v689 = vld [vmem:[#allocation2 + $0x700] sm:$0xff]
        %v690 = vld [vmem:[#allocation2 + $0x708] sm:$0xff]
        %v691 = vld [vmem:[#allocation2 + $0x710] sm:$0xff]
        %v692 = vld [vmem:[#allocation2 + $0x718] sm:$0xf]
        %v693 = vld [vmem:[#allocation2 + $0x71c] sm:$0xff]
        %v694 = vld [vmem:[#allocation2 + $0x724] sm:$0xff]
        %v695 = vld [vmem:[#allocation2 + $0x72c] sm:$0xff]
        %v696 = vld [vmem:[#allocation2 + $0x734] sm:$0xf]
        %v697 = vld [vmem:[#allocation2 + $0x738] sm:$0xff]
        %v698 = vld [vmem:[#allocation2 + $0x740] sm:$0xff]
        %v699 = vld [vmem:[#allocation2 + $0x748] sm:$0xff]
        %v700 = vld [vmem:[#allocation2 + $0x750] sm:$0xf]
        %v701 = vld [vmem:[#allocation2 + $0x754] sm:$0xff]
        %v702 = vld [vmem:[#allocation2 + $0x75c] sm:$0xff]
        %v703 = vld [vmem:[#allocation2 + $0x764] sm:$0xff]
        %v704 = vld [vmem:[#allocation2 + $0x76c] sm:$0xf]
        %v705 = vld [vmem:[#allocation2 + $0x770] sm:$0xff]
        %v706 = vld [vmem:[#allocation2 + $0x778] sm:$0xff]
        %v707 = vld [vmem:[#allocation2 + $0x780] sm:$0xff]
        %v708 = vld [vmem:[#allocation2 + $0x788] sm:$0xf]
        %v709 = vld [vmem:[#allocation2 + $0x78c] sm:$0xff]
        %v710 = vld [vmem:[#allocation2 + $0x794] sm:$0xff]
        %v711 = vld [vmem:[#allocation2 + $0x79c] sm:$0xff]
        %v712 = vld [vmem:[#allocation2 + $0x7a4] sm:$0xf]
        %v713 = vld [vmem:[#allocation2 + $0x7a8] sm:$0xff]
        %v714 = vld [vmem:[#allocation2 + $0x7b0] sm:$0xff]
        %v715 = vld [vmem:[#allocation2 + $0x7b8] sm:$0xff]
        %v716 = vld [vmem:[#allocation2 + $0x7c0] sm:$0xf]
        %v717 = vld [vmem:[#allocation2 + $0x7c4] sm:$0xff]
        %v718 = vld [vmem:[#allocation2 + $0x7cc] sm:$0xff]
        %v719 = vld [vmem:[#allocation2 + $0x7d4] sm:$0xff]
        %v720 = vld [vmem:[#allocation2 + $0x7dc] sm:$0xf]
        %v721 = vld [vmem:[#allocation2 + $0x7e0] sm:$0xff]
        %v722 = vld [vmem:[#allocation2 + $0x7e8] sm:$0xff]
        %v723 = vld [vmem:[#allocation2 + $0x7f0] sm:$0xff]
        %v724 = vld [vmem:[#allocation2 + $0x7f8] sm:$0xf]
        %v725 = vld [vmem:[#allocation2 + $0x7fc] sm:$0xff]
        %v726 = vld [vmem:[#allocation2 + $0x804] sm:$0xff]
        %v727 = vld [vmem:[#allocation2 + $0x80c] sm:$0xff]
        %v728 = vld [vmem:[#allocation2 + $0x814] sm:$0xf]
        %v729 = vld [vmem:[#allocation2 + $0x818] sm:$0xff]
        %v730 = vld [vmem:[#allocation2 + $0x820] sm:$0xff]
        %v731 = vld [vmem:[#allocation2 + $0x828] sm:$0xff]
        %v732 = vld [vmem:[#allocation2 + $0x830] sm:$0xf]
        %v733 = vld [vmem:[#allocation2 + $0x834] sm:$0xff]
        %v734 = vld [vmem:[#allocation2 + $0x83c] sm:$0xff]
        %v735 = vld [vmem:[#allocation2 + $0x844] sm:$0xff]
        %v736 = vld [vmem:[#allocation2 + $0x84c] sm:$0xf]
        %v737 = vld [vmem:[#allocation2 + $0x850] sm:$0xff]
        %v738 = vld [vmem:[#allocation2 + $0x858] sm:$0xff]
        %v739 = vld [vmem:[#allocation2 + $0x860] sm:$0xff]
        %v740 = vld [vmem:[#allocation2 + $0x868] sm:$0xf]
        %v741 = vld [vmem:[#allocation2 + $0x86c] sm:$0xff]
        %v742 = vld [vmem:[#allocation2 + $0x874] sm:$0xff]
        %v743 = vld [vmem:[#allocation2 + $0x87c] sm:$0xff]
        %v744 = vld [vmem:[#allocation2 + $0x884] sm:$0xf]
        %v745 = vld [vmem:[#allocation2 + $0x888] sm:$0xff]
        %v746 = vld [vmem:[#allocation2 + $0x890] sm:$0xff]
        %v747 = vld [vmem:[#allocation2 + $0x898] sm:$0xff]
        %v748 = vld [vmem:[#allocation2 + $0x8a0] sm:$0xf]
        %v749 = vld [vmem:[#allocation2 + $0x8a4] sm:$0xff]
        %v750 = vld [vmem:[#allocation2 + $0x8ac] sm:$0xff]
        %v751 = vld [vmem:[#allocation2 + $0x8b4] sm:$0xff]
        %v752 = vld [vmem:[#allocation2 + $0x8bc] sm:$0xf]
        %v753 = vld [vmem:[#allocation2 + $0x8c0] sm:$0xff]
        %v754 = vld [vmem:[#allocation2 + $0x8c8] sm:$0xff]
        %v755 = vld [vmem:[#allocation2 + $0x8d0] sm:$0xff]
        %v756 = vld [vmem:[#allocation2 + $0x8d8] sm:$0xf]
        %v757 = vld [vmem:[#allocation2 + $0x8dc] sm:$0xff]
        %v758 = vld [vmem:[#allocation2 + $0x8e4] sm:$0xff]
        %v759 = vld [vmem:[#allocation2 + $0x8ec] sm:$0xff]
        %v760 = vld [vmem:[#allocation2 + $0x8f4] sm:$0xf]
        %v761 = vld [vmem:[#allocation2 + $0x8f8] sm:$0xff]
        %v762 = vld [vmem:[#allocation2 + $0x900] sm:$0xff]
        %v763 = vld [vmem:[#allocation2 + $0x908] sm:$0xff]
        %v764 = vld [vmem:[#allocation2 + $0x910] sm:$0xf]
        %v765 = vld [vmem:[#allocation2 + $0x914] sm:$0xff]
        %v766 = vld [vmem:[#allocation2 + $0x91c] sm:$0xff]
        %v767 = vld [vmem:[#allocation2 + $0x924] sm:$0xff]
        %v768 = vld [vmem:[#allocation2 + $0x92c] sm:$0xf]
        %v769 = vld [vmem:[#allocation2 + $0x930] sm:$0xff]
        %v770 = vld [vmem:[#allocation2 + $0x938] sm:$0xff]
        %v771 = vld [vmem:[#allocation2 + $0x940] sm:$0xff]
        %v772 = vld [vmem:[#allocation2 + $0x948] sm:$0xf]
        %v773 = vld [vmem:[#allocation2 + $0x94c] sm:$0xff]
        %v774 = vld [vmem:[#allocation2 + $0x954] sm:$0xff]
        %v775 = vld [vmem:[#allocation2 + $0x95c] sm:$0xff]
        %v776 = vld [vmem:[#allocation2 + $0x964] sm:$0xf]
        %v777 = vld [vmem:[#allocation2 + $0x968] sm:$0xff]
        %v778 = vld [vmem:[#allocation2 + $0x970] sm:$0xff]
        %v779 = vld [vmem:[#allocation2 + $0x978] sm:$0xff]
        %v780 = vld [vmem:[#allocation2 + $0x980] sm:$0xf]
        %v781 = vld [vmem:[#allocation2 + $0x984] sm:$0xff]
        %v782 = vld [vmem:[#allocation2 + $0x98c] sm:$0xff]
        %v783 = vld [vmem:[#allocation2 + $0x994] sm:$0xff]
        %v784 = vld [vmem:[#allocation2 + $0x99c] sm:$0xf]
        %v785 = vld [vmem:[#allocation2 + $0x9a0] sm:$0xff]
        %v786 = vld [vmem:[#allocation2 + $0x9a8] sm:$0xff]
        %v787 = vld [vmem:[#allocation2 + $0x9b0] sm:$0xff]
        %v788 = vld [vmem:[#allocation2 + $0x9b8] sm:$0xf]
        %v789 = vld [vmem:[#allocation2 + $0x9bc] sm:$0xff]
        %v790 = vld [vmem:[#allocation2 + $0x9c4] sm:$0xff]
        %v791 = vld [vmem:[#allocation2 + $0x9cc] sm:$0xff]
        %v792 = vld [vmem:[#allocation2 + $0x9d4] sm:$0xf]
        %v793 = vld [vmem:[#allocation2 + $0x9d8] sm:$0xff]
        %v794 = vld [vmem:[#allocation2 + $0x9e0] sm:$0xff]
        %v795 = vld [vmem:[#allocation2 + $0x9e8] sm:$0xff]
        %v796 = vld [vmem:[#allocation2 + $0x9f0] sm:$0xf]
        %v797 = vld [vmem:[#allocation2 + $0x9f4] sm:$0xff]
        %v798 = vld [vmem:[#allocation2 + $0x9fc] sm:$0xff]
        %v799 = vld [vmem:[#allocation2 + $0xa04] sm:$0xff]
        %v800 = vld [vmem:[#allocation2 + $0xa0c] sm:$0xf]
        %v801 = vld [vmem:[#allocation2 + $0xa10] sm:$0xff]
        %v802 = vld [vmem:[#allocation2 + $0xa18] sm:$0xff]
        %v803 = vld [vmem:[#allocation2 + $0xa20] sm:$0xff]
        %v804 = vld [vmem:[#allocation2 + $0xa28] sm:$0xf]
        %v805 = vld [vmem:[#allocation2 + $0xa2c] sm:$0xff]
        %v806 = vld [vmem:[#allocation2 + $0xa34] sm:$0xff]
        %v807 = vld [vmem:[#allocation2 + $0xa3c] sm:$0xff]
        %v808 = vld [vmem:[#allocation2 + $0xa44] sm:$0xf]
        %v809 = vld [vmem:[#allocation2 + $0xa48] sm:$0xff]
        %v810 = vld [vmem:[#allocation2 + $0xa50] sm:$0xff]
        %v811 = vld [vmem:[#allocation2 + $0xa58] sm:$0xff]
        %v812 = vld [vmem:[#allocation2 + $0xa60] sm:$0xf]
        %v813 = vld [vmem:[#allocation2 + $0xa64] sm:$0xff]
        %v814 = vld [vmem:[#allocation2 + $0xa6c] sm:$0xff]
        %v815 = vld [vmem:[#allocation2 + $0xa74] sm:$0xff]
        %v816 = vld [vmem:[#allocation2 + $0xa7c] sm:$0xf]
        %v817 = vld [vmem:[#allocation2 + $0xa80] sm:$0xff]
        %v818 = vld [vmem:[#allocation2 + $0xa88] sm:$0xff]
        %v819 = vld [vmem:[#allocation2 + $0xa90] sm:$0xff]
        %v820 = vld [vmem:[#allocation2 + $0xa98] sm:$0xf]
        %v821 = vld [vmem:[#allocation2 + $0xa9c] sm:$0xff]
        %v822 = vld [vmem:[#allocation2 + $0xaa4] sm:$0xff]
        %v823 = vld [vmem:[#allocation2 + $0xaac] sm:$0xff]
        %v824 = vld [vmem:[#allocation2 + $0xab4] sm:$0xf]
        %v825 = vld [vmem:[#allocation4] sm:$0xff]
        %v827 = vlaneseq
        %v828 = vshrl.u32 %v827, 7
        %v829 = vsub.s32 0, %v828
        %v830 = vrot.slane %v825, %v829
        %v831 = vlaneseq
        %v832 = vshrl.u32 %v831, 7
        %v833 = vsub.s32 1, %v832
        %v834 = vrot.slane %v825, %v833
        %v835 = vlaneseq
        %v836 = vshrl.u32 %v835, 7
        %v837 = vsub.s32 2, %v836
        %v838 = vrot.slane %v825, %v837
        %v839 = vlaneseq
        %v840 = vshrl.u32 %v839, 7
        %v841 = vsub.s32 3, %v840
        %v842 = vrot.slane %v825, %v841
        %v843 = vlaneseq
        %v844 = vshrl.u32 %v843, 7
        %v845 = vsub.s32 4, %v844
        %v846 = vrot.slane %v825, %v845
        %v847 = vlaneseq
        %v848 = vshrl.u32 %v847, 7
        %v849 = vsub.s32 5, %v848
        %v850 = vrot.slane %v825, %v849
        %v851 = vlaneseq
        %v852 = vshrl.u32 %v851, 7
        %v853 = vsub.s32 6, %v852
        %v854 = vrot.slane %v825, %v853
        %v1254 = vunpack.c.l.b16 %v433
        %v1255 = vunpack.c.h.b16 %v433
        %v1256 = vunpack.c.l.b16 %v434
        %v1257 = vunpack.c.h.b16 %v434
        %v1258 = vunpack.c.l.b16 %v435
        %v1259 = vunpack.c.h.b16 %v435
        %v1260 = vunpack.c.l.b16 %v436
        %v1261 = vunpack.c.l.b16 %v437
        %v1262 = vunpack.c.h.b16 %v437
        %v1263 = vunpack.c.l.b16 %v438
        %v1264 = vunpack.c.h.b16 %v438
        %v1265 = vunpack.c.l.b16 %v439
        %v1266 = vunpack.c.h.b16 %v439
        %v1267 = vunpack.c.l.b16 %v440
        %v1268 = vunpack.c.l.b16 %v441
        %v1269 = vunpack.c.h.b16 %v441
        %v1270 = vunpack.c.l.b16 %v442
        %v1271 = vunpack.c.h.b16 %v442
        %v1272 = vunpack.c.l.b16 %v443
        %v1273 = vunpack.c.h.b16 %v443
        %v1274 = vunpack.c.l.b16 %v444
        %v1275 = vunpack.c.l.b16 %v445
        %v1276 = vunpack.c.h.b16 %v445
        %v1277 = vunpack.c.l.b16 %v446
        %v1278 = vunpack.c.h.b16 %v446
        %v1279 = vunpack.c.l.b16 %v447
        %v1280 = vunpack.c.h.b16 %v447
        %v1281 = vunpack.c.l.b16 %v448
        %v1282 = vunpack.c.l.b16 %v449
        %v1283 = vunpack.c.h.b16 %v449
        %v1284 = vunpack.c.l.b16 %v450
        %v1285 = vunpack.c.h.b16 %v450
        %v1286 = vunpack.c.l.b16 %v451
        %v1287 = vunpack.c.h.b16 %v451
        %v1288 = vunpack.c.l.b16 %v452
        %v1289 = vunpack.c.l.b16 %v453
        %v1290 = vunpack.c.h.b16 %v453
        %v1291 = vunpack.c.l.b16 %v454
        %v1292 = vunpack.c.h.b16 %v454
        %v1293 = vunpack.c.l.b16 %v455
        %v1294 = vunpack.c.h.b16 %v455
        %v1295 = vunpack.c.l.b16 %v456
        %v1296 = vunpack.c.l.b16 %v457
        %v1297 = vunpack.c.h.b16 %v457
        %v1298 = vunpack.c.l.b16 %v458
        %v1299 = vunpack.c.h.b16 %v458
        %v1300 = vunpack.c.l.b16 %v459
        %v1301 = vunpack.c.h.b16 %v459
        %v1302 = vunpack.c.l.b16 %v460
        %v1303 = vunpack.c.l.b16 %v461
        %v1304 = vunpack.c.h.b16 %v461
        %v1305 = vunpack.c.l.b16 %v462
        %v1306 = vunpack.c.h.b16 %v462
        %v1307 = vunpack.c.l.b16 %v463
        %v1308 = vunpack.c.h.b16 %v463
        %v1309 = vunpack.c.l.b16 %v464
        %v1310 = vunpack.c.l.b16 %v465
        %v1311 = vunpack.c.h.b16 %v465
        %v1312 = vunpack.c.l.b16 %v466
        %v1313 = vunpack.c.h.b16 %v466
        %v1314 = vunpack.c.l.b16 %v467
        %v1315 = vunpack.c.h.b16 %v467
        %v1316 = vunpack.c.l.b16 %v468
        %v1317 = vunpack.c.l.b16 %v469
        %v1318 = vunpack.c.h.b16 %v469
        %v1319 = vunpack.c.l.b16 %v470
        %v1320 = vunpack.c.h.b16 %v470
        %v1321 = vunpack.c.l.b16 %v471
        %v1322 = vunpack.c.h.b16 %v471
        %v1323 = vunpack.c.l.b16 %v472
        %v1324 = vunpack.c.l.b16 %v473
        %v1325 = vunpack.c.h.b16 %v473
        %v1326 = vunpack.c.l.b16 %v474
        %v1327 = vunpack.c.h.b16 %v474
        %v1328 = vunpack.c.l.b16 %v475
        %v1329 = vunpack.c.h.b16 %v475
        %v1330 = vunpack.c.l.b16 %v476
        %v1331 = vunpack.c.l.b16 %v477
        %v1332 = vunpack.c.h.b16 %v477
        %v1333 = vunpack.c.l.b16 %v478
        %v1334 = vunpack.c.h.b16 %v478
        %v1335 = vunpack.c.l.b16 %v479
        %v1336 = vunpack.c.h.b16 %v479
        %v1337 = vunpack.c.l.b16 %v480
        %v1338 = vunpack.c.l.b16 %v481
        %v1339 = vunpack.c.h.b16 %v481
        %v1340 = vunpack.c.l.b16 %v482
        %v1341 = vunpack.c.h.b16 %v482
        %v1342 = vunpack.c.l.b16 %v483
        %v1343 = vunpack.c.h.b16 %v483
        %v1344 = vunpack.c.l.b16 %v484
        %v1345 = vunpack.c.l.b16 %v485
        %v1346 = vunpack.c.h.b16 %v485
        %v1347 = vunpack.c.l.b16 %v486
        %v1348 = vunpack.c.h.b16 %v486
        %v1349 = vunpack.c.l.b16 %v487
        %v1350 = vunpack.c.h.b16 %v487
        %v1351 = vunpack.c.l.b16 %v488
        %v1352 = vunpack.c.l.b16 %v489
        %v1353 = vunpack.c.h.b16 %v489
        %v1354 = vunpack.c.l.b16 %v490
        %v1355 = vunpack.c.h.b16 %v490
        %v1356 = vunpack.c.l.b16 %v491
        %v1357 = vunpack.c.h.b16 %v491
        %v1358 = vunpack.c.l.b16 %v492
        %v1359 = vunpack.c.l.b16 %v493
        %v1360 = vunpack.c.h.b16 %v493
        %v1361 = vunpack.c.l.b16 %v494
        %v1362 = vunpack.c.h.b16 %v494
        %v1363 = vunpack.c.l.b16 %v495
        %v1364 = vunpack.c.h.b16 %v495
        %v1365 = vunpack.c.l.b16 %v496
        %v1366 = vunpack.c.l.b16 %v497
        %v1367 = vunpack.c.h.b16 %v497
        %v1368 = vunpack.c.l.b16 %v498
        %v1369 = vunpack.c.h.b16 %v498
        %v1370 = vunpack.c.l.b16 %v499
        %v1371 = vunpack.c.h.b16 %v499
        %v1372 = vunpack.c.l.b16 %v500
        %v1373 = vunpack.c.l.b16 %v501
        %v1374 = vunpack.c.h.b16 %v501
        %v1375 = vunpack.c.l.b16 %v502
        %v1376 = vunpack.c.h.b16 %v502
        %v1377 = vunpack.c.l.b16 %v503
        %v1378 = vunpack.c.h.b16 %v503
        %v1379 = vunpack.c.l.b16 %v504
        %v1380 = vunpack.c.l.b16 %v505
        %v1381 = vunpack.c.h.b16 %v505
        %v1382 = vunpack.c.l.b16 %v506
        %v1383 = vunpack.c.h.b16 %v506
        %v1384 = vunpack.c.l.b16 %v507
        %v1385 = vunpack.c.h.b16 %v507
        %v1386 = vunpack.c.l.b16 %v508
        %v1387 = vunpack.c.l.b16 %v509
        %v1388 = vunpack.c.h.b16 %v509
        %v1389 = vunpack.c.l.b16 %v510
        %v1390 = vunpack.c.h.b16 %v510
        %v1391 = vunpack.c.l.b16 %v511
        %v1392 = vunpack.c.h.b16 %v511
        %v1393 = vunpack.c.l.b16 %v512
        %v1394 = vunpack.c.l.b16 %v513
        %v1395 = vunpack.c.h.b16 %v513
        %v1396 = vunpack.c.l.b16 %v514
        %v1397 = vunpack.c.h.b16 %v514
        %v1398 = vunpack.c.l.b16 %v515
        %v1399 = vunpack.c.h.b16 %v515
        %v1400 = vunpack.c.l.b16 %v516
        %v1401 = vunpack.c.l.b16 %v517
        %v1402 = vunpack.c.h.b16 %v517
        %v1403 = vunpack.c.l.b16 %v518
        %v1404 = vunpack.c.h.b16 %v518
        %v1405 = vunpack.c.l.b16 %v519
        %v1406 = vunpack.c.h.b16 %v519
        %v1407 = vunpack.c.l.b16 %v520
        %v1408 = vunpack.c.l.b16 %v521
        %v1409 = vunpack.c.h.b16 %v521
        %v1410 = vunpack.c.l.b16 %v522
        %v1411 = vunpack.c.h.b16 %v522
        %v1412 = vunpack.c.l.b16 %v523
        %v1413 = vunpack.c.h.b16 %v523
        %v1414 = vunpack.c.l.b16 %v524
        %v1415 = vunpack.c.l.b16 %v525
        %v1416 = vunpack.c.h.b16 %v525
        %v1417 = vunpack.c.l.b16 %v526
        %v1418 = vunpack.c.h.b16 %v526
        %v1419 = vunpack.c.l.b16 %v527
        %v1420 = vunpack.c.h.b16 %v527
        %v1421 = vunpack.c.l.b16 %v528
        %v1422 = vunpack.c.l.b16 %v529
        %v1423 = vunpack.c.h.b16 %v529
        %v1424 = vunpack.c.l.b16 %v530
        %v1425 = vunpack.c.h.b16 %v530
        %v1426 = vunpack.c.l.b16 %v531
        %v1427 = vunpack.c.h.b16 %v531
        %v1428 = vunpack.c.l.b16 %v532
        %v1429 = vunpack.c.l.b16 %v533
        %v1430 = vunpack.c.h.b16 %v533
        %v1431 = vunpack.c.l.b16 %v534
        %v1432 = vunpack.c.h.b16 %v534
        %v1433 = vunpack.c.l.b16 %v535
        %v1434 = vunpack.c.h.b16 %v535
        %v1435 = vunpack.c.l.b16 %v536
        %v1436 = vunpack.c.l.b16 %v537
        %v1437 = vunpack.c.h.b16 %v537
        %v1438 = vunpack.c.l.b16 %v538
        %v1439 = vunpack.c.h.b16 %v538
        %v1440 = vunpack.c.l.b16 %v539
        %v1441 = vunpack.c.h.b16 %v539
        %v1442 = vunpack.c.l.b16 %v540
        %v1443 = vunpack.c.l.b16 %v541
        %v1444 = vunpack.c.h.b16 %v541
        %v1445 = vunpack.c.l.b16 %v542
        %v1446 = vunpack.c.h.b16 %v542
        %v1447 = vunpack.c.l.b16 %v543
        %v1448 = vunpack.c.h.b16 %v543
        %v1449 = vunpack.c.l.b16 %v544
        %v1450 = vunpack.c.l.b16 %v545
        %v1451 = vunpack.c.h.b16 %v545
        %v1452 = vunpack.c.l.b16 %v546
        %v1453 = vunpack.c.h.b16 %v546
        %v1454 = vunpack.c.l.b16 %v547
        %v1455 = vunpack.c.h.b16 %v547
        %v1456 = vunpack.c.l.b16 %v548
        %v1457 = vunpack.c.l.b16 %v549
        %v1458 = vunpack.c.h.b16 %v549
        %v1459 = vunpack.c.l.b16 %v550
        %v1460 = vunpack.c.h.b16 %v550
        %v1461 = vunpack.c.l.b16 %v551
        %v1462 = vunpack.c.h.b16 %v551
        %v1463 = vunpack.c.l.b16 %v552
        %v1464 = vunpack.c.l.b16 %v553
        %v1465 = vunpack.c.h.b16 %v553
        %v1466 = vunpack.c.l.b16 %v554
        %v1467 = vunpack.c.h.b16 %v554
        %v1468 = vunpack.c.l.b16 %v555
        %v1469 = vunpack.c.h.b16 %v555
        %v1470 = vunpack.c.l.b16 %v556
        %v1471 = vunpack.c.l.b16 %v557
        %v1472 = vunpack.c.h.b16 %v557
        %v1473 = vunpack.c.l.b16 %v558
        %v1474 = vunpack.c.h.b16 %v558
        %v1475 = vunpack.c.l.b16 %v559
        %v1476 = vunpack.c.h.b16 %v559
        %v1477 = vunpack.c.l.b16 %v560
        %v1478 = vunpack.c.l.b16 %v561
        %v1479 = vunpack.c.h.b16 %v561
        %v1480 = vunpack.c.l.b16 %v562
        %v1481 = vunpack.c.h.b16 %v562
        %v1482 = vunpack.c.l.b16 %v563
        %v1483 = vunpack.c.h.b16 %v563
        %v1484 = vunpack.c.l.b16 %v564
        %v1485 = vunpack.c.l.b16 %v565
        %v1486 = vunpack.c.h.b16 %v565
        %v1487 = vunpack.c.l.b16 %v566
        %v1488 = vunpack.c.h.b16 %v566
        %v1489 = vunpack.c.l.b16 %v567
        %v1490 = vunpack.c.h.b16 %v567
        %v1491 = vunpack.c.l.b16 %v568
        %v1492 = vunpack.c.l.b16 %v569
        %v1493 = vunpack.c.h.b16 %v569
        %v1494 = vunpack.c.l.b16 %v570
        %v1495 = vunpack.c.h.b16 %v570
        %v1496 = vunpack.c.l.b16 %v571
        %v1497 = vunpack.c.h.b16 %v571
        %v1498 = vunpack.c.l.b16 %v572
        %v1499 = vunpack.c.l.b16 %v573
        %v1500 = vunpack.c.h.b16 %v573
        %v1501 = vunpack.c.l.b16 %v574
        %v1502 = vunpack.c.h.b16 %v574
        %v1503 = vunpack.c.l.b16 %v575
        %v1504 = vunpack.c.h.b16 %v575
        %v1505 = vunpack.c.l.b16 %v576
        %v1506 = vunpack.c.l.b16 %v577
        %v1507 = vunpack.c.h.b16 %v577
        %v1508 = vunpack.c.l.b16 %v578
        %v1509 = vunpack.c.h.b16 %v578
        %v1510 = vunpack.c.l.b16 %v579
        %v1511 = vunpack.c.h.b16 %v579
        %v1512 = vunpack.c.l.b16 %v580
        %v1513 = vunpack.c.l.b16 %v581
        %v1514 = vunpack.c.h.b16 %v581
        %v1515 = vunpack.c.l.b16 %v582
        %v1516 = vunpack.c.h.b16 %v582
        %v1517 = vunpack.c.l.b16 %v583
        %v1518 = vunpack.c.h.b16 %v583
        %v1519 = vunpack.c.l.b16 %v584
        %v1520 = vunpack.c.l.b16 %v585
        %v1521 = vunpack.c.h.b16 %v585
        %v1522 = vunpack.c.l.b16 %v586
        %v1523 = vunpack.c.h.b16 %v586
        %v1524 = vunpack.c.l.b16 %v587
        %v1525 = vunpack.c.h.b16 %v587
        %v1526 = vunpack.c.l.b16 %v588
        %v1527 = vunpack.c.l.b16 %v589
        %v1528 = vunpack.c.h.b16 %v589
        %v1529 = vunpack.c.l.b16 %v590
        %v1530 = vunpack.c.h.b16 %v590
        %v1531 = vunpack.c.l.b16 %v591
        %v1532 = vunpack.c.h.b16 %v591
        %v1533 = vunpack.c.l.b16 %v592
        %v1534 = vunpack.c.l.b16 %v593
        %v1535 = vunpack.c.h.b16 %v593
        %v1536 = vunpack.c.l.b16 %v594
        %v1537 = vunpack.c.h.b16 %v594
        %v1538 = vunpack.c.l.b16 %v595
        %v1539 = vunpack.c.h.b16 %v595
        %v1540 = vunpack.c.l.b16 %v596
        %v1541 = vunpack.c.l.b16 %v597
        %v1542 = vunpack.c.h.b16 %v597
        %v1543 = vunpack.c.l.b16 %v598
        %v1544 = vunpack.c.h.b16 %v598
        %v1545 = vunpack.c.l.b16 %v599
        %v1546 = vunpack.c.h.b16 %v599
        %v1547 = vunpack.c.l.b16 %v600
        %v1548 = vunpack.c.l.b16 %v601
        %v1549 = vunpack.c.h.b16 %v601
        %v1550 = vunpack.c.l.b16 %v602
        %v1551 = vunpack.c.h.b16 %v602
        %v1552 = vunpack.c.l.b16 %v603
        %v1553 = vunpack.c.h.b16 %v603
        %v1554 = vunpack.c.l.b16 %v604
        %v1555 = vunpack.c.l.b16 %v605
        %v1556 = vunpack.c.h.b16 %v605
        %v1557 = vunpack.c.l.b16 %v606
        %v1558 = vunpack.c.h.b16 %v606
        %v1559 = vunpack.c.l.b16 %v607
        %v1560 = vunpack.c.h.b16 %v607
        %v1561 = vunpack.c.l.b16 %v608
        %v1562 = vunpack.c.l.b16 %v609
        %v1563 = vunpack.c.h.b16 %v609
        %v1564 = vunpack.c.l.b16 %v610
        %v1565 = vunpack.c.h.b16 %v610
        %v1566 = vunpack.c.l.b16 %v611
        %v1567 = vunpack.c.h.b16 %v611
        %v1568 = vunpack.c.l.b16 %v612
        %v1569 = vunpack.c.l.b16 %v613
        %v1570 = vunpack.c.h.b16 %v613
        %v1571 = vunpack.c.l.b16 %v614
        %v1572 = vunpack.c.h.b16 %v614
        %v1573 = vunpack.c.l.b16 %v615
        %v1574 = vunpack.c.h.b16 %v615
        %v1575 = vunpack.c.l.b16 %v616
        %v1576 = vunpack.c.l.b16 %v617
        %v1577 = vunpack.c.h.b16 %v617
        %v1578 = vunpack.c.l.b16 %v618
        %v1579 = vunpack.c.h.b16 %v618
        %v1580 = vunpack.c.l.b16 %v619
        %v1581 = vunpack.c.h.b16 %v619
        %v1582 = vunpack.c.l.b16 %v620
        %v1583 = vunpack.c.l.b16 %v621
        %v1584 = vunpack.c.h.b16 %v621
        %v1585 = vunpack.c.l.b16 %v622
        %v1586 = vunpack.c.h.b16 %v622
        %v1587 = vunpack.c.l.b16 %v623
        %v1588 = vunpack.c.h.b16 %v623
        %v1589 = vunpack.c.l.b16 %v624
        %v1590 = vunpack.c.l.b16 %v625
        %v1591 = vunpack.c.h.b16 %v625
        %v1592 = vunpack.c.l.b16 %v626
        %v1593 = vunpack.c.h.b16 %v626
        %v1594 = vunpack.c.l.b16 %v627
        %v1595 = vunpack.c.h.b16 %v627
        %v1596 = vunpack.c.l.b16 %v628
        %v1597 = vunpack.c.l.b16 %v629
        %v1598 = vunpack.c.h.b16 %v629
        %v1599 = vunpack.c.l.b16 %v630
        %v1600 = vunpack.c.h.b16 %v630
        %v1601 = vunpack.c.l.b16 %v631
        %v1602 = vunpack.c.h.b16 %v631
        %v1603 = vunpack.c.l.b16 %v632
        %v1604 = vunpack.c.l.b16 %v633
        %v1605 = vunpack.c.h.b16 %v633
        %v1606 = vunpack.c.l.b16 %v634
        %v1607 = vunpack.c.h.b16 %v634
        %v1608 = vunpack.c.l.b16 %v635
        %v1609 = vunpack.c.h.b16 %v635
        %v1610 = vunpack.c.l.b16 %v636
        %v1611 = vunpack.c.l.b16 %v637
        %v1612 = vunpack.c.h.b16 %v637
        %v1613 = vunpack.c.l.b16 %v638
        %v1614 = vunpack.c.h.b16 %v638
        %v1615 = vunpack.c.l.b16 %v639
        %v1616 = vunpack.c.h.b16 %v639
        %v1617 = vunpack.c.l.b16 %v640
        %v1618 = vunpack.c.l.b16 %v641
        %v1619 = vunpack.c.h.b16 %v641
        %v1620 = vunpack.c.l.b16 %v642
        %v1621 = vunpack.c.h.b16 %v642
        %v1622 = vunpack.c.l.b16 %v643
        %v1623 = vunpack.c.h.b16 %v643
        %v1624 = vunpack.c.l.b16 %v644
        %v1625 = vunpack.c.l.b16 %v645
        %v1626 = vunpack.c.h.b16 %v645
        %v1627 = vunpack.c.l.b16 %v646
        %v1628 = vunpack.c.h.b16 %v646
        %v1629 = vunpack.c.l.b16 %v647
        %v1630 = vunpack.c.h.b16 %v647
        %v1631 = vunpack.c.l.b16 %v648
        %v1632 = vunpack.c.l.b16 %v649
        %v1633 = vunpack.c.h.b16 %v649
        %v1634 = vunpack.c.l.b16 %v650
        %v1635 = vunpack.c.h.b16 %v650
        %v1636 = vunpack.c.l.b16 %v651
        %v1637 = vunpack.c.h.b16 %v651
        %v1638 = vunpack.c.l.b16 %v652
        %v1639 = vunpack.c.l.b16 %v653
        %v1640 = vunpack.c.h.b16 %v653
        %v1641 = vunpack.c.l.b16 %v654
        %v1642 = vunpack.c.h.b16 %v654
        %v1643 = vunpack.c.l.b16 %v655
        %v1644 = vunpack.c.h.b16 %v655
        %v1645 = vunpack.c.l.b16 %v656
        %v1646 = vunpack.c.l.b16 %v657
        %v1647 = vunpack.c.h.b16 %v657
        %v1648 = vunpack.c.l.b16 %v658
        %v1649 = vunpack.c.h.b16 %v658
        %v1650 = vunpack.c.l.b16 %v659
        %v1651 = vunpack.c.h.b16 %v659
        %v1652 = vunpack.c.l.b16 %v660
        %v1653 = vunpack.c.l.b16 %v661
        %v1654 = vunpack.c.h.b16 %v661
        %v1655 = vunpack.c.l.b16 %v662
        %v1656 = vunpack.c.h.b16 %v662
        %v1657 = vunpack.c.l.b16 %v663
        %v1658 = vunpack.c.h.b16 %v663
        %v1659 = vunpack.c.l.b16 %v664
        %v1660 = vunpack.c.l.b16 %v665
        %v1661 = vunpack.c.h.b16 %v665
        %v1662 = vunpack.c.l.b16 %v666
        %v1663 = vunpack.c.h.b16 %v666
        %v1664 = vunpack.c.l.b16 %v667
        %v1665 = vunpack.c.h.b16 %v667
        %v1666 = vunpack.c.l.b16 %v668
        %v1667 = vunpack.c.l.b16 %v669
        %v1668 = vunpack.c.h.b16 %v669
        %v1669 = vunpack.c.l.b16 %v670
        %v1670 = vunpack.c.h.b16 %v670
        %v1671 = vunpack.c.l.b16 %v671
        %v1672 = vunpack.c.h.b16 %v671
        %v1673 = vunpack.c.l.b16 %v672
        %v1674 = vunpack.c.l.b16 %v673
        %v1675 = vunpack.c.h.b16 %v673
        %v1676 = vunpack.c.l.b16 %v674
        %v1677 = vunpack.c.h.b16 %v674
        %v1678 = vunpack.c.l.b16 %v675
        %v1679 = vunpack.c.h.b16 %v675
        %v1680 = vunpack.c.l.b16 %v676
        %v1681 = vunpack.c.l.b16 %v677
        %v1682 = vunpack.c.h.b16 %v677
        %v1683 = vunpack.c.l.b16 %v678
        %v1684 = vunpack.c.h.b16 %v678
        %v1685 = vunpack.c.l.b16 %v679
        %v1686 = vunpack.c.h.b16 %v679
        %v1687 = vunpack.c.l.b16 %v680
        %v1688 = vunpack.c.l.b16 %v681
        %v1689 = vunpack.c.h.b16 %v681
        %v1690 = vunpack.c.l.b16 %v682
        %v1691 = vunpack.c.h.b16 %v682
        %v1692 = vunpack.c.l.b16 %v683
        %v1693 = vunpack.c.h.b16 %v683
        %v1694 = vunpack.c.l.b16 %v684
        %v1695 = vunpack.c.l.b16 %v685
        %v1696 = vunpack.c.h.b16 %v685
        %v1697 = vunpack.c.l.b16 %v686
        %v1698 = vunpack.c.h.b16 %v686
        %v1699 = vunpack.c.l.b16 %v687
        %v1700 = vunpack.c.h.b16 %v687
        %v1701 = vunpack.c.l.b16 %v688
        %v1702 = vunpack.c.l.b16 %v689
        %v1703 = vunpack.c.h.b16 %v689
        %v1704 = vunpack.c.l.b16 %v690
        %v1705 = vunpack.c.h.b16 %v690
        %v1706 = vunpack.c.l.b16 %v691
        %v1707 = vunpack.c.h.b16 %v691
        %v1708 = vunpack.c.l.b16 %v692
        %v1709 = vunpack.c.l.b16 %v693
        %v1710 = vunpack.c.h.b16 %v693
        %v1711 = vunpack.c.l.b16 %v694
        %v1712 = vunpack.c.h.b16 %v694
        %v1713 = vunpack.c.l.b16 %v695
        %v1714 = vunpack.c.h.b16 %v695
        %v1715 = vunpack.c.l.b16 %v696
        %v1716 = vunpack.c.l.b16 %v697
        %v1717 = vunpack.c.h.b16 %v697
        %v1718 = vunpack.c.l.b16 %v698
        %v1719 = vunpack.c.h.b16 %v698
        %v1720 = vunpack.c.l.b16 %v699
        %v1721 = vunpack.c.h.b16 %v699
        %v1722 = vunpack.c.l.b16 %v700
        %v1723 = vunpack.c.l.b16 %v701
        %v1724 = vunpack.c.h.b16 %v701
        %v1725 = vunpack.c.l.b16 %v702
        %v1726 = vunpack.c.h.b16 %v702
        %v1727 = vunpack.c.l.b16 %v703
        %v1728 = vunpack.c.h.b16 %v703
        %v1729 = vunpack.c.l.b16 %v704
        %v1730 = vunpack.c.l.b16 %v705
        %v1731 = vunpack.c.h.b16 %v705
        %v1732 = vunpack.c.l.b16 %v706
        %v1733 = vunpack.c.h.b16 %v706
        %v1734 = vunpack.c.l.b16 %v707
        %v1735 = vunpack.c.h.b16 %v707
        %v1736 = vunpack.c.l.b16 %v708
        %v1737 = vunpack.c.l.b16 %v709
        %v1738 = vunpack.c.h.b16 %v709
        %v1739 = vunpack.c.l.b16 %v710
        %v1740 = vunpack.c.h.b16 %v710
        %v1741 = vunpack.c.l.b16 %v711
        %v1742 = vunpack.c.h.b16 %v711
        %v1743 = vunpack.c.l.b16 %v712
        %v1744 = vunpack.c.l.b16 %v713
        %v1745 = vunpack.c.h.b16 %v713
        %v1746 = vunpack.c.l.b16 %v714
        %v1747 = vunpack.c.h.b16 %v714
        %v1748 = vunpack.c.l.b16 %v715
        %v1749 = vunpack.c.h.b16 %v715
        %v1750 = vunpack.c.l.b16 %v716
        %v1751 = vunpack.c.l.b16 %v717
        %v1752 = vunpack.c.h.b16 %v717
        %v1753 = vunpack.c.l.b16 %v718
        %v1754 = vunpack.c.h.b16 %v718
        %v1755 = vunpack.c.l.b16 %v719
        %v1756 = vunpack.c.h.b16 %v719
        %v1757 = vunpack.c.l.b16 %v720
        %v1758 = vunpack.c.l.b16 %v721
        %v1759 = vunpack.c.h.b16 %v721
        %v1760 = vunpack.c.l.b16 %v722
        %v1761 = vunpack.c.h.b16 %v722
        %v1762 = vunpack.c.l.b16 %v723
        %v1763 = vunpack.c.h.b16 %v723
        %v1764 = vunpack.c.l.b16 %v724
        %v1765 = vunpack.c.l.b16 %v725
        %v1766 = vunpack.c.h.b16 %v725
        %v1767 = vunpack.c.l.b16 %v726
        %v1768 = vunpack.c.h.b16 %v726
        %v1769 = vunpack.c.l.b16 %v727
        %v1770 = vunpack.c.h.b16 %v727
        %v1771 = vunpack.c.l.b16 %v728
        %v1772 = vunpack.c.l.b16 %v729
        %v1773 = vunpack.c.h.b16 %v729
        %v1774 = vunpack.c.l.b16 %v730
        %v1775 = vunpack.c.h.b16 %v730
        %v1776 = vunpack.c.l.b16 %v731
        %v1777 = vunpack.c.h.b16 %v731
        %v1778 = vunpack.c.l.b16 %v732
        %v1779 = vunpack.c.l.b16 %v733
        %v1780 = vunpack.c.h.b16 %v733
        %v1781 = vunpack.c.l.b16 %v734
        %v1782 = vunpack.c.h.b16 %v734
        %v1783 = vunpack.c.l.b16 %v735
        %v1784 = vunpack.c.h.b16 %v735
        %v1785 = vunpack.c.l.b16 %v736
        %v1786 = vunpack.c.l.b16 %v737
        %v1787 = vunpack.c.h.b16 %v737
        %v1788 = vunpack.c.l.b16 %v738
        %v1789 = vunpack.c.h.b16 %v738
        %v1790 = vunpack.c.l.b16 %v739
        %v1791 = vunpack.c.h.b16 %v739
        %v1792 = vunpack.c.l.b16 %v740
        %v1793 = vunpack.c.l.b16 %v741
        %v1794 = vunpack.c.h.b16 %v741
        %v1795 = vunpack.c.l.b16 %v742
        %v1796 = vunpack.c.h.b16 %v742
        %v1797 = vunpack.c.l.b16 %v743
        %v1798 = vunpack.c.h.b16 %v743
        %v1799 = vunpack.c.l.b16 %v744
        %v1800 = vunpack.c.l.b16 %v745
        %v1801 = vunpack.c.h.b16 %v745
        %v1802 = vunpack.c.l.b16 %v746
        %v1803 = vunpack.c.h.b16 %v746
        %v1804 = vunpack.c.l.b16 %v747
        %v1805 = vunpack.c.h.b16 %v747
        %v1806 = vunpack.c.l.b16 %v748
        %v1807 = vunpack.c.l.b16 %v749
        %v1808 = vunpack.c.h.b16 %v749
        %v1809 = vunpack.c.l.b16 %v750
        %v1810 = vunpack.c.h.b16 %v750
        %v1811 = vunpack.c.l.b16 %v751
        %v1812 = vunpack.c.h.b16 %v751
        %v1813 = vunpack.c.l.b16 %v752
        %v1814 = vunpack.c.l.b16 %v753
        %v1815 = vunpack.c.h.b16 %v753
        %v1816 = vunpack.c.l.b16 %v754
        %v1817 = vunpack.c.h.b16 %v754
        %v1818 = vunpack.c.l.b16 %v755
        %v1819 = vunpack.c.h.b16 %v755
        %v1820 = vunpack.c.l.b16 %v756
        %v1821 = vunpack.c.l.b16 %v757
        %v1822 = vunpack.c.h.b16 %v757
        %v1823 = vunpack.c.l.b16 %v758
        %v1824 = vunpack.c.h.b16 %v758
        %v1825 = vunpack.c.l.b16 %v759
        %v1826 = vunpack.c.h.b16 %v759
        %v1827 = vunpack.c.l.b16 %v760
        %v1828 = vunpack.c.l.b16 %v761
        %v1829 = vunpack.c.h.b16 %v761
        %v1830 = vunpack.c.l.b16 %v762
        %v1831 = vunpack.c.h.b16 %v762
        %v1832 = vunpack.c.l.b16 %v763
        %v1833 = vunpack.c.h.b16 %v763
        %v1834 = vunpack.c.l.b16 %v764
        %v1835 = vunpack.c.l.b16 %v765
        %v1836 = vunpack.c.h.b16 %v765
        %v1837 = vunpack.c.l.b16 %v766
        %v1838 = vunpack.c.h.b16 %v766
        %v1839 = vunpack.c.l.b16 %v767
        %v1840 = vunpack.c.h.b16 %v767
        %v1841 = vunpack.c.l.b16 %v768
        %v1842 = vunpack.c.l.b16 %v769
        %v1843 = vunpack.c.h.b16 %v769
        %v1844 = vunpack.c.l.b16 %v770
        %v1845 = vunpack.c.h.b16 %v770
        %v1846 = vunpack.c.l.b16 %v771
        %v1847 = vunpack.c.h.b16 %v771
        %v1848 = vunpack.c.l.b16 %v772
        %v1849 = vunpack.c.l.b16 %v773
        %v1850 = vunpack.c.h.b16 %v773
        %v1851 = vunpack.c.l.b16 %v774
        %v1852 = vunpack.c.h.b16 %v774
        %v1853 = vunpack.c.l.b16 %v775
        %v1854 = vunpack.c.h.b16 %v775
        %v1855 = vunpack.c.l.b16 %v776
        %v1856 = vunpack.c.l.b16 %v777
        %v1857 = vunpack.c.h.b16 %v777
        %v1858 = vunpack.c.l.b16 %v778
        %v1859 = vunpack.c.h.b16 %v778
        %v1860 = vunpack.c.l.b16 %v779
        %v1861 = vunpack.c.h.b16 %v779
        %v1862 = vunpack.c.l.b16 %v780
        %v1863 = vunpack.c.l.b16 %v781
        %v1864 = vunpack.c.h.b16 %v781
        %v1865 = vunpack.c.l.b16 %v782
        %v1866 = vunpack.c.h.b16 %v782
        %v1867 = vunpack.c.l.b16 %v783
        %v1868 = vunpack.c.h.b16 %v783
        %v1869 = vunpack.c.l.b16 %v784
        %v1870 = vunpack.c.l.b16 %v785
        %v1871 = vunpack.c.h.b16 %v785
        %v1872 = vunpack.c.l.b16 %v786
        %v1873 = vunpack.c.h.b16 %v786
        %v1874 = vunpack.c.l.b16 %v787
        %v1875 = vunpack.c.h.b16 %v787
        %v1876 = vunpack.c.l.b16 %v788
        %v1877 = vunpack.c.l.b16 %v789
        %v1878 = vunpack.c.h.b16 %v789
        %v1879 = vunpack.c.l.b16 %v790
        %v1880 = vunpack.c.h.b16 %v790
        %v1881 = vunpack.c.l.b16 %v791
        %v1882 = vunpack.c.h.b16 %v791
        %v1883 = vunpack.c.l.b16 %v792
        %v1884 = vunpack.c.l.b16 %v793
        %v1885 = vunpack.c.h.b16 %v793
        %v1886 = vunpack.c.l.b16 %v794
        %v1887 = vunpack.c.h.b16 %v794
        %v1888 = vunpack.c.l.b16 %v795
        %v1889 = vunpack.c.h.b16 %v795
        %v1890 = vunpack.c.l.b16 %v796
        %v1891 = vunpack.c.l.b16 %v797
        %v1892 = vunpack.c.h.b16 %v797
        %v1893 = vunpack.c.l.b16 %v798
        %v1894 = vunpack.c.h.b16 %v798
        %v1895 = vunpack.c.l.b16 %v799
        %v1896 = vunpack.c.h.b16 %v799
        %v1897 = vunpack.c.l.b16 %v800
        %v1898 = vunpack.c.l.b16 %v801
        %v1899 = vunpack.c.h.b16 %v801
        %v1900 = vunpack.c.l.b16 %v802
        %v1901 = vunpack.c.h.b16 %v802
        %v1902 = vunpack.c.l.b16 %v803
        %v1903 = vunpack.c.h.b16 %v803
        %v1904 = vunpack.c.l.b16 %v804
        %v1905 = vunpack.c.l.b16 %v805
        %v1906 = vunpack.c.h.b16 %v805
        %v1907 = vunpack.c.l.b16 %v806
        %v1908 = vunpack.c.h.b16 %v806
        %v1909 = vunpack.c.l.b16 %v807
        %v1910 = vunpack.c.h.b16 %v807
        %v1911 = vunpack.c.l.b16 %v808
        %v1912 = vunpack.c.l.b16 %v809
        %v1913 = vunpack.c.h.b16 %v809
        %v1914 = vunpack.c.l.b16 %v810
        %v1915 = vunpack.c.h.b16 %v810
        %v1916 = vunpack.c.l.b16 %v811
        %v1917 = vunpack.c.h.b16 %v811
        %v1918 = vunpack.c.l.b16 %v812
        %v1919 = vunpack.c.l.b16 %v813
        %v1920 = vunpack.c.h.b16 %v813
        %v1921 = vunpack.c.l.b16 %v814
        %v1922 = vunpack.c.h.b16 %v814
        %v1923 = vunpack.c.l.b16 %v815
        %v1924 = vunpack.c.h.b16 %v815
        %v1925 = vunpack.c.l.b16 %v816
        %v1926 = vunpack.c.l.b16 %v817
        %v1927 = vunpack.c.h.b16 %v817
        %v1928 = vunpack.c.l.b16 %v818
        %v1929 = vunpack.c.h.b16 %v818
        %v1930 = vunpack.c.l.b16 %v819
        %v1931 = vunpack.c.h.b16 %v819
        %v1932 = vunpack.c.l.b16 %v820
        %v1933 = vunpack.c.l.b16 %v821
        %v1934 = vunpack.c.h.b16 %v821
        %v1935 = vunpack.c.l.b16 %v822
        %v1936 = vunpack.c.h.b16 %v822
        %v1937 = vunpack.c.l.b16 %v823
        %v1938 = vunpack.c.h.b16 %v823
        %v1939 = vunpack.c.l.b16 %v824
        %v1940 = vpack.c.b16 %v1261, %v1254
        %v1941 = vpack.c.b16 %v1262, %v1255
        %v1942 = vpack.c.b16 %v1263, %v1256
        %v1943 = vpack.c.b16 %v1264, %v1257
        %v1944 = vpack.c.b16 %v1265, %v1258
        %v1945 = vpack.c.b16 %v1266, %v1259
        %v1946 = vpack.c.b16 %v1267, %v1260
        %v1947 = vpack.c.b16 %v1275, %v1268
        %v1948 = vpack.c.b16 %v1276, %v1269
        %v1949 = vpack.c.b16 %v1277, %v1270
        %v1950 = vpack.c.b16 %v1278, %v1271
        %v1951 = vpack.c.b16 %v1279, %v1272
        %v1952 = vpack.c.b16 %v1280, %v1273
        %v1953 = vpack.c.b16 %v1281, %v1274
        %v1954 = vpack.c.b16 %v1289, %v1282
        %v1955 = vpack.c.b16 %v1290, %v1283
        %v1956 = vpack.c.b16 %v1291, %v1284
        %v1957 = vpack.c.b16 %v1292, %v1285
        %v1958 = vpack.c.b16 %v1293, %v1286
        %v1959 = vpack.c.b16 %v1294, %v1287
        %v1960 = vpack.c.b16 %v1295, %v1288
        %v1961 = vpack.c.b16 %v1303, %v1296
        %v1962 = vpack.c.b16 %v1304, %v1297
        %v1963 = vpack.c.b16 %v1305, %v1298
        %v1964 = vpack.c.b16 %v1306, %v1299
        %v1965 = vpack.c.b16 %v1307, %v1300
        %v1966 = vpack.c.b16 %v1308, %v1301
        %v1967 = vpack.c.b16 %v1309, %v1302
        %v1968 = vpack.c.b16 %v1317, %v1310
        %v1969 = vpack.c.b16 %v1318, %v1311
        %v1970 = vpack.c.b16 %v1319, %v1312
        %v1971 = vpack.c.b16 %v1320, %v1313
        %v1972 = vpack.c.b16 %v1321, %v1314
        %v1973 = vpack.c.b16 %v1322, %v1315
        %v1974 = vpack.c.b16 %v1323, %v1316
        %v1975 = vpack.c.b16 %v1331, %v1324
        %v1976 = vpack.c.b16 %v1332, %v1325
        %v1977 = vpack.c.b16 %v1333, %v1326
        %v1978 = vpack.c.b16 %v1334, %v1327
        %v1979 = vpack.c.b16 %v1335, %v1328
        %v1980 = vpack.c.b16 %v1336, %v1329
        %v1981 = vpack.c.b16 %v1337, %v1330
        %v1982 = vpack.c.b16 %v1345, %v1338
        %v1983 = vpack.c.b16 %v1346, %v1339
        %v1984 = vpack.c.b16 %v1347, %v1340
        %v1985 = vpack.c.b16 %v1348, %v1341
        %v1986 = vpack.c.b16 %v1349, %v1342
        %v1987 = vpack.c.b16 %v1350, %v1343
        %v1988 = vpack.c.b16 %v1351, %v1344
        %v1989 = vpack.c.b16 %v1359, %v1352
        %v1990 = vpack.c.b16 %v1360, %v1353
        %v1991 = vpack.c.b16 %v1361, %v1354
        %v1992 = vpack.c.b16 %v1362, %v1355
        %v1993 = vpack.c.b16 %v1363, %v1356
        %v1994 = vpack.c.b16 %v1364, %v1357
        %v1995 = vpack.c.b16 %v1365, %v1358
        %v1996 = vpack.c.b16 %v1373, %v1366
        %v1997 = vpack.c.b16 %v1374, %v1367
        %v1998 = vpack.c.b16 %v1375, %v1368
        %v1999 = vpack.c.b16 %v1376, %v1369
        %v2000 = vpack.c.b16 %v1377, %v1370
        %v2001 = vpack.c.b16 %v1378, %v1371
        %v2002 = vpack.c.b16 %v1379, %v1372
        %v2003 = vpack.c.b16 %v1387, %v1380
        %v2004 = vpack.c.b16 %v1388, %v1381
        %v2005 = vpack.c.b16 %v1389, %v1382
        %v2006 = vpack.c.b16 %v1390, %v1383
        %v2007 = vpack.c.b16 %v1391, %v1384
        %v2008 = vpack.c.b16 %v1392, %v1385
        %v2009 = vpack.c.b16 %v1393, %v1386
        %v2010 = vpack.c.b16 %v1401, %v1394
        %v2011 = vpack.c.b16 %v1402, %v1395
        %v2012 = vpack.c.b16 %v1403, %v1396
        %v2013 = vpack.c.b16 %v1404, %v1397
        %v2014 = vpack.c.b16 %v1405, %v1398
        %v2015 = vpack.c.b16 %v1406, %v1399
        %v2016 = vpack.c.b16 %v1407, %v1400
        %v2017 = vpack.c.b16 %v1415, %v1408
        %v2018 = vpack.c.b16 %v1416, %v1409
        %v2019 = vpack.c.b16 %v1417, %v1410
        %v2020 = vpack.c.b16 %v1418, %v1411
        %v2021 = vpack.c.b16 %v1419, %v1412
        %v2022 = vpack.c.b16 %v1420, %v1413
        %v2023 = vpack.c.b16 %v1421, %v1414
        %v2024 = vpack.c.b16 %v1429, %v1422
        %v2025 = vpack.c.b16 %v1430, %v1423
        %v2026 = vpack.c.b16 %v1431, %v1424
        %v2027 = vpack.c.b16 %v1432, %v1425
        %v2028 = vpack.c.b16 %v1433, %v1426
        %v2029 = vpack.c.b16 %v1434, %v1427
        %v2030 = vpack.c.b16 %v1435, %v1428
        %v2031 = vpack.c.b16 %v1443, %v1436
        %v2032 = vpack.c.b16 %v1444, %v1437
        %v2033 = vpack.c.b16 %v1445, %v1438
        %v2034 = vpack.c.b16 %v1446, %v1439
        %v2035 = vpack.c.b16 %v1447, %v1440
        %v2036 = vpack.c.b16 %v1448, %v1441
        %v2037 = vpack.c.b16 %v1449, %v1442
        %v2038 = vpack.c.b16 %v1457, %v1450
        %v2039 = vpack.c.b16 %v1458, %v1451
        %v2040 = vpack.c.b16 %v1459, %v1452
        %v2041 = vpack.c.b16 %v1460, %v1453
        %v2042 = vpack.c.b16 %v1461, %v1454
        %v2043 = vpack.c.b16 %v1462, %v1455
        %v2044 = vpack.c.b16 %v1463, %v1456
        %v2045 = vpack.c.b16 %v1471, %v1464
        %v2046 = vpack.c.b16 %v1472, %v1465
        %v2047 = vpack.c.b16 %v1473, %v1466
        %v2048 = vpack.c.b16 %v1474, %v1467
        %v2049 = vpack.c.b16 %v1475, %v1468
        %v2050 = vpack.c.b16 %v1476, %v1469
        %v2051 = vpack.c.b16 %v1477, %v1470
        %v2052 = vpack.c.b16 %v1485, %v1478
        %v2053 = vpack.c.b16 %v1486, %v1479
        %v2054 = vpack.c.b16 %v1487, %v1480
        %v2055 = vpack.c.b16 %v1488, %v1481
        %v2056 = vpack.c.b16 %v1489, %v1482
        %v2057 = vpack.c.b16 %v1490, %v1483
        %v2058 = vpack.c.b16 %v1491, %v1484
        %v2059 = vpack.c.b16 %v1499, %v1492
        %v2060 = vpack.c.b16 %v1500, %v1493
        %v2061 = vpack.c.b16 %v1501, %v1494
        %v2062 = vpack.c.b16 %v1502, %v1495
        %v2063 = vpack.c.b16 %v1503, %v1496
        %v2064 = vpack.c.b16 %v1504, %v1497
        %v2065 = vpack.c.b16 %v1505, %v1498
        %v2066 = vpack.c.b16 %v1513, %v1506
        %v2067 = vpack.c.b16 %v1514, %v1507
        %v2068 = vpack.c.b16 %v1515, %v1508
        %v2069 = vpack.c.b16 %v1516, %v1509
        %v2070 = vpack.c.b16 %v1517, %v1510
        %v2071 = vpack.c.b16 %v1518, %v1511
        %v2072 = vpack.c.b16 %v1519, %v1512
        %v2073 = vpack.c.b16 %v1527, %v1520
        %v2074 = vpack.c.b16 %v1528, %v1521
        %v2075 = vpack.c.b16 %v1529, %v1522
        %v2076 = vpack.c.b16 %v1530, %v1523
        %v2077 = vpack.c.b16 %v1531, %v1524
        %v2078 = vpack.c.b16 %v1532, %v1525
        %v2079 = vpack.c.b16 %v1533, %v1526
        %v2080 = vpack.c.b16 %v1541, %v1534
        %v2081 = vpack.c.b16 %v1542, %v1535
        %v2082 = vpack.c.b16 %v1543, %v1536
        %v2083 = vpack.c.b16 %v1544, %v1537
        %v2084 = vpack.c.b16 %v1545, %v1538
        %v2085 = vpack.c.b16 %v1546, %v1539
        %v2086 = vpack.c.b16 %v1547, %v1540
        %v2087 = vpack.c.b16 %v1555, %v1548
        %v2088 = vpack.c.b16 %v1556, %v1549
        %v2089 = vpack.c.b16 %v1557, %v1550
        %v2090 = vpack.c.b16 %v1558, %v1551
        %v2091 = vpack.c.b16 %v1559, %v1552
        %v2092 = vpack.c.b16 %v1560, %v1553
        %v2093 = vpack.c.b16 %v1561, %v1554
        %v2094 = vpack.c.b16 %v1569, %v1562
        %v2095 = vpack.c.b16 %v1570, %v1563
        %v2096 = vpack.c.b16 %v1571, %v1564
        %v2097 = vpack.c.b16 %v1572, %v1565
        %v2098 = vpack.c.b16 %v1573, %v1566
        %v2099 = vpack.c.b16 %v1574, %v1567
        %v2100 = vpack.c.b16 %v1575, %v1568
        %v2101 = vpack.c.b16 %v1583, %v1576
        %v2102 = vpack.c.b16 %v1584, %v1577
        %v2103 = vpack.c.b16 %v1585, %v1578
        %v2104 = vpack.c.b16 %v1586, %v1579
        %v2105 = vpack.c.b16 %v1587, %v1580
        %v2106 = vpack.c.b16 %v1588, %v1581
        %v2107 = vpack.c.b16 %v1589, %v1582
        %v2108 = vpack.c.b16 %v1597, %v1590
        %v2109 = vpack.c.b16 %v1598, %v1591
        %v2110 = vpack.c.b16 %v1599, %v1592
        %v2111 = vpack.c.b16 %v1600, %v1593
        %v2112 = vpack.c.b16 %v1601, %v1594
        %v2113 = vpack.c.b16 %v1602, %v1595
        %v2114 = vpack.c.b16 %v1603, %v1596
        %v2115 = vpack.c.b16 %v1611, %v1604
        %v2116 = vpack.c.b16 %v1612, %v1605
        %v2117 = vpack.c.b16 %v1613, %v1606
        %v2118 = vpack.c.b16 %v1614, %v1607
        %v2119 = vpack.c.b16 %v1615, %v1608
        %v2120 = vpack.c.b16 %v1616, %v1609
        %v2121 = vpack.c.b16 %v1617, %v1610
        %v2122 = vpack.c.b16 %v1625, %v1618
        %v2123 = vpack.c.b16 %v1626, %v1619
        %v2124 = vpack.c.b16 %v1627, %v1620
        %v2125 = vpack.c.b16 %v1628, %v1621
        %v2126 = vpack.c.b16 %v1629, %v1622
        %v2127 = vpack.c.b16 %v1630, %v1623
        %v2128 = vpack.c.b16 %v1631, %v1624
        %v2129 = vpack.c.b16 %v1639, %v1632
        %v2130 = vpack.c.b16 %v1640, %v1633
        %v2131 = vpack.c.b16 %v1641, %v1634
        %v2132 = vpack.c.b16 %v1642, %v1635
        %v2133 = vpack.c.b16 %v1643, %v1636
        %v2134 = vpack.c.b16 %v1644, %v1637
        %v2135 = vpack.c.b16 %v1645, %v1638
        %v2136 = vpack.c.b16 %v1653, %v1646
        %v2137 = vpack.c.b16 %v1654, %v1647
        %v2138 = vpack.c.b16 %v1655, %v1648
        %v2139 = vpack.c.b16 %v1656, %v1649
        %v2140 = vpack.c.b16 %v1657, %v1650
        %v2141 = vpack.c.b16 %v1658, %v1651
        %v2142 = vpack.c.b16 %v1659, %v1652
        %v2143 = vpack.c.b16 %v1667, %v1660
        %v2144 = vpack.c.b16 %v1668, %v1661
        %v2145 = vpack.c.b16 %v1669, %v1662
        %v2146 = vpack.c.b16 %v1670, %v1663
        %v2147 = vpack.c.b16 %v1671, %v1664
        %v2148 = vpack.c.b16 %v1672, %v1665
        %v2149 = vpack.c.b16 %v1673, %v1666
        %v2150 = vpack.c.b16 %v1681, %v1674
        %v2151 = vpack.c.b16 %v1682, %v1675
        %v2152 = vpack.c.b16 %v1683, %v1676
        %v2153 = vpack.c.b16 %v1684, %v1677
        %v2154 = vpack.c.b16 %v1685, %v1678
        %v2155 = vpack.c.b16 %v1686, %v1679
        %v2156 = vpack.c.b16 %v1687, %v1680
        %v2157 = vpack.c.b16 %v1695, %v1688
        %v2158 = vpack.c.b16 %v1696, %v1689
        %v2159 = vpack.c.b16 %v1697, %v1690
        %v2160 = vpack.c.b16 %v1698, %v1691
        %v2161 = vpack.c.b16 %v1699, %v1692
        %v2162 = vpack.c.b16 %v1700, %v1693
        %v2163 = vpack.c.b16 %v1701, %v1694
        %v2164 = vpack.c.b16 %v1709, %v1702
        %v2165 = vpack.c.b16 %v1710, %v1703
        %v2166 = vpack.c.b16 %v1711, %v1704
        %v2167 = vpack.c.b16 %v1712, %v1705
        %v2168 = vpack.c.b16 %v1713, %v1706
        %v2169 = vpack.c.b16 %v1714, %v1707
        %v2170 = vpack.c.b16 %v1715, %v1708
        %v2171 = vpack.c.b16 %v1723, %v1716
        %v2172 = vpack.c.b16 %v1724, %v1717
        %v2173 = vpack.c.b16 %v1725, %v1718
        %v2174 = vpack.c.b16 %v1726, %v1719
        %v2175 = vpack.c.b16 %v1727, %v1720
        %v2176 = vpack.c.b16 %v1728, %v1721
        %v2177 = vpack.c.b16 %v1729, %v1722
        %v2178 = vpack.c.b16 %v1737, %v1730
        %v2179 = vpack.c.b16 %v1738, %v1731
        %v2180 = vpack.c.b16 %v1739, %v1732
        %v2181 = vpack.c.b16 %v1740, %v1733
        %v2182 = vpack.c.b16 %v1741, %v1734
        %v2183 = vpack.c.b16 %v1742, %v1735
        %v2184 = vpack.c.b16 %v1743, %v1736
        %v2185 = vpack.c.b16 %v1751, %v1744
        %v2186 = vpack.c.b16 %v1752, %v1745
        %v2187 = vpack.c.b16 %v1753, %v1746
        %v2188 = vpack.c.b16 %v1754, %v1747
        %v2189 = vpack.c.b16 %v1755, %v1748
        %v2190 = vpack.c.b16 %v1756, %v1749
        %v2191 = vpack.c.b16 %v1757, %v1750
        %v2192 = vpack.c.b16 %v1765, %v1758
        %v2193 = vpack.c.b16 %v1766, %v1759
        %v2194 = vpack.c.b16 %v1767, %v1760
        %v2195 = vpack.c.b16 %v1768, %v1761
        %v2196 = vpack.c.b16 %v1769, %v1762
        %v2197 = vpack.c.b16 %v1770, %v1763
        %v2198 = vpack.c.b16 %v1771, %v1764
        %v2199 = vpack.c.b16 %v1779, %v1772
        %v2200 = vpack.c.b16 %v1780, %v1773
        %v2201 = vpack.c.b16 %v1781, %v1774
        %v2202 = vpack.c.b16 %v1782, %v1775
        %v2203 = vpack.c.b16 %v1783, %v1776
        %v2204 = vpack.c.b16 %v1784, %v1777
        %v2205 = vpack.c.b16 %v1785, %v1778
        %v2206 = vpack.c.b16 %v1793, %v1786
        %v2207 = vpack.c.b16 %v1794, %v1787
        %v2208 = vpack.c.b16 %v1795, %v1788
        %v2209 = vpack.c.b16 %v1796, %v1789
        %v2210 = vpack.c.b16 %v1797, %v1790
        %v2211 = vpack.c.b16 %v1798, %v1791
        %v2212 = vpack.c.b16 %v1799, %v1792
        %v2213 = vpack.c.b16 %v1807, %v1800
        %v2214 = vpack.c.b16 %v1808, %v1801
        %v2215 = vpack.c.b16 %v1809, %v1802
        %v2216 = vpack.c.b16 %v1810, %v1803
        %v2217 = vpack.c.b16 %v1811, %v1804
        %v2218 = vpack.c.b16 %v1812, %v1805
        %v2219 = vpack.c.b16 %v1813, %v1806
        %v2220 = vpack.c.b16 %v1821, %v1814
        %v2221 = vpack.c.b16 %v1822, %v1815
        %v2222 = vpack.c.b16 %v1823, %v1816
        %v2223 = vpack.c.b16 %v1824, %v1817
        %v2224 = vpack.c.b16 %v1825, %v1818
        %v2225 = vpack.c.b16 %v1826, %v1819
        %v2226 = vpack.c.b16 %v1827, %v1820
        %v2227 = vpack.c.b16 %v1835, %v1828
        %v2228 = vpack.c.b16 %v1836, %v1829
        %v2229 = vpack.c.b16 %v1837, %v1830
        %v2230 = vpack.c.b16 %v1838, %v1831
        %v2231 = vpack.c.b16 %v1839, %v1832
        %v2232 = vpack.c.b16 %v1840, %v1833
        %v2233 = vpack.c.b16 %v1841, %v1834
        %v2234 = vpack.c.b16 %v1849, %v1842
        %v2235 = vpack.c.b16 %v1850, %v1843
        %v2236 = vpack.c.b16 %v1851, %v1844
        %v2237 = vpack.c.b16 %v1852, %v1845
        %v2238 = vpack.c.b16 %v1853, %v1846
        %v2239 = vpack.c.b16 %v1854, %v1847
        %v2240 = vpack.c.b16 %v1855, %v1848
        %v2241 = vpack.c.b16 %v1863, %v1856
        %v2242 = vpack.c.b16 %v1864, %v1857
        %v2243 = vpack.c.b16 %v1865, %v1858
        %v2244 = vpack.c.b16 %v1866, %v1859
        %v2245 = vpack.c.b16 %v1867, %v1860
        %v2246 = vpack.c.b16 %v1868, %v1861
        %v2247 = vpack.c.b16 %v1869, %v1862
        %v2248 = vpack.c.b16 %v1877, %v1870
        %v2249 = vpack.c.b16 %v1878, %v1871
        %v2250 = vpack.c.b16 %v1879, %v1872
        %v2251 = vpack.c.b16 %v1880, %v1873
        %v2252 = vpack.c.b16 %v1881, %v1874
        %v2253 = vpack.c.b16 %v1882, %v1875
        %v2254 = vpack.c.b16 %v1883, %v1876
        %v2255 = vpack.c.b16 %v1891, %v1884
        %v2256 = vpack.c.b16 %v1892, %v1885
        %v2257 = vpack.c.b16 %v1893, %v1886
        %v2258 = vpack.c.b16 %v1894, %v1887
        %v2259 = vpack.c.b16 %v1895, %v1888
        %v2260 = vpack.c.b16 %v1896, %v1889
        %v2261 = vpack.c.b16 %v1897, %v1890
        %v2262 = vpack.c.b16 %v1905, %v1898
        %v2263 = vpack.c.b16 %v1906, %v1899
        %v2264 = vpack.c.b16 %v1907, %v1900
        %v2265 = vpack.c.b16 %v1908, %v1901
        %v2266 = vpack.c.b16 %v1909, %v1902
        %v2267 = vpack.c.b16 %v1910, %v1903
        %v2268 = vpack.c.b16 %v1911, %v1904
        %v2269 = vpack.c.b16 %v1919, %v1912
        %v2270 = vpack.c.b16 %v1920, %v1913
        %v2271 = vpack.c.b16 %v1921, %v1914
        %v2272 = vpack.c.b16 %v1922, %v1915
        %v2273 = vpack.c.b16 %v1923, %v1916
        %v2274 = vpack.c.b16 %v1924, %v1917
        %v2275 = vpack.c.b16 %v1925, %v1918
        %v2276 = vpack.c.b16 %v1933, %v1926
        %v2277 = vpack.c.b16 %v1934, %v1927
        %v2278 = vpack.c.b16 %v1935, %v1928
        %v2279 = vpack.c.b16 %v1936, %v1929
        %v2280 = vpack.c.b16 %v1937, %v1930
        %v2281 = vpack.c.b16 %v1938, %v1931
        %v2282 = vpack.c.b16 %v1939, %v1932
        %vm2626 = vcmask 130048
        %v2628 = vsel %vm2626, %v425, 0
        %v2631 = vsel %vm2626, %v432, 0
        %2633 = vmatprep.subr.bf16.mxu0 %v1941
        %2634 = vmatpush1.bf16.msra.mxu0 %v1940
        %2635 = vmatprep.subr.bf16.mxu0 %v1948
        %2636 = vmatpush1.bf16.msra.mxu0 %v1947
        %2637 = vmatprep.subr.bf16.mxu0 %v1955
        %2638 = vmatpush1.bf16.msra.mxu0 %v1954
        %2639 = vmatprep.subr.bf16.mxu0 %v1962
        %2640 = vmatpush1.bf16.msra.mxu0 %v1961
        %2641 = vmatprep.subr.bf16.mxu0 %v1969
        %2642 = vmatpush1.bf16.msra.mxu0 %v1968
        %2643 = vmatprep.subr.bf16.mxu0 %v1976
        %2644 = vmatpush1.bf16.msra.mxu0 %v1975
        %2645 = vmatprep.subr.bf16.mxu0 %v1983
        %2646 = vmatpush1.bf16.msra.mxu0 %v1982
        %2647 = vmatprep.subr.bf16.mxu0 %v1990
        %2648 = vmatpush1.bf16.msra.mxu0 %v1989
        %2649 = vmatprep.subr.bf16.mxu0 %v1997
        %2650 = vmatpush1.bf16.msra.mxu0 %v1996
        %2651 = vmatprep.subr.bf16.mxu0 %v2004
        %2652 = vmatpush1.bf16.msra.mxu0 %v2003
        %2653 = vmatprep.subr.bf16.mxu0 %v2011
        %2654 = vmatpush1.bf16.msra.mxu0 %v2010
        %2655 = vmatprep.subr.bf16.mxu0 %v2018
        %2656 = vmatpush1.bf16.msra.mxu0 %v2017
        %2657 = vmatprep.subr.bf16.mxu0 %v2025
        %2658 = vmatpush1.bf16.msra.mxu0 %v2024
        %2659 = vmatprep.subr.bf16.mxu0 %v2032
        %2660 = vmatpush1.bf16.msra.mxu0 %v2031
        %2661 = vmatprep.subr.bf16.mxu0 %v2039
        %2662 = vmatpush1.bf16.msra.mxu0 %v2038
        %2663 = vmatprep.subr.bf16.mxu0 %v2046
        %2664 = vmatpush1.bf16.msra.mxu0 %v2045
        %2665 = vmatprep.mubr.bf16.mxu0 %v420
        %2666 = vmatmul.mubr.bf16.gmra.mrb[0].mxu0 %v419
        %v2667 = vpop.f32.mrb[0].mxu0
        %v2668 = vadd.f32 %v830, %v2667
        %v2669 = vpop.f32.mrb[0].mxu0
        %v2670 = vadd.f32 %v834, %v2669
        %v2671 = vpop.f32.mrb[0].mxu0
        %v2672 = vadd.f32 %v830, %v2671
        %v2673 = vpop.f32.mrb[0].mxu0
        %v2674 = vadd.f32 %v834, %v2673
        %2675 = vmatprep.mubr.bf16.mxu0 %v427
        %2676 = vmatmul.mubr.bf16.gmra.mrb[0].mxu0 %v426
        %v2677 = vpop.f32.mrb[0].mxu0
        %v2678 = vadd.f32 %v830, %v2677
        %v2679 = vpop.f32.mrb[0].mxu0
        %v2680 = vadd.f32 %v834, %v2679
        %v2681 = vpop.f32.mrb[0].mxu0
        %v2682 = vadd.f32 %v830, %v2681
        %v2683 = vpop.f32.mrb[0].mxu0
        %v2684 = vadd.f32 %v834, %v2683
        %2685 = vdwg.mxu0
        %2686 = vmatprep.subr.bf16.mxu0 %v2053
        %2687 = vmatpush1.bf16.msra.mxu0 %v2052
        %2688 = vmatprep.subr.bf16.mxu0 %v2060
        %2689 = vmatpush1.bf16.msra.mxu0 %v2059
        %2690 = vmatprep.subr.bf16.mxu0 %v2067
        %2691 = vmatpush1.bf16.msra.mxu0 %v2066
        %2692 = vmatprep.subr.bf16.mxu0 %v2074
        %2693 = vmatpush1.bf16.msra.mxu0 %v2073
        %2694 = vmatprep.subr.bf16.mxu0 %v2081
        %2695 = vmatpush1.bf16.msra.mxu0 %v2080
        %2696 = vmatprep.subr.bf16.mxu0 %v2088
        %2697 = vmatpush1.bf16.msra.mxu0 %v2087
        %2698 = vmatprep.subr.bf16.mxu0 %v2095
        %2699 = vmatpush1.bf16.msra.mxu0 %v2094
        %2700 = vmatprep.subr.bf16.mxu0 %v2102
        %2701 = vmatpush1.bf16.msra.mxu0 %v2101
        %2702 = vmatprep.subr.bf16.mxu0 %v2109
        %2703 = vmatpush1.bf16.msra.mxu0 %v2108
        %2704 = vmatprep.subr.bf16.mxu0 %v2116
        %2705 = vmatpush1.bf16.msra.mxu0 %v2115
        %2706 = vmatprep.subr.bf16.mxu0 %v2123
        %2707 = vmatpush1.bf16.msra.mxu0 %v2122
        %2708 = vmatprep.subr.bf16.mxu0 %v2130
        %2709 = vmatpush1.bf16.msra.mxu0 %v2129
        %2710 = vmatprep.subr.bf16.mxu0 %v2137
        %2711 = vmatpush1.bf16.msra.mxu0 %v2136
        %2712 = vmatprep.subr.bf16.mxu0 %v2144
        %2713 = vmatpush1.bf16.msra.mxu0 %v2143
        %2714 = vmatprep.subr.bf16.mxu0 %v2151
        %2715 = vmatpush1.bf16.msra.mxu0 %v2150
        %2716 = vmatprep.subr.bf16.mxu0 %v2158
        %2717 = vmatpush1.bf16.msra.mxu0 %v2157
        %2718 = vmatprep.mubr.bf16.mxu0 %v422
        %2719 = vmatmul.mubr.bf16.gmra.mrb[0].mxu0 %v421
        %v2720 = vpop.f32.mrb[0].mxu0
        %v2721 = vadd.f32 %v2668, %v2720
        %v2722 = vpop.f32.mrb[0].mxu0
        %v2723 = vadd.f32 %v2670, %v2722
        %v2724 = vpop.f32.mrb[0].mxu0
        %v2725 = vadd.f32 %v2672, %v2724
        %v2726 = vpop.f32.mrb[0].mxu0
        %v2727 = vadd.f32 %v2674, %v2726
        %2728 = vmatprep.mubr.bf16.mxu0 %v429
        %2729 = vmatmul.mubr.bf16.gmra.mrb[0].mxu0 %v428
        %v2730 = vpop.f32.mrb[0].mxu0
        %v2731 = vadd.f32 %v2678, %v2730
        %v2732 = vpop.f32.mrb[0].mxu0
        %v2733 = vadd.f32 %v2680, %v2732
        %v2734 = vpop.f32.mrb[0].mxu0
        %v2735 = vadd.f32 %v2682, %v2734
        %v2736 = vpop.f32.mrb[0].mxu0
        %v2737 = vadd.f32 %v2684, %v2736
        %2738 = vdwg.mxu0
        %2739 = vmatprep.subr.bf16.mxu0 %v2165
        %2740 = vmatpush1.bf16.msra.mxu0 %v2164
        %2741 = vmatprep.subr.bf16.mxu0 %v2172
        %2742 = vmatpush1.bf16.msra.mxu0 %v2171
        %2743 = vmatprep.subr.bf16.mxu0 %v2179
        %2744 = vmatpush1.bf16.msra.mxu0 %v2178
        %2745 = vmatprep.subr.bf16.mxu0 %v2186
        %2746 = vmatpush1.bf16.msra.mxu0 %v2185
        %2747 = vmatprep.subr.bf16.mxu0 %v2193
        %2748 = vmatpush1.bf16.msra.mxu0 %v2192
        %2749 = vmatprep.subr.bf16.mxu0 %v2200
        %2750 = vmatpush1.bf16.msra.mxu0 %v2199
        %2751 = vmatprep.subr.bf16.mxu0 %v2207
        %2752 = vmatpush1.bf16.msra.mxu0 %v2206
        %2753 = vmatprep.subr.bf16.mxu0 %v2214
        %2754 = vmatpush1.bf16.msra.mxu0 %v2213
        %2755 = vmatprep.subr.bf16.mxu0 %v2221
        %2756 = vmatpush1.bf16.msra.mxu0 %v2220
        %2757 = vmatprep.subr.bf16.mxu0 %v2228
        %2758 = vmatpush1.bf16.msra.mxu0 %v2227
        %2759 = vmatprep.subr.bf16.mxu0 %v2235
        %2760 = vmatpush1.bf16.msra.mxu0 %v2234
        %2761 = vmatprep.subr.bf16.mxu0 %v2242
        %2762 = vmatpush1.bf16.msra.mxu0 %v2241
        %2763 = vmatprep.subr.bf16.mxu0 %v2249
        %2764 = vmatpush1.bf16.msra.mxu0 %v2248
        %2765 = vmatprep.subr.bf16.mxu0 %v2256
        %2766 = vmatpush1.bf16.msra.mxu0 %v2255
        %2767 = vmatprep.subr.bf16.mxu0 %v2263
        %2768 = vmatpush1.bf16.msra.mxu0 %v2262
        %2769 = vmatprep.subr.bf16.mxu0 %v2270
        %2770 = vmatpush1.bf16.msra.mxu0 %v2269
        %2771 = vmatprep.mubr.bf16.mxu0 %v424
        %2772 = vmatmul.mubr.bf16.gmra.mrb[0].mxu0 %v423
        %v2773 = vpop.f32.mrb[0].mxu0
        %v2774 = vadd.f32 %v2721, %v2773
        %v2775 = vpop.f32.mrb[0].mxu0
        %v2776 = vadd.f32 %v2723, %v2775
        %v2777 = vpop.f32.mrb[0].mxu0
        %v2778 = vadd.f32 %v2725, %v2777
        %v2779 = vpop.f32.mrb[0].mxu0
        %v2780 = vadd.f32 %v2727, %v2779
        %2781 = vmatprep.mubr.bf16.mxu0 %v431
        %2782 = vmatmul.mubr.bf16.gmra.mrb[0].mxu0 %v430
        %v2783 = vpop.f32.mrb[0].mxu0
        %v2784 = vadd.f32 %v2731, %v2783
        %v2785 = vpop.f32.mrb[0].mxu0
        %v2786 = vadd.f32 %v2733, %v2785
        %v2787 = vpop.f32.mrb[0].mxu0
        %v2788 = vadd.f32 %v2735, %v2787
        %v2789 = vpop.f32.mrb[0].mxu0
        %v2790 = vadd.f32 %v2737, %v2789
        %2791 = vdwg.mxu0
        %2792 = vmatprep.subr.bf16.mxu0 %v2277
        %2793 = vmatpush1.bf16.msra.mxu0 %v2276
        %2794 = vmatprep.subr.bf16.mxu0 0
        %2795 = vmatpush1.bf16.msra.mxu0 0
        %2796 = vmatprep.subr.bf16.mxu0 0
        %2797 = vmatpush1.bf16.msra.mxu0 0
        %2798 = vmatprep.subr.bf16.mxu0 0
        %2799 = vmatpush1.bf16.msra.mxu0 0
        %2800 = vmatprep.subr.bf16.mxu0 0
        %2801 = vmatpush1.bf16.msra.mxu0 0
        %2802 = vmatprep.subr.bf16.mxu0 0
        %2803 = vmatpush1.bf16.msra.mxu0 0
        %2804 = vmatprep.subr.bf16.mxu0 0
        %2805 = vmatpush1.bf16.msra.mxu0 0
        %2806 = vmatprep.subr.bf16.mxu0 0
        %2807 = vmatpush1.bf16.msra.mxu0 0
        %2808 = vmatprep.subr.bf16.mxu0 0
        %2809 = vmatpush1.bf16.msra.mxu0 0
        %2810 = vmatprep.subr.bf16.mxu0 0
        %2811 = vmatpush1.bf16.msra.mxu0 0
        %2812 = vmatprep.subr.bf16.mxu0 0
        %2813 = vmatpush1.bf16.msra.mxu0 0
        %2814 = vmatprep.subr.bf16.mxu0 0
        %2815 = vmatpush1.bf16.msra.mxu0 0
        %2816 = vmatprep.subr.bf16.mxu0 0
        %2817 = vmatpush1.bf16.msra.mxu0 0
        %2818 = vmatprep.subr.bf16.mxu0 0
        %2819 = vmatpush1.bf16.msra.mxu0 0
        %2820 = vmatprep.subr.bf16.mxu0 0
        %2821 = vmatpush1.bf16.msra.mxu0 0
        %2822 = vmatprep.subr.bf16.mxu0 0
        %2823 = vmatpush1.bf16.msra.mxu0 0
        %2824 = vmatprep.mubr.bf16.mxu0 0
        %2825 = vmatmul.mubr.bf16.gmra.mrb[0].mxu0 %v2628
        %v2826 = vpop.f32.mrb[0].mxu0
        %v2827 = vadd.f32 %v2774, %v2826
        %v2828 = vpop.f32.mrb[0].mxu0
        %v2829 = vadd.f32 %v2776, %v2828
        %v2830 = vpop.f32.mrb[0].mxu0
        %v2831 = vadd.f32 %v2778, %v2830
        %v2832 = vpop.f32.mrb[0].mxu0
        %v2833 = vadd.f32 %v2780, %v2832
        %2834 = vmatprep.mubr.bf16.mxu0 0
        %2835 = vmatmul.mubr.bf16.gmra.mrb[0].mxu0 %v2631
        %v2836 = vpop.f32.mrb[0].mxu0
        %v2837 = vadd.f32 %v2784, %v2836
        %v2838 = vpop.f32.mrb[0].mxu0
        %v2839 = vadd.f32 %v2786, %v2838
        %v2840 = vpop.f32.mrb[0].mxu0
        %v2841 = vadd.f32 %v2788, %v2840
        %v2842 = vpop.f32.mrb[0].mxu0
        %v2843 = vadd.f32 %v2790, %v2842
        %2844 = vdwg.mxu0
        %2845 = vmatprep.subr.bf16.mxu0 %v1943
        %2846 = vmatpush1.bf16.msra.mxu0 %v1942
        %2847 = vmatprep.subr.bf16.mxu0 %v1950
        %2848 = vmatpush1.bf16.msra.mxu0 %v1949
        %2849 = vmatprep.subr.bf16.mxu0 %v1957
        %2850 = vmatpush1.bf16.msra.mxu0 %v1956
        %2851 = vmatprep.subr.bf16.mxu0 %v1964
        %2852 = vmatpush1.bf16.msra.mxu0 %v1963
        %2853 = vmatprep.subr.bf16.mxu0 %v1971
        %2854 = vmatpush1.bf16.msra.mxu0 %v1970
        %2855 = vmatprep.subr.bf16.mxu0 %v1978
        %2856 = vmatpush1.bf16.msra.mxu0 %v1977
        %2857 = vmatprep.subr.bf16.mxu0 %v1985
        %2858 = vmatpush1.bf16.msra.mxu0 %v1984
        %2859 = vmatprep.subr.bf16.mxu0 %v1992
        %2860 = vmatpush1.bf16.msra.mxu0 %v1991
        %2861 = vmatprep.subr.bf16.mxu0 %v1999
        %2862 = vmatpush1.bf16.msra.mxu0 %v1998
        %2863 = vmatprep.subr.bf16.mxu0 %v2006
        %2864 = vmatpush1.bf16.msra.mxu0 %v2005
        %2865 = vmatprep.subr.bf16.mxu0 %v2013
        %2866 = vmatpush1.bf16.msra.mxu0 %v2012
        %2867 = vmatprep.subr.bf16.mxu0 %v2020
        %2868 = vmatpush1.bf16.msra.mxu0 %v2019
        %2869 = vmatprep.subr.bf16.mxu0 %v2027
        %2870 = vmatpush1.bf16.msra.mxu0 %v2026
        %2871 = vmatprep.subr.bf16.mxu0 %v2034
        %2872 = vmatpush1.bf16.msra.mxu0 %v2033
        %2873 = vmatprep.subr.bf16.mxu0 %v2041
        %2874 = vmatpush1.bf16.msra.mxu0 %v2040
        %2875 = vmatprep.subr.bf16.mxu0 %v2048
        %2876 = vmatpush1.bf16.msra.mxu0 %v2047
        %2877 = vmatprep.mubr.bf16.mxu0 %v420
        %2878 = vmatmul.mubr.bf16.gmra.mrb[0].mxu0 %v419
        %v2879 = vpop.f32.mrb[0].mxu0
        %v2880 = vadd.f32 %v838, %v2879
        %v2881 = vpop.f32.mrb[0].mxu0
        %v2882 = vadd.f32 %v842, %v2881
        %v2883 = vpop.f32.mrb[0].mxu0
        %v2884 = vadd.f32 %v838, %v2883
        %v2885 = vpop.f32.mrb[0].mxu0
        %v2886 = vadd.f32 %v842, %v2885
        %2887 = vmatprep.mubr.bf16.mxu0 %v427
        %2888 = vmatmul.mubr.bf16.gmra.mrb[0].mxu0 %v426
        %v2889 = vpop.f32.mrb[0].mxu0
        %v2890 = vadd.f32 %v838, %v2889
        %v2891 = vpop.f32.mrb[0].mxu0
        %v2892 = vadd.f32 %v842, %v2891
        %v2893 = vpop.f32.mrb[0].mxu0
        %v2894 = vadd.f32 %v838, %v2893
        %v2895 = vpop.f32.mrb[0].mxu0
        %v2896 = vadd.f32 %v842, %v2895
        %2897 = vdwg.mxu0
        %2898 = vmatprep.subr.bf16.mxu0 %v2055
        %2899 = vmatpush1.bf16.msra.mxu0 %v2054
        %2900 = vmatprep.subr.bf16.mxu0 %v2062
        %2901 = vmatpush1.bf16.msra.mxu0 %v2061
        %2902 = vmatprep.subr.bf16.mxu0 %v2069
        %2903 = vmatpush1.bf16.msra.mxu0 %v2068
        %2904 = vmatprep.subr.bf16.mxu0 %v2076
        %2905 = vmatpush1.bf16.msra.mxu0 %v2075
        %2906 = vmatprep.subr.bf16.mxu0 %v2083
        %2907 = vmatpush1.bf16.msra.mxu0 %v2082
        %2908 = vmatprep.subr.bf16.mxu0 %v2090
        %2909 = vmatpush1.bf16.msra.mxu0 %v2089
        %2910 = vmatprep.subr.bf16.mxu0 %v2097
        %2911 = vmatpush1.bf16.msra.mxu0 %v2096
        %2912 = vmatprep.subr.bf16.mxu0 %v2104
        %2913 = vmatpush1.bf16.msra.mxu0 %v2103
        %2914 = vmatprep.subr.bf16.mxu0 %v2111
        %2915 = vmatpush1.bf16.msra.mxu0 %v2110
        %2916 = vmatprep.subr.bf16.mxu0 %v2118
        %2917 = vmatpush1.bf16.msra.mxu0 %v2117
        %2918 = vmatprep.subr.bf16.mxu0 %v2125
        %2919 = vmatpush1.bf16.msra.mxu0 %v2124
        %2920 = vmatprep.subr.bf16.mxu0 %v2132
        %2921 = vmatpush1.bf16.msra.mxu0 %v2131
        %2922 = vmatprep.subr.bf16.mxu0 %v2139
        %2923 = vmatpush1.bf16.msra.mxu0 %v2138
        %2924 = vmatprep.subr.bf16.mxu0 %v2146
        %2925 = vmatpush1.bf16.msra.mxu0 %v2145
        %2926 = vmatprep.subr.bf16.mxu0 %v2153
        %2927 = vmatpush1.bf16.msra.mxu0 %v2152
        %2928 = vmatprep.subr.bf16.mxu0 %v2160
        %2929 = vmatpush1.bf16.msra.mxu0 %v2159
        %2930 = vmatprep.mubr.bf16.mxu0 %v422
        %2931 = vmatmul.mubr.bf16.gmra.mrb[0].mxu0 %v421
        %v2932 = vpop.f32.mrb[0].mxu0
        %v2933 = vadd.f32 %v2880, %v2932
        %v2934 = vpop.f32.mrb[0].mxu0
        %v2935 = vadd.f32 %v2882, %v2934
        %v2936 = vpop.f32.mrb[0].mxu0
        %v2937 = vadd.f32 %v2884, %v2936
        %v2938 = vpop.f32.mrb[0].mxu0
        %v2939 = vadd.f32 %v2886, %v2938
        %2940 = vmatprep.mubr.bf16.mxu0 %v429
        %2941 = vmatmul.mubr.bf16.gmra.mrb[0].mxu0 %v428
        %v2942 = vpop.f32.mrb[0].mxu0
        %v2943 = vadd.f32 %v2890, %v2942
        %v2944 = vpop.f32.mrb[0].mxu0
        %v2945 = vadd.f32 %v2892, %v2944
        %v2946 = vpop.f32.mrb[0].mxu0
        %v2947 = vadd.f32 %v2894, %v2946
        %v2948 = vpop.f32.mrb[0].mxu0
        %v2949 = vadd.f32 %v2896, %v2948
        %2950 = vdwg.mxu0
        %2951 = vmatprep.subr.bf16.mxu0 %v2167
        %2952 = vmatpush1.bf16.msra.mxu0 %v2166
        %2953 = vmatprep.subr.bf16.mxu0 %v2174
        %2954 = vmatpush1.bf16.msra.mxu0 %v2173
        %2955 = vmatprep.subr.bf16.mxu0 %v2181
        %2956 = vmatpush1.bf16.msra.mxu0 %v2180
        %2957 = vmatprep.subr.bf16.mxu0 %v2188
        %2958 = vmatpush1.bf16.msra.mxu0 %v2187
        %2959 = vmatprep.subr.bf16.mxu0 %v2195
        %2960 = vmatpush1.bf16.msra.mxu0 %v2194
        %2961 = vmatprep.subr.bf16.mxu0 %v2202
        %2962 = vmatpush1.bf16.msra.mxu0 %v2201
        %2963 = vmatprep.subr.bf16.mxu0 %v2209
        %2964 = vmatpush1.bf16.msra.mxu0 %v2208
        %2965 = vmatprep.subr.bf16.mxu0 %v2216
        %2966 = vmatpush1.bf16.msra.mxu0 %v2215
        %2967 = vmatprep.subr.bf16.mxu0 %v2223
        %2968 = vmatpush1.bf16.msra.mxu0 %v2222
        %2969 = vmatprep.subr.bf16.mxu0 %v2230
        %2970 = vmatpush1.bf16.msra.mxu0 %v2229
        %2971 = vmatprep.subr.bf16.mxu0 %v2237
        %2972 = vmatpush1.bf16.msra.mxu0 %v2236
        %2973 = vmatprep.subr.bf16.mxu0 %v2244
        %2974 = vmatpush1.bf16.msra.mxu0 %v2243
        %2975 = vmatprep.subr.bf16.mxu0 %v2251
        %2976 = vmatpush1.bf16.msra.mxu0 %v2250
        %2977 = vmatprep.subr.bf16.mxu0 %v2258
        %2978 = vmatpush1.bf16.msra.mxu0 %v2257
        %2979 = vmatprep.subr.bf16.mxu0 %v2265
        %2980 = vmatpush1.bf16.msra.mxu0 %v2264
        %2981 = vmatprep.subr.bf16.mxu0 %v2272
        %2982 = vmatpush1.bf16.msra.mxu0 %v2271
        %2983 = vmatprep.mubr.bf16.mxu0 %v424
        %2984 = vmatmul.mubr.bf16.gmra.mrb[0].mxu0 %v423
        %v2985 = vpop.f32.mrb[0].mxu0
        %v2986 = vadd.f32 %v2933, %v2985
        %v2987 = vpop.f32.mrb[0].mxu0
        %v2988 = vadd.f32 %v2935, %v2987
        %v2989 = vpop.f32.mrb[0].mxu0
        %v2990 = vadd.f32 %v2937, %v2989
        %v2991 = vpop.f32.mrb[0].mxu0
        %v2992 = vadd.f32 %v2939, %v2991
        %2993 = vmatprep.mubr.bf16.mxu0 %v431
        %2994 = vmatmul.mubr.bf16.gmra.mrb[0].mxu0 %v430
        %v2995 = vpop.f32.mrb[0].mxu0
        %v2996 = vadd.f32 %v2943, %v2995
        %v2997 = vpop.f32.mrb[0].mxu0
        %v2998 = vadd.f32 %v2945, %v2997
        %v2999 = vpop.f32.mrb[0].mxu0
        %v3000 = vadd.f32 %v2947, %v2999
        %v3001 = vpop.f32.mrb[0].mxu0
        %v3002 = vadd.f32 %v2949, %v3001
        %3003 = vdwg.mxu0
        %3004 = vmatprep.subr.bf16.mxu0 %v2279
        %3005 = vmatpush1.bf16.msra.mxu0 %v2278
        %3006 = vmatprep.subr.bf16.mxu0 0
        %3007 = vmatpush1.bf16.msra.mxu0 0
        %3008 = vmatprep.subr.bf16.mxu0 0
        %3009 = vmatpush1.bf16.msra.mxu0 0
        %3010 = vmatprep.subr.bf16.mxu0 0
        %3011 = vmatpush1.bf16.msra.mxu0 0
        %3012 = vmatprep.subr.bf16.mxu0 0
        %3013 = vmatpush1.bf16.msra.mxu0 0
        %3014 = vmatprep.subr.bf16.mxu0 0
        %3015 = vmatpush1.bf16.msra.mxu0 0
        %3016 = vmatprep.subr.bf16.mxu0 0
        %3017 = vmatpush1.bf16.msra.mxu0 0
        %3018 = vmatprep.subr.bf16.mxu0 0
        %3019 = vmatpush1.bf16.msra.mxu0 0
        %3020 = vmatprep.subr.bf16.mxu0 0
        %3021 = vmatpush1.bf16.msra.mxu0 0
        %3022 = vmatprep.subr.bf16.mxu0 0
        %3023 = vmatpush1.bf16.msra.mxu0 0
        %3024 = vmatprep.subr.bf16.mxu0 0
        %3025 = vmatpush1.bf16.msra.mxu0 0
        %3026 = vmatprep.subr.bf16.mxu0 0
        %3027 = vmatpush1.bf16.msra.mxu0 0
        %3028 = vmatprep.subr.bf16.mxu0 0
        %3029 = vmatpush1.bf16.msra.mxu0 0
        %3030 = vmatprep.subr.bf16.mxu0 0
        %3031 = vmatpush1.bf16.msra.mxu0 0
        %3032 = vmatprep.subr.bf16.mxu0 0
        %3033 = vmatpush1.bf16.msra.mxu0 0
        %3034 = vmatprep.subr.bf16.mxu0 0
        %3035 = vmatpush1.bf16.msra.mxu0 0
        %3036 = vmatprep.mubr.bf16.mxu0 0
        %3037 = vmatmul.mubr.bf16.gmra.mrb[0].mxu0 %v2628
        %v3038 = vpop.f32.mrb[0].mxu0
        %v3039 = vadd.f32 %v2986, %v3038
        %v3040 = vpop.f32.mrb[0].mxu0
        %v3041 = vadd.f32 %v2988, %v3040
        %v3042 = vpop.f32.mrb[0].mxu0
        %v3043 = vadd.f32 %v2990, %v3042
        %v3044 = vpop.f32.mrb[0].mxu0
        %v3045 = vadd.f32 %v2992, %v3044
        %3046 = vmatprep.mubr.bf16.mxu0 0
        %3047 = vmatmul.mubr.bf16.gmra.mrb[0].mxu0 %v2631
        %v3048 = vpop.f32.mrb[0].mxu0
        %v3049 = vadd.f32 %v2996, %v3048
        %v3050 = vpop.f32.mrb[0].mxu0
        %v3051 = vadd.f32 %v2998, %v3050
        %v3052 = vpop.f32.mrb[0].mxu0
        %v3053 = vadd.f32 %v3000, %v3052
        %v3054 = vpop.f32.mrb[0].mxu0
        %v3055 = vadd.f32 %v3002, %v3054
        %3056 = vdwg.mxu0
        %3057 = vmatprep.subr.bf16.mxu0 %v1945
        %3058 = vmatpush1.bf16.msra.mxu0 %v1944
        %3059 = vmatprep.subr.bf16.mxu0 %v1952
        %3060 = vmatpush1.bf16.msra.mxu0 %v1951
        %3061 = vmatprep.subr.bf16.mxu0 %v1959
        %3062 = vmatpush1.bf16.msra.mxu0 %v1958
        %3063 = vmatprep.subr.bf16.mxu0 %v1966
        %3064 = vmatpush1.bf16.msra.mxu0 %v1965
        %3065 = vmatprep.subr.bf16.mxu0 %v1973
        %3066 = vmatpush1.bf16.msra.mxu0 %v1972
        %3067 = vmatprep.subr.bf16.mxu0 %v1980
        %3068 = vmatpush1.bf16.msra.mxu0 %v1979
        %3069 = vmatprep.subr.bf16.mxu0 %v1987
        %3070 = vmatpush1.bf16.msra.mxu0 %v1986
        %3071 = vmatprep.subr.bf16.mxu0 %v1994
        %3072 = vmatpush1.bf16.msra.mxu0 %v1993
        %3073 = vmatprep.subr.bf16.mxu0 %v2001
        %3074 = vmatpush1.bf16.msra.mxu0 %v2000
        %3075 = vmatprep.subr.bf16.mxu0 %v2008
        %3076 = vmatpush1.bf16.msra.mxu0 %v2007
        %3077 = vmatprep.subr.bf16.mxu0 %v2015
        %3078 = vmatpush1.bf16.msra.mxu0 %v2014
        %3079 = vmatprep.subr.bf16.mxu0 %v2022
        %3080 = vmatpush1.bf16.msra.mxu0 %v2021
        %3081 = vmatprep.subr.bf16.mxu0 %v2029
        %3082 = vmatpush1.bf16.msra.mxu0 %v2028
        %3083 = vmatprep.subr.bf16.mxu0 %v2036
        %3084 = vmatpush1.bf16.msra.mxu0 %v2035
        %3085 = vmatprep.subr.bf16.mxu0 %v2043
        %3086 = vmatpush1.bf16.msra.mxu0 %v2042
        %3087 = vmatprep.subr.bf16.mxu0 %v2050
        %3088 = vmatpush1.bf16.msra.mxu0 %v2049
        %3089 = vmatprep.mubr.bf16.mxu0 %v420
        %3090 = vmatmul.mubr.bf16.gmra.mrb[0].mxu0 %v419
        %v3091 = vpop.f32.mrb[0].mxu0
        %v3092 = vadd.f32 %v846, %v3091
        %v3093 = vpop.f32.mrb[0].mxu0
        %v3094 = vadd.f32 %v850, %v3093
        %v3095 = vpop.f32.mrb[0].mxu0
        %v3096 = vadd.f32 %v846, %v3095
        %v3097 = vpop.f32.mrb[0].mxu0
        %v3098 = vadd.f32 %v850, %v3097
        %3099 = vmatprep.mubr.bf16.mxu0 %v427
        %3100 = vmatmul.mubr.bf16.gmra.mrb[0].mxu0 %v426
        %v3101 = vpop.f32.mrb[0].mxu0
        %v3102 = vadd.f32 %v846, %v3101
        %v3103 = vpop.f32.mrb[0].mxu0
        %v3104 = vadd.f32 %v850, %v3103
        %v3105 = vpop.f32.mrb[0].mxu0
        %v3106 = vadd.f32 %v846, %v3105
        %v3107 = vpop.f32.mrb[0].mxu0
        %v3108 = vadd.f32 %v850, %v3107
        %3109 = vdwg.mxu0
        %3110 = vmatprep.subr.bf16.mxu0 %v2057
        %3111 = vmatpush1.bf16.msra.mxu0 %v2056
        %3112 = vmatprep.subr.bf16.mxu0 %v2064
        %3113 = vmatpush1.bf16.msra.mxu0 %v2063
        %3114 = vmatprep.subr.bf16.mxu0 %v2071
        %3115 = vmatpush1.bf16.msra.mxu0 %v2070
        %3116 = vmatprep.subr.bf16.mxu0 %v2078
        %3117 = vmatpush1.bf16.msra.mxu0 %v2077
        %3118 = vmatprep.subr.bf16.mxu0 %v2085
        %3119 = vmatpush1.bf16.msra.mxu0 %v2084
        %3120 = vmatprep.subr.bf16.mxu0 %v2092
        %3121 = vmatpush1.bf16.msra.mxu0 %v2091
        %3122 = vmatprep.subr.bf16.mxu0 %v2099
        %3123 = vmatpush1.bf16.msra.mxu0 %v2098
        %3124 = vmatprep.subr.bf16.mxu0 %v2106
        %3125 = vmatpush1.bf16.msra.mxu0 %v2105
        %3126 = vmatprep.subr.bf16.mxu0 %v2113
        %3127 = vmatpush1.bf16.msra.mxu0 %v2112
        %3128 = vmatprep.subr.bf16.mxu0 %v2120
        %3129 = vmatpush1.bf16.msra.mxu0 %v2119
        %3130 = vmatprep.subr.bf16.mxu0 %v2127
        %3131 = vmatpush1.bf16.msra.mxu0 %v2126
        %3132 = vmatprep.subr.bf16.mxu0 %v2134
        %3133 = vmatpush1.bf16.msra.mxu0 %v2133
        %3134 = vmatprep.subr.bf16.mxu0 %v2141
        %3135 = vmatpush1.bf16.msra.mxu0 %v2140
        %3136 = vmatprep.subr.bf16.mxu0 %v2148
        %3137 = vmatpush1.bf16.msra.mxu0 %v2147
        %3138 = vmatprep.subr.bf16.mxu0 %v2155
        %3139 = vmatpush1.bf16.msra.mxu0 %v2154
        %3140 = vmatprep.subr.bf16.mxu0 %v2162
        %3141 = vmatpush1.bf16.msra.mxu0 %v2161
        %3142 = vmatprep.mubr.bf16.mxu0 %v422
        %3143 = vmatmul.mubr.bf16.gmra.mrb[0].mxu0 %v421
        %v3144 = vpop.f32.mrb[0].mxu0
        %v3145 = vadd.f32 %v3092, %v3144
        %v3146 = vpop.f32.mrb[0].mxu0
        %v3147 = vadd.f32 %v3094, %v3146
        %v3148 = vpop.f32.mrb[0].mxu0
        %v3149 = vadd.f32 %v3096, %v3148
        %v3150 = vpop.f32.mrb[0].mxu0
        %v3151 = vadd.f32 %v3098, %v3150
        %3152 = vmatprep.mubr.bf16.mxu0 %v429
        %3153 = vmatmul.mubr.bf16.gmra.mrb[0].mxu0 %v428
        %v3154 = vpop.f32.mrb[0].mxu0
        %v3155 = vadd.f32 %v3102, %v3154
        %v3156 = vpop.f32.mrb[0].mxu0
        %v3157 = vadd.f32 %v3104, %v3156
        %v3158 = vpop.f32.mrb[0].mxu0
        %v3159 = vadd.f32 %v3106, %v3158
        %v3160 = vpop.f32.mrb[0].mxu0
        %v3161 = vadd.f32 %v3108, %v3160
        %3162 = vdwg.mxu0
        %3163 = vmatprep.subr.bf16.mxu0 %v2169
        %3164 = vmatpush1.bf16.msra.mxu0 %v2168
        %3165 = vmatprep.subr.bf16.mxu0 %v2176
        %3166 = vmatpush1.bf16.msra.mxu0 %v2175
        %3167 = vmatprep.subr.bf16.mxu0 %v2183
        %3168 = vmatpush1.bf16.msra.mxu0 %v2182
        %3169 = vmatprep.subr.bf16.mxu0 %v2190
        %3170 = vmatpush1.bf16.msra.mxu0 %v2189
        %3171 = vmatprep.subr.bf16.mxu0 %v2197
        %3172 = vmatpush1.bf16.msra.mxu0 %v2196
        %3173 = vmatprep.subr.bf16.mxu0 %v2204
        %3174 = vmatpush1.bf16.msra.mxu0 %v2203
        %3175 = vmatprep.subr.bf16.mxu0 %v2211
        %3176 = vmatpush1.bf16.msra.mxu0 %v2210
        %3177 = vmatprep.subr.bf16.mxu0 %v2218
        %3178 = vmatpush1.bf16.msra.mxu0 %v2217
        %3179 = vmatprep.subr.bf16.mxu0 %v2225
        %3180 = vmatpush1.bf16.msra.mxu0 %v2224
        %3181 = vmatprep.subr.bf16.mxu0 %v2232
        %3182 = vmatpush1.bf16.msra.mxu0 %v2231
        %3183 = vmatprep.subr.bf16.mxu0 %v2239
        %3184 = vmatpush1.bf16.msra.mxu0 %v2238
        %3185 = vmatprep.subr.bf16.mxu0 %v2246
        %3186 = vmatpush1.bf16.msra.mxu0 %v2245
        %3187 = vmatprep.subr.bf16.mxu0 %v2253
        %3188 = vmatpush1.bf16.msra.mxu0 %v2252
        %3189 = vmatprep.subr.bf16.mxu0 %v2260
        %3190 = vmatpush1.bf16.msra.mxu0 %v2259
        %3191 = vmatprep.subr.bf16.mxu0 %v2267
        %3192 = vmatpush1.bf16.msra.mxu0 %v2266
        %3193 = vmatprep.subr.bf16.mxu0 %v2274
        %3194 = vmatpush1.bf16.msra.mxu0 %v2273
        %3195 = vmatprep.mubr.bf16.mxu0 %v424
        %3196 = vmatmul.mubr.bf16.gmra.mrb[0].mxu0 %v423
        %v3197 = vpop.f32.mrb[0].mxu0
        %v3198 = vadd.f32 %v3145, %v3197
        %v3199 = vpop.f32.mrb[0].mxu0
        %v3200 = vadd.f32 %v3147, %v3199
        %v3201 = vpop.f32.mrb[0].mxu0
        %v3202 = vadd.f32 %v3149, %v3201
        %v3203 = vpop.f32.mrb[0].mxu0
        %v3204 = vadd.f32 %v3151, %v3203
        %3205 = vmatprep.mubr.bf16.mxu0 %v431
        %3206 = vmatmul.mubr.bf16.gmra.mrb[0].mxu0 %v430
        %v3207 = vpop.f32.mrb[0].mxu0
        %v3208 = vadd.f32 %v3155, %v3207
        %v3209 = vpop.f32.mrb[0].mxu0
        %v3210 = vadd.f32 %v3157, %v3209
        %v3211 = vpop.f32.mrb[0].mxu0
        %v3212 = vadd.f32 %v3159, %v3211
        %v3213 = vpop.f32.mrb[0].mxu0
        %v3214 = vadd.f32 %v3161, %v3213
        %3215 = vdwg.mxu0
        %3216 = vmatprep.subr.bf16.mxu0 %v2281
        %3217 = vmatpush1.bf16.msra.mxu0 %v2280
        %3218 = vmatprep.subr.bf16.mxu0 0
        %3219 = vmatpush1.bf16.msra.mxu0 0
        %3220 = vmatprep.subr.bf16.mxu0 0
        %3221 = vmatpush1.bf16.msra.mxu0 0
        %3222 = vmatprep.subr.bf16.mxu0 0
        %3223 = vmatpush1.bf16.msra.mxu0 0
        %3224 = vmatprep.subr.bf16.mxu0 0
        %3225 = vmatpush1.bf16.msra.mxu0 0
        %3226 = vmatprep.subr.bf16.mxu0 0
        %3227 = vmatpush1.bf16.msra.mxu0 0
        %3228 = vmatprep.subr.bf16.mxu0 0
        %3229 = vmatpush1.bf16.msra.mxu0 0
        %3230 = vmatprep.subr.bf16.mxu0 0
        %3231 = vmatpush1.bf16.msra.mxu0 0
        %3232 = vmatprep.subr.bf16.mxu0 0
        %3233 = vmatpush1.bf16.msra.mxu0 0
        %3234 = vmatprep.subr.bf16.mxu0 0
        %3235 = vmatpush1.bf16.msra.mxu0 0
        %3236 = vmatprep.subr.bf16.mxu0 0
        %3237 = vmatpush1.bf16.msra.mxu0 0
        %3238 = vmatprep.subr.bf16.mxu0 0
        %3239 = vmatpush1.bf16.msra.mxu0 0
        %3240 = vmatprep.subr.bf16.mxu0 0
        %3241 = vmatpush1.bf16.msra.mxu0 0
        %3242 = vmatprep.subr.bf16.mxu0 0
        %3243 = vmatpush1.bf16.msra.mxu0 0
        %3244 = vmatprep.subr.bf16.mxu0 0
        %3245 = vmatpush1.bf16.msra.mxu0 0
        %3246 = vmatprep.subr.bf16.mxu0 0
        %3247 = vmatpush1.bf16.msra.mxu0 0
        %3248 = vmatprep.mubr.bf16.mxu0 0
        %3249 = vmatmul.mubr.bf16.gmra.mrb[0].mxu0 %v2628
        %v3250 = vpop.f32.mrb[0].mxu0
        %v3251 = vadd.f32 %v3198, %v3250
        %v3252 = vpop.f32.mrb[0].mxu0
        %v3253 = vadd.f32 %v3200, %v3252
        %v3254 = vpop.f32.mrb[0].mxu0
        %v3255 = vadd.f32 %v3202, %v3254
        %v3256 = vpop.f32.mrb[0].mxu0
        %v3257 = vadd.f32 %v3204, %v3256
        %3258 = vmatprep.mubr.bf16.mxu0 0
        %3259 = vmatmul.mubr.bf16.gmra.mrb[0].mxu0 %v2631
        %v3260 = vpop.f32.mrb[0].mxu0
        %v3261 = vadd.f32 %v3208, %v3260
        %v3262 = vpop.f32.mrb[0].mxu0
        %v3263 = vadd.f32 %v3210, %v3262
        %v3264 = vpop.f32.mrb[0].mxu0
        %v3265 = vadd.f32 %v3212, %v3264
        %v3266 = vpop.f32.mrb[0].mxu0
        %v3267 = vadd.f32 %v3214, %v3266
        %3268 = vdwg.mxu0
        %3269 = vmatprep.subr.bf16.mxu0 0
        %3270 = vmatpush1.bf16.msra.mxu0 %v1946
        %3271 = vmatprep.subr.bf16.mxu0 0
        %3272 = vmatpush1.bf16.msra.mxu0 %v1953
        %3273 = vmatprep.subr.bf16.mxu0 0
        %3274 = vmatpush1.bf16.msra.mxu0 %v1960
        %3275 = vmatprep.subr.bf16.mxu0 0
        %3276 = vmatpush1.bf16.msra.mxu0 %v1967
        %3277 = vmatprep.subr.bf16.mxu0 0
        %3278 = vmatpush1.bf16.msra.mxu0 %v1974
        %3279 = vmatprep.subr.bf16.mxu0 0
        %3280 = vmatpush1.bf16.msra.mxu0 %v1981
        %3281 = vmatprep.subr.bf16.mxu0 0
        %3282 = vmatpush1.bf16.msra.mxu0 %v1988
        %3283 = vmatprep.subr.bf16.mxu0 0
        %3284 = vmatpush1.bf16.msra.mxu0 %v1995
        %3285 = vmatprep.subr.bf16.mxu0 0
        %3286 = vmatpush1.bf16.msra.mxu0 %v2002
        %3287 = vmatprep.subr.bf16.mxu0 0
        %3288 = vmatpush1.bf16.msra.mxu0 %v2009
        %3289 = vmatprep.subr.bf16.mxu0 0
        %3290 = vmatpush1.bf16.msra.mxu0 %v2016
        %3291 = vmatprep.subr.bf16.mxu0 0
        %3292 = vmatpush1.bf16.msra.mxu0 %v2023
        %3293 = vmatprep.subr.bf16.mxu0 0
        %3294 = vmatpush1.bf16.msra.mxu0 %v2030
        %3295 = vmatprep.subr.bf16.mxu0 0
        %3296 = vmatpush1.bf16.msra.mxu0 %v2037
        %3297 = vmatprep.subr.bf16.mxu0 0
        %3298 = vmatpush1.bf16.msra.mxu0 %v2044
        %3299 = vmatprep.subr.bf16.mxu0 0
        %3300 = vmatpush1.bf16.msra.mxu0 %v2051
        %3301 = vmatprep.mubr.bf16.mxu0 %v420
        %3302 = vmatmul.mubr.bf16.gmra.mrb[0].mxu0 %v419
        %v3303 = vpop.f32.mrb[0].mxu0
        %v3304 = vadd.f32 %v854, %v3303
        %v3305 = vpop.f32.mrb[0].mxu0
        %v3306 = vpop.f32.mrb[0].mxu0
        %v3307 = vadd.f32 %v854, %v3306
        %v3308 = vpop.f32.mrb[0].mxu0
        %3309 = vmatprep.mubr.bf16.mxu0 %v427
        %3310 = vmatmul.mubr.bf16.gmra.mrb[0].mxu0 %v426
        %v3311 = vpop.f32.mrb[0].mxu0
        %v3312 = vadd.f32 %v854, %v3311
        %v3313 = vpop.f32.mrb[0].mxu0
        %v3314 = vpop.f32.mrb[0].mxu0
        %v3315 = vadd.f32 %v854, %v3314
        %v3316 = vpop.f32.mrb[0].mxu0
        %3317 = vdwg.mxu0
        %3318 = vmatprep.subr.bf16.mxu0 0
        %3319 = vmatpush1.bf16.msra.mxu0 %v2058
        %3320 = vmatprep.subr.bf16.mxu0 0
        %3321 = vmatpush1.bf16.msra.mxu0 %v2065
        %3322 = vmatprep.subr.bf16.mxu0 0
        %3323 = vmatpush1.bf16.msra.mxu0 %v2072
        %3324 = vmatprep.subr.bf16.mxu0 0
        %3325 = vmatpush1.bf16.msra.mxu0 %v2079
        %3326 = vmatprep.subr.bf16.mxu0 0
        %3327 = vmatpush1.bf16.msra.mxu0 %v2086
        %3328 = vmatprep.subr.bf16.mxu0 0
        %3329 = vmatpush1.bf16.msra.mxu0 %v2093
        %3330 = vmatprep.subr.bf16.mxu0 0
        %3331 = vmatpush1.bf16.msra.mxu0 %v2100
        %3332 = vmatprep.subr.bf16.mxu0 0
        %3333 = vmatpush1.bf16.msra.mxu0 %v2107
        %3334 = vmatprep.subr.bf16.mxu0 0
        %3335 = vmatpush1.bf16.msra.mxu0 %v2114
        %3336 = vmatprep.subr.bf16.mxu0 0
        %3337 = vmatpush1.bf16.msra.mxu0 %v2121
        %3338 = vmatprep.subr.bf16.mxu0 0
        %3339 = vmatpush1.bf16.msra.mxu0 %v2128
        %3340 = vmatprep.subr.bf16.mxu0 0
        %3341 = vmatpush1.bf16.msra.mxu0 %v2135
        %3342 = vmatprep.subr.bf16.mxu0 0
        %3343 = vmatpush1.bf16.msra.mxu0 %v2142
        %3344 = vmatprep.subr.bf16.mxu0 0
        %3345 = vmatpush1.bf16.msra.mxu0 %v2149
        %3346 = vmatprep.subr.bf16.mxu0 0
        %3347 = vmatpush1.bf16.msra.mxu0 %v2156
        %3348 = vmatprep.subr.bf16.mxu0 0
        %3349 = vmatpush1.bf16.msra.mxu0 %v2163
        %3350 = vmatprep.mubr.bf16.mxu0 %v422
        %3351 = vmatmul.mubr.bf16.gmra.mrb[0].mxu0 %v421
        %v3352 = vpop.f32.mrb[0].mxu0
        %v3353 = vadd.f32 %v3304, %v3352
        %v3354 = vpop.f32.mrb[0].mxu0
        %v3355 = vpop.f32.mrb[0].mxu0
        %v3356 = vadd.f32 %v3307, %v3355
        %v3357 = vpop.f32.mrb[0].mxu0
        %3358 = vmatprep.mubr.bf16.mxu0 %v429
        %3359 = vmatmul.mubr.bf16.gmra.mrb[0].mxu0 %v428
        %v3360 = vpop.f32.mrb[0].mxu0
        %v3361 = vadd.f32 %v3312, %v3360
        %v3362 = vpop.f32.mrb[0].mxu0
        %v3363 = vpop.f32.mrb[0].mxu0
        %v3364 = vadd.f32 %v3315, %v3363
        %v3365 = vpop.f32.mrb[0].mxu0
        %3366 = vdwg.mxu0
        %3367 = vmatprep.subr.bf16.mxu0 0
        %3368 = vmatpush1.bf16.msra.mxu0 %v2170
        %3369 = vmatprep.subr.bf16.mxu0 0
        %3370 = vmatpush1.bf16.msra.mxu0 %v2177
        %3371 = vmatprep.subr.bf16.mxu0 0
        %3372 = vmatpush1.bf16.msra.mxu0 %v2184
        %3373 = vmatprep.subr.bf16.mxu0 0
        %3374 = vmatpush1.bf16.msra.mxu0 %v2191
        %3375 = vmatprep.subr.bf16.mxu0 0
        %3376 = vmatpush1.bf16.msra.mxu0 %v2198
        %3377 = vmatprep.subr.bf16.mxu0 0
        %3378 = vmatpush1.bf16.msra.mxu0 %v2205
        %3379 = vmatprep.subr.bf16.mxu0 0
        %3380 = vmatpush1.bf16.msra.mxu0 %v2212
        %3381 = vmatprep.subr.bf16.mxu0 0
        %3382 = vmatpush1.bf16.msra.mxu0 %v2219
        %3383 = vmatprep.subr.bf16.mxu0 0
        %3384 = vmatpush1.bf16.msra.mxu0 %v2226
        %3385 = vmatprep.subr.bf16.mxu0 0
        %3386 = vmatpush1.bf16.msra.mxu0 %v2233
        %3387 = vmatprep.subr.bf16.mxu0 0
        %3388 = vmatpush1.bf16.msra.mxu0 %v2240
        %3389 = vmatprep.subr.bf16.mxu0 0
        %3390 = vmatpush1.bf16.msra.mxu0 %v2247
        %3391 = vmatprep.subr.bf16.mxu0 0
        %3392 = vmatpush1.bf16.msra.mxu0 %v2254
        %3393 = vmatprep.subr.bf16.mxu0 0
        %3394 = vmatpush1.bf16.msra.mxu0 %v2261
        %3395 = vmatprep.subr.bf16.mxu0 0
        %3396 = vmatpush1.bf16.msra.mxu0 %v2268
        %3397 = vmatprep.subr.bf16.mxu0 0
        %3398 = vmatpush1.bf16.msra.mxu0 %v2275
        %3399 = vmatprep.mubr.bf16.mxu0 %v424
        %3400 = vmatmul.mubr.bf16.gmra.mrb[0].mxu0 %v423
        %v3401 = vpop.f32.mrb[0].mxu0
        %v3402 = vadd.f32 %v3353, %v3401
        %v3403 = vpop.f32.mrb[0].mxu0
        %v3404 = vpop.f32.mrb[0].mxu0
        %v3405 = vadd.f32 %v3356, %v3404
        %v3406 = vpop.f32.mrb[0].mxu0
        %3407 = vmatprep.mubr.bf16.mxu0 %v431
        %3408 = vmatmul.mubr.bf16.gmra.mrb[0].mxu0 %v430
        %v3409 = vpop.f32.mrb[0].mxu0
        %v3410 = vadd.f32 %v3361, %v3409
        %v3411 = vpop.f32.mrb[0].mxu0
        %v3412 = vpop.f32.mrb[0].mxu0
        %v3413 = vadd.f32 %v3364, %v3412
        %v3414 = vpop.f32.mrb[0].mxu0
        %3415 = vdwg.mxu0
        %3416 = vmatprep.subr.bf16.mxu0 0
        %3417 = vmatpush1.bf16.msra.mxu0 %v2282
        %3418 = vmatprep.subr.bf16.mxu0 0
        %3419 = vmatpush1.bf16.msra.mxu0 0
        %3420 = vmatprep.subr.bf16.mxu0 0
        %3421 = vmatpush1.bf16.msra.mxu0 0
        %3422 = vmatprep.subr.bf16.mxu0 0
        %3423 = vmatpush1.bf16.msra.mxu0 0
        %3424 = vmatprep.subr.bf16.mxu0 0
        %3425 = vmatpush1.bf16.msra.mxu0 0
        %3426 = vmatprep.subr.bf16.mxu0 0
        %3427 = vmatpush1.bf16.msra.mxu0 0
        %3428 = vmatprep.subr.bf16.mxu0 0
        %3429 = vmatpush1.bf16.msra.mxu0 0
        %3430 = vmatprep.subr.bf16.mxu0 0
        %3431 = vmatpush1.bf16.msra.mxu0 0
        %3432 = vmatprep.subr.bf16.mxu0 0
        %3433 = vmatpush1.bf16.msra.mxu0 0
        %3434 = vmatprep.subr.bf16.mxu0 0
        %3435 = vmatpush1.bf16.msra.mxu0 0
        %3436 = vmatprep.subr.bf16.mxu0 0
        %3437 = vmatpush1.bf16.msra.mxu0 0
        %3438 = vmatprep.subr.bf16.mxu0 0
        %3439 = vmatpush1.bf16.msra.mxu0 0
        %3440 = vmatprep.subr.bf16.mxu0 0
        %3441 = vmatpush1.bf16.msra.mxu0 0
        %3442 = vmatprep.subr.bf16.mxu0 0
        %3443 = vmatpush1.bf16.msra.mxu0 0
        %3444 = vmatprep.subr.bf16.mxu0 0
        %3445 = vmatpush1.bf16.msra.mxu0 0
        %3446 = vmatprep.subr.bf16.mxu0 0
        %3447 = vmatpush1.bf16.msra.mxu0 0
        %3448 = vmatprep.mubr.bf16.mxu0 0
        %3449 = vmatmul.mubr.bf16.gmra.mrb[0].mxu0 %v2628
        %v3450 = vpop.f32.mrb[0].mxu0
        %v3451 = vadd.f32 %v3402, %v3450
        %v3452 = vpop.f32.mrb[0].mxu0
        %v3453 = vpop.f32.mrb[0].mxu0
        %v3454 = vadd.f32 %v3405, %v3453
        %v3455 = vpop.f32.mrb[0].mxu0
        %3456 = vmatprep.mubr.bf16.mxu0 0
        %3457 = vmatmul.mubr.bf16.gmra.mrb[0].mxu0 %v2631
        %v3458 = vpop.f32.mrb[0].mxu0
        %v3459 = vadd.f32 %v3410, %v3458
        %v3460 = vpop.f32.mrb[0].mxu0
        %v3461 = vpop.f32.mrb[0].mxu0
        %v3462 = vadd.f32 %v3413, %v3461
        %v3463 = vpop.f32.mrb[0].mxu0
        %3464 = vdwg.mxu0
        %v3465 = vmax.f32 %v2827, 0.0
        %v3466 = vmax.f32 %v2829, 0.0
        %v3467 = vmax.f32 %v3039, 0.0
        %v3468 = vmax.f32 %v3041, 0.0
        %v3469 = vmax.f32 %v3251, 0.0
        %v3470 = vmax.f32 %v3253, 0.0
        %v3471 = vmax.f32 %v3451, 0.0
        %v3472 = vmax.f32 %v2831, 0.0
        %v3473 = vmax.f32 %v2833, 0.0
        %v3474 = vmax.f32 %v3043, 0.0
        %v3475 = vmax.f32 %v3045, 0.0
        %v3476 = vmax.f32 %v3255, 0.0
        %v3477 = vmax.f32 %v3257, 0.0
        %v3478 = vmax.f32 %v3454, 0.0
        %v3479 = vmax.f32 %v2837, 0.0
        %v3480 = vmax.f32 %v2839, 0.0
        %v3481 = vmax.f32 %v3049, 0.0
        %v3482 = vmax.f32 %v3051, 0.0
        %v3483 = vmax.f32 %v3261, 0.0
        %v3484 = vmax.f32 %v3263, 0.0
        %v3485 = vmax.f32 %v3459, 0.0
        %v3486 = vmax.f32 %v2841, 0.0
        %v3487 = vmax.f32 %v2843, 0.0
        %v3488 = vmax.f32 %v3053, 0.0
        %v3489 = vmax.f32 %v3055, 0.0
        %v3490 = vmax.f32 %v3265, 0.0
        %v3491 = vmax.f32 %v3267, 0.0
        %v3492 = vmax.f32 %v3462, 0.0
        %v3493 = vpack.c.bf16 %v3472, %v3465
        %v3494 = vpack.c.bf16 %v3473, %v3466
        %v3495 = vpack.c.bf16 %v3474, %v3467
        %v3496 = vpack.c.bf16 %v3475, %v3468
        %v3497 = vpack.c.bf16 %v3476, %v3469
        %v3498 = vpack.c.bf16 %v3477, %v3470
        %v3499 = vpack.c.bf16 %v3478, %v3471
        %v3500 = vpack.c.bf16 %v3486, %v3479
        %v3501 = vpack.c.bf16 %v3487, %v3480
        %v3502 = vpack.c.bf16 %v3488, %v3481
        %v3503 = vpack.c.bf16 %v3489, %v3482
        %v3504 = vpack.c.bf16 %v3490, %v3483
        %v3505 = vpack.c.bf16 %v3491, %v3484
        %v3506 = vpack.c.bf16 %v3492, %v3485
        %v3507 = vld [vmem:[#allocation6] sm:$0xff]
        %v3508 = vld [vmem:[#allocation6 + $0x8] sm:$0xff]
        %v3509 = vld [vmem:[#allocation6 + $0x10] sm:$0xff]
        %v3510 = vld [vmem:[#allocation6 + $0x18] sm:$0xff]
        %v3511 = vld [vmem:[#allocation6 + $0x20] sm:$0xff]
        %v3512 = vld [vmem:[#allocation6 + $0x28] sm:$0xff]
        %v3513 = vld [vmem:[#allocation6 + $0x30] sm:$0xff]
        %v3514 = vld [vmem:[#allocation6 + $0x38] sm:$0xff]
        %v3515 = vld [vmem:[#allocation6 + $0x40] sm:$0xff]
        %v3516 = vld [vmem:[#allocation6 + $0x48] sm:$0xff]
        %v3517 = vld [vmem:[#allocation6 + $0x50] sm:$0xff]
        %v3518 = vld [vmem:[#allocation6 + $0x58] sm:$0xff]
        %v3519 = vld [vmem:[#allocation6 + $0x60] sm:$0xff]
        %v3520 = vld [vmem:[#allocation6 + $0x68] sm:$0xff]
        %v3521 = vld [vmem:[#allocation6 + $0x70] sm:$0xff]
        %v3522 = vld [vmem:[#allocation6 + $0x78] sm:$0xff]
        %v3523 = vld [vmem:[#allocation6 + $0x80] sm:$0xff]
        %v3524 = vld [vmem:[#allocation6 + $0x88] sm:$0xff]
        %v3525 = vld [vmem:[#allocation6 + $0x90] sm:$0xff]
        %v3526 = vld [vmem:[#allocation6 + $0x98] sm:$0xff]
        %v3527 = vld [vmem:[#allocation6 + $0xa0] sm:$0xff]
        %v3528 = vld [vmem:[#allocation6 + $0xa8] sm:$0xff]
        %v3529 = vld [vmem:[#allocation6 + $0xb0] sm:$0xff]
        %v3530 = vld [vmem:[#allocation6 + $0xb8] sm:$0xff]
        %v3531 = vld [vmem:[#allocation6 + $0xc0] sm:$0xff]
        %v3532 = vld [vmem:[#allocation6 + $0xc8] sm:$0xff]
        %v3533 = vld [vmem:[#allocation6 + $0xd0] sm:$0xff]
        %v3534 = vld [vmem:[#allocation6 + $0xd8] sm:$0xff]
        %v3535 = vld [vmem:[#allocation6 + $0xe0] sm:$0xff]
        %v3536 = vld [vmem:[#allocation6 + $0xe8] sm:$0xff]
        %v3537 = vld [vmem:[#allocation6 + $0xf0] sm:$0xff]
        %v3538 = vld [vmem:[#allocation6 + $0xf8] sm:$0xff]
        %v3539 = vld [vmem:[#allocation6 + $0x100] sm:$0xff]
        %v3540 = vld [vmem:[#allocation6 + $0x108] sm:$0xff]
        %v3541 = vld [vmem:[#allocation6 + $0x110] sm:$0xff]
        %v3542 = vld [vmem:[#allocation6 + $0x118] sm:$0xff]
        %v3543 = vld [vmem:[#allocation6 + $0x120] sm:$0xff]
        %v3544 = vld [vmem:[#allocation6 + $0x128] sm:$0xff]
        %v3545 = vld [vmem:[#allocation6 + $0x130] sm:$0xff]
        %v3546 = vld [vmem:[#allocation6 + $0x138] sm:$0xff]
        %v3547 = vld [vmem:[#allocation6 + $0x140] sm:$0xff]
        %v3548 = vld [vmem:[#allocation6 + $0x148] sm:$0xff]
        %v3549 = vld [vmem:[#allocation6 + $0x150] sm:$0xff]
        %v3550 = vld [vmem:[#allocation6 + $0x158] sm:$0xff]
        %v3551 = vld [vmem:[#allocation6 + $0x160] sm:$0xff]
        %v3552 = vld [vmem:[#allocation6 + $0x168] sm:$0xff]
        %v3553 = vld [vmem:[#allocation6 + $0x170] sm:$0xff]
        %v3554 = vld [vmem:[#allocation6 + $0x178] sm:$0xff]
        %v3555 = vld [vmem:[#allocation6 + $0x180] sm:$0xff]
        %v3556 = vld [vmem:[#allocation6 + $0x188] sm:$0xff]
        %v3557 = vld [vmem:[#allocation6 + $0x190] sm:$0xff]
        %v3558 = vld [vmem:[#allocation6 + $0x198] sm:$0xff]
        %v3559 = vld [vmem:[#allocation6 + $0x1a0] sm:$0xff]
        %v3560 = vld [vmem:[#allocation6 + $0x1a8] sm:$0xff]
        %v3561 = vld [vmem:[#allocation6 + $0x1b0] sm:$0xff]
        %v3562 = vld [vmem:[#allocation6 + $0x1b8] sm:$0xff]
        %v3563 = vld [vmem:[#allocation6 + $0x1c0] sm:$0xff]
        %v3564 = vld [vmem:[#allocation6 + $0x1c8] sm:$0xff]
        %v3565 = vld [vmem:[#allocation6 + $0x1d0] sm:$0xff]
        %v3566 = vld [vmem:[#allocation6 + $0x1d8] sm:$0xff]
        %v3567 = vld [vmem:[#allocation6 + $0x1e0] sm:$0xff]
        %v3568 = vld [vmem:[#allocation6 + $0x1e8] sm:$0xff]
        %v3569 = vld [vmem:[#allocation6 + $0x1f0] sm:$0xff]
        %v3570 = vld [vmem:[#allocation6 + $0x1f8] sm:$0xff]
        %v3571 = vld [vmem:[#allocation6 + $0x200] sm:$0xff]
        %v3572 = vld [vmem:[#allocation6 + $0x208] sm:$0xff]
        %v3573 = vld [vmem:[#allocation6 + $0x210] sm:$0xff]
        %v3574 = vld [vmem:[#allocation6 + $0x218] sm:$0xff]
        %v3575 = vld [vmem:[#allocation6 + $0x220] sm:$0xff]
        %v3576 = vld [vmem:[#allocation6 + $0x228] sm:$0xff]
        %v3577 = vld [vmem:[#allocation6 + $0x230] sm:$0xff]
        %v3578 = vld [vmem:[#allocation6 + $0x238] sm:$0xff]
        %v3579 = vld [vmem:[#allocation6 + $0x240] sm:$0xff]
        %v3580 = vld [vmem:[#allocation6 + $0x248] sm:$0xff]
        %v3581 = vld [vmem:[#allocation6 + $0x250] sm:$0xff]
        %v3582 = vld [vmem:[#allocation6 + $0x258] sm:$0xff]
        %v3583 = vld [vmem:[#allocation6 + $0x260] sm:$0xff]
        %v3584 = vld [vmem:[#allocation6 + $0x268] sm:$0xff]
        %v3585 = vld [vmem:[#allocation6 + $0x270] sm:$0xff]
        %v3586 = vld [vmem:[#allocation6 + $0x278] sm:$0xff]
        %v3587 = vld [vmem:[#allocation6 + $0x280] sm:$0xff]
        %v3588 = vld [vmem:[#allocation6 + $0x288] sm:$0xff]
        %v3589 = vld [vmem:[#allocation6 + $0x290] sm:$0xff]
        %v3590 = vld [vmem:[#allocation6 + $0x298] sm:$0xff]
        %v3591 = vld [vmem:[#allocation6 + $0x2a0] sm:$0xff]
        %v3592 = vld [vmem:[#allocation6 + $0x2a8] sm:$0xff]
        %v3593 = vld [vmem:[#allocation6 + $0x2b0] sm:$0xff]
        %v3594 = vld [vmem:[#allocation6 + $0x2b8] sm:$0xff]
        %v3595 = vld [vmem:[#allocation6 + $0x2c0] sm:$0xff]
        %v3596 = vld [vmem:[#allocation6 + $0x2c8] sm:$0xff]
        %v3597 = vld [vmem:[#allocation6 + $0x2d0] sm:$0xff]
        %v3598 = vld [vmem:[#allocation6 + $0x2d8] sm:$0xff]
        %v3599 = vld [vmem:[#allocation6 + $0x2e0] sm:$0xff]
        %v3600 = vld [vmem:[#allocation6 + $0x2e8] sm:$0xff]
        %v3601 = vld [vmem:[#allocation6 + $0x2f0] sm:$0xff]
        %v3602 = vld [vmem:[#allocation6 + $0x2f8] sm:$0xff]
        %v3603 = vld [vmem:[#allocation6 + $0x300] sm:$0xff]
        %v3604 = vld [vmem:[#allocation6 + $0x308] sm:$0xff]
        %v3605 = vld [vmem:[#allocation6 + $0x310] sm:$0xff]
        %v3606 = vld [vmem:[#allocation6 + $0x318] sm:$0xff]
        %v3607 = vld [vmem:[#allocation6 + $0x320] sm:$0xff]
        %v3608 = vld [vmem:[#allocation6 + $0x328] sm:$0xff]
        %v3609 = vld [vmem:[#allocation6 + $0x330] sm:$0xff]
        %v3610 = vld [vmem:[#allocation6 + $0x338] sm:$0xff]
        %v3611 = vld [vmem:[#allocation6 + $0x340] sm:$0xff]
        %v3612 = vld [vmem:[#allocation6 + $0x348] sm:$0xff]
        %v3613 = vld [vmem:[#allocation6 + $0x350] sm:$0xff]
        %v3614 = vld [vmem:[#allocation6 + $0x358] sm:$0xff]
        %v3615 = vld [vmem:[#allocation6 + $0x360] sm:$0xff]
        %v3616 = vld [vmem:[#allocation6 + $0x368] sm:$0xff]
        %v3617 = vld [vmem:[#allocation6 + $0x370] sm:$0xff]
        %v3618 = vld [vmem:[#allocation6 + $0x378] sm:$0xff]
        %v3619 = vld [vmem:[#allocation7] sm:$0x3]
        %v3621 = vlaneseq
        %v3622 = vshrl.u32 %v3621, 7
        %v3623 = vsub.s32 0, %v3622
        %v3624 = vrot.slane %v3619, %v3623
        %v3625 = vlaneseq
        %v3626 = vshrl.u32 %v3625, 7
        %v3627 = vsub.s32 1, %v3626
        %v3628 = vrot.slane %v3619, %v3627
        %v3743 = vunpack.c.l.b16 %v3507
        %v3744 = vunpack.c.h.b16 %v3507
        %v3745 = vunpack.c.l.b16 %v3508
        %v3746 = vunpack.c.h.b16 %v3508
        %v3747 = vunpack.c.l.b16 %v3509
        %v3748 = vunpack.c.h.b16 %v3509
        %v3749 = vunpack.c.l.b16 %v3510
        %v3750 = vunpack.c.h.b16 %v3510
        %v3751 = vunpack.c.l.b16 %v3511
        %v3752 = vunpack.c.h.b16 %v3511
        %v3753 = vunpack.c.l.b16 %v3512
        %v3754 = vunpack.c.h.b16 %v3512
        %v3755 = vunpack.c.l.b16 %v3513
        %v3756 = vunpack.c.h.b16 %v3513
        %v3757 = vunpack.c.l.b16 %v3514
        %v3758 = vunpack.c.h.b16 %v3514
        %v3759 = vunpack.c.l.b16 %v3515
        %v3760 = vunpack.c.h.b16 %v3515
        %v3761 = vunpack.c.l.b16 %v3516
        %v3762 = vunpack.c.h.b16 %v3516
        %v3763 = vunpack.c.l.b16 %v3517
        %v3764 = vunpack.c.h.b16 %v3517
        %v3765 = vunpack.c.l.b16 %v3518
        %v3766 = vunpack.c.h.b16 %v3518
        %v3767 = vunpack.c.l.b16 %v3519
        %v3768 = vunpack.c.h.b16 %v3519
        %v3769 = vunpack.c.l.b16 %v3520
        %v3770 = vunpack.c.h.b16 %v3520
        %v3771 = vunpack.c.l.b16 %v3521
        %v3772 = vunpack.c.h.b16 %v3521
        %v3773 = vunpack.c.l.b16 %v3522
        %v3774 = vunpack.c.h.b16 %v3522
        %v3775 = vunpack.c.l.b16 %v3523
        %v3776 = vunpack.c.h.b16 %v3523
        %v3777 = vunpack.c.l.b16 %v3524
        %v3778 = vunpack.c.h.b16 %v3524
        %v3779 = vunpack.c.l.b16 %v3525
        %v3780 = vunpack.c.h.b16 %v3525
        %v3781 = vunpack.c.l.b16 %v3526
        %v3782 = vunpack.c.h.b16 %v3526
        %v3783 = vunpack.c.l.b16 %v3527
        %v3784 = vunpack.c.h.b16 %v3527
        %v3785 = vunpack.c.l.b16 %v3528
        %v3786 = vunpack.c.h.b16 %v3528
        %v3787 = vunpack.c.l.b16 %v3529
        %v3788 = vunpack.c.h.b16 %v3529
        %v3789 = vunpack.c.l.b16 %v3530
        %v3790 = vunpack.c.h.b16 %v3530
        %v3791 = vunpack.c.l.b16 %v3531
        %v3792 = vunpack.c.h.b16 %v3531
        %v3793 = vunpack.c.l.b16 %v3532
        %v3794 = vunpack.c.h.b16 %v3532
        %v3795 = vunpack.c.l.b16 %v3533
        %v3796 = vunpack.c.h.b16 %v3533
        %v3797 = vunpack.c.l.b16 %v3534
        %v3798 = vunpack.c.h.b16 %v3534
        %v3799 = vunpack.c.l.b16 %v3535
        %v3800 = vunpack.c.h.b16 %v3535
        %v3801 = vunpack.c.l.b16 %v3536
        %v3802 = vunpack.c.h.b16 %v3536
        %v3803 = vunpack.c.l.b16 %v3537
        %v3804 = vunpack.c.h.b16 %v3537
        %v3805 = vunpack.c.l.b16 %v3538
        %v3806 = vunpack.c.h.b16 %v3538
        %v3807 = vunpack.c.l.b16 %v3539
        %v3808 = vunpack.c.h.b16 %v3539
        %v3809 = vunpack.c.l.b16 %v3540
        %v3810 = vunpack.c.h.b16 %v3540
        %v3811 = vunpack.c.l.b16 %v3541
        %v3812 = vunpack.c.h.b16 %v3541
        %v3813 = vunpack.c.l.b16 %v3542
        %v3814 = vunpack.c.h.b16 %v3542
        %v3815 = vunpack.c.l.b16 %v3543
        %v3816 = vunpack.c.h.b16 %v3543
        %v3817 = vunpack.c.l.b16 %v3544
        %v3818 = vunpack.c.h.b16 %v3544
        %v3819 = vunpack.c.l.b16 %v3545
        %v3820 = vunpack.c.h.b16 %v3545
        %v3821 = vunpack.c.l.b16 %v3546
        %v3822 = vunpack.c.h.b16 %v3546
        %v3823 = vunpack.c.l.b16 %v3547
        %v3824 = vunpack.c.h.b16 %v3547
        %v3825 = vunpack.c.l.b16 %v3548
        %v3826 = vunpack.c.h.b16 %v3548
        %v3827 = vunpack.c.l.b16 %v3549
        %v3828 = vunpack.c.h.b16 %v3549
        %v3829 = vunpack.c.l.b16 %v3550
        %v3830 = vunpack.c.h.b16 %v3550
        %v3831 = vunpack.c.l.b16 %v3551
        %v3832 = vunpack.c.h.b16 %v3551
        %v3833 = vunpack.c.l.b16 %v3552
        %v3834 = vunpack.c.h.b16 %v3552
        %v3835 = vunpack.c.l.b16 %v3553
        %v3836 = vunpack.c.h.b16 %v3553
        %v3837 = vunpack.c.l.b16 %v3554
        %v3838 = vunpack.c.h.b16 %v3554
        %v3839 = vunpack.c.l.b16 %v3555
        %v3840 = vunpack.c.h.b16 %v3555
        %v3841 = vunpack.c.l.b16 %v3556
        %v3842 = vunpack.c.h.b16 %v3556
        %v3843 = vunpack.c.l.b16 %v3557
        %v3844 = vunpack.c.h.b16 %v3557
        %v3845 = vunpack.c.l.b16 %v3558
        %v3846 = vunpack.c.h.b16 %v3558
        %v3847 = vunpack.c.l.b16 %v3559
        %v3848 = vunpack.c.h.b16 %v3559
        %v3849 = vunpack.c.l.b16 %v3560
        %v3850 = vunpack.c.h.b16 %v3560
        %v3851 = vunpack.c.l.b16 %v3561
        %v3852 = vunpack.c.h.b16 %v3561
        %v3853 = vunpack.c.l.b16 %v3562
        %v3854 = vunpack.c.h.b16 %v3562
        %v3855 = vunpack.c.l.b16 %v3563
        %v3856 = vunpack.c.h.b16 %v3563
        %v3857 = vunpack.c.l.b16 %v3564
        %v3858 = vunpack.c.h.b16 %v3564
        %v3859 = vunpack.c.l.b16 %v3565
        %v3860 = vunpack.c.h.b16 %v3565
        %v3861 = vunpack.c.l.b16 %v3566
        %v3862 = vunpack.c.h.b16 %v3566
        %v3863 = vunpack.c.l.b16 %v3567
        %v3864 = vunpack.c.h.b16 %v3567
        %v3865 = vunpack.c.l.b16 %v3568
        %v3866 = vunpack.c.h.b16 %v3568
        %v3867 = vunpack.c.l.b16 %v3569
        %v3868 = vunpack.c.h.b16 %v3569
        %v3869 = vunpack.c.l.b16 %v3570
        %v3870 = vunpack.c.h.b16 %v3570
        %v3871 = vunpack.c.l.b16 %v3571
        %v3872 = vunpack.c.h.b16 %v3571
        %v3873 = vunpack.c.l.b16 %v3572
        %v3874 = vunpack.c.h.b16 %v3572
        %v3875 = vunpack.c.l.b16 %v3573
        %v3876 = vunpack.c.h.b16 %v3573
        %v3877 = vunpack.c.l.b16 %v3574
        %v3878 = vunpack.c.h.b16 %v3574
        %v3879 = vunpack.c.l.b16 %v3575
        %v3880 = vunpack.c.h.b16 %v3575
        %v3881 = vunpack.c.l.b16 %v3576
        %v3882 = vunpack.c.h.b16 %v3576
        %v3883 = vunpack.c.l.b16 %v3577
        %v3884 = vunpack.c.h.b16 %v3577
        %v3885 = vunpack.c.l.b16 %v3578
        %v3886 = vunpack.c.h.b16 %v3578
        %v3887 = vunpack.c.l.b16 %v3579
        %v3888 = vunpack.c.h.b16 %v3579
        %v3889 = vunpack.c.l.b16 %v3580
        %v3890 = vunpack.c.h.b16 %v3580
        %v3891 = vunpack.c.l.b16 %v3581
        %v3892 = vunpack.c.h.b16 %v3581
        %v3893 = vunpack.c.l.b16 %v3582
        %v3894 = vunpack.c.h.b16 %v3582
        %v3895 = vunpack.c.l.b16 %v3583
        %v3896 = vunpack.c.h.b16 %v3583
        %v3897 = vunpack.c.l.b16 %v3584
        %v3898 = vunpack.c.h.b16 %v3584
        %v3899 = vunpack.c.l.b16 %v3585
        %v3900 = vunpack.c.h.b16 %v3585
        %v3901 = vunpack.c.l.b16 %v3586
        %v3902 = vunpack.c.h.b16 %v3586
        %v3903 = vunpack.c.l.b16 %v3587
        %v3904 = vunpack.c.h.b16 %v3587
        %v3905 = vunpack.c.l.b16 %v3588
        %v3906 = vunpack.c.h.b16 %v3588
        %v3907 = vunpack.c.l.b16 %v3589
        %v3908 = vunpack.c.h.b16 %v3589
        %v3909 = vunpack.c.l.b16 %v3590
        %v3910 = vunpack.c.h.b16 %v3590
        %v3911 = vunpack.c.l.b16 %v3591
        %v3912 = vunpack.c.h.b16 %v3591
        %v3913 = vunpack.c.l.b16 %v3592
        %v3914 = vunpack.c.h.b16 %v3592
        %v3915 = vunpack.c.l.b16 %v3593
        %v3916 = vunpack.c.h.b16 %v3593
        %v3917 = vunpack.c.l.b16 %v3594
        %v3918 = vunpack.c.h.b16 %v3594
        %v3919 = vunpack.c.l.b16 %v3595
        %v3920 = vunpack.c.h.b16 %v3595
        %v3921 = vunpack.c.l.b16 %v3596
        %v3922 = vunpack.c.h.b16 %v3596
        %v3923 = vunpack.c.l.b16 %v3597
        %v3924 = vunpack.c.h.b16 %v3597
        %v3925 = vunpack.c.l.b16 %v3598
        %v3926 = vunpack.c.h.b16 %v3598
        %v3927 = vunpack.c.l.b16 %v3599
        %v3928 = vunpack.c.h.b16 %v3599
        %v3929 = vunpack.c.l.b16 %v3600
        %v3930 = vunpack.c.h.b16 %v3600
        %v3931 = vunpack.c.l.b16 %v3601
        %v3932 = vunpack.c.h.b16 %v3601
        %v3933 = vunpack.c.l.b16 %v3602
        %v3934 = vunpack.c.h.b16 %v3602
        %v3935 = vunpack.c.l.b16 %v3603
        %v3936 = vunpack.c.h.b16 %v3603
        %v3937 = vunpack.c.l.b16 %v3604
        %v3938 = vunpack.c.h.b16 %v3604
        %v3939 = vunpack.c.l.b16 %v3605
        %v3940 = vunpack.c.h.b16 %v3605
        %v3941 = vunpack.c.l.b16 %v3606
        %v3942 = vunpack.c.h.b16 %v3606
        %v3943 = vunpack.c.l.b16 %v3607
        %v3944 = vunpack.c.h.b16 %v3607
        %v3945 = vunpack.c.l.b16 %v3608
        %v3946 = vunpack.c.h.b16 %v3608
        %v3947 = vunpack.c.l.b16 %v3609
        %v3948 = vunpack.c.h.b16 %v3609
        %v3949 = vunpack.c.l.b16 %v3610
        %v3950 = vunpack.c.h.b16 %v3610
        %v3951 = vunpack.c.l.b16 %v3611
        %v3952 = vunpack.c.h.b16 %v3611
        %v3953 = vunpack.c.l.b16 %v3612
        %v3954 = vunpack.c.h.b16 %v3612
        %v3955 = vunpack.c.l.b16 %v3613
        %v3956 = vunpack.c.h.b16 %v3613
        %v3957 = vunpack.c.l.b16 %v3614
        %v3958 = vunpack.c.h.b16 %v3614
        %v3959 = vunpack.c.l.b16 %v3615
        %v3960 = vunpack.c.h.b16 %v3615
        %v3961 = vunpack.c.l.b16 %v3616
        %v3962 = vunpack.c.h.b16 %v3616
        %v3963 = vunpack.c.l.b16 %v3617
        %v3964 = vunpack.c.h.b16 %v3617
        %v3965 = vunpack.c.l.b16 %v3618
        %v3966 = vunpack.c.h.b16 %v3618
        %v3967 = vpack.c.b16 %v3745, %v3743
        %v3968 = vpack.c.b16 %v3746, %v3744
        %v3969 = vpack.c.b16 %v3749, %v3747
        %v3970 = vpack.c.b16 %v3750, %v3748
        %v3971 = vpack.c.b16 %v3753, %v3751
        %v3972 = vpack.c.b16 %v3754, %v3752
        %v3973 = vpack.c.b16 %v3757, %v3755
        %v3974 = vpack.c.b16 %v3758, %v3756
        %v3975 = vpack.c.b16 %v3761, %v3759
        %v3976 = vpack.c.b16 %v3762, %v3760
        %v3977 = vpack.c.b16 %v3765, %v3763
        %v3978 = vpack.c.b16 %v3766, %v3764
        %v3979 = vpack.c.b16 %v3769, %v3767
        %v3980 = vpack.c.b16 %v3770, %v3768
        %v3981 = vpack.c.b16 %v3773, %v3771
        %v3982 = vpack.c.b16 %v3774, %v3772
        %v3983 = vpack.c.b16 %v3777, %v3775
        %v3984 = vpack.c.b16 %v3778, %v3776
        %v3985 = vpack.c.b16 %v3781, %v3779
        %v3986 = vpack.c.b16 %v3782, %v3780
        %v3987 = vpack.c.b16 %v3785, %v3783
        %v3988 = vpack.c.b16 %v3786, %v3784
        %v3989 = vpack.c.b16 %v3789, %v3787
        %v3990 = vpack.c.b16 %v3790, %v3788
        %v3991 = vpack.c.b16 %v3793, %v3791
        %v3992 = vpack.c.b16 %v3794, %v3792
        %v3993 = vpack.c.b16 %v3797, %v3795
        %v3994 = vpack.c.b16 %v3798, %v3796
        %v3995 = vpack.c.b16 %v3801, %v3799
        %v3996 = vpack.c.b16 %v3802, %v3800
        %v3997 = vpack.c.b16 %v3805, %v3803
        %v3998 = vpack.c.b16 %v3806, %v3804
        %v3999 = vpack.c.b16 %v3809, %v3807
        %v4000 = vpack.c.b16 %v3810, %v3808
        %v4001 = vpack.c.b16 %v3813, %v3811
        %v4002 = vpack.c.b16 %v3814, %v3812
        %v4003 = vpack.c.b16 %v3817, %v3815
        %v4004 = vpack.c.b16 %v3818, %v3816
        %v4005 = vpack.c.b16 %v3821, %v3819
        %v4006 = vpack.c.b16 %v3822, %v3820
        %v4007 = vpack.c.b16 %v3825, %v3823
        %v4008 = vpack.c.b16 %v3826, %v3824
        %v4009 = vpack.c.b16 %v3829, %v3827
        %v4010 = vpack.c.b16 %v3830, %v3828
        %v4011 = vpack.c.b16 %v3833, %v3831
        %v4012 = vpack.c.b16 %v3834, %v3832
        %v4013 = vpack.c.b16 %v3837, %v3835
        %v4014 = vpack.c.b16 %v3838, %v3836
        %v4015 = vpack.c.b16 %v3841, %v3839
        %v4016 = vpack.c.b16 %v3842, %v3840
        %v4017 = vpack.c.b16 %v3845, %v3843
        %v4018 = vpack.c.b16 %v3846, %v3844
        %v4019 = vpack.c.b16 %v3849, %v3847
        %v4020 = vpack.c.b16 %v3850, %v3848
        %v4021 = vpack.c.b16 %v3853, %v3851
        %v4022 = vpack.c.b16 %v3854, %v3852
        %v4023 = vpack.c.b16 %v3857, %v3855
        %v4024 = vpack.c.b16 %v3858, %v3856
        %v4025 = vpack.c.b16 %v3861, %v3859
        %v4026 = vpack.c.b16 %v3862, %v3860
        %v4027 = vpack.c.b16 %v3865, %v3863
        %v4028 = vpack.c.b16 %v3866, %v3864
        %v4029 = vpack.c.b16 %v3869, %v3867
        %v4030 = vpack.c.b16 %v3870, %v3868
        %v4031 = vpack.c.b16 %v3873, %v3871
        %v4032 = vpack.c.b16 %v3874, %v3872
        %v4033 = vpack.c.b16 %v3877, %v3875
        %v4034 = vpack.c.b16 %v3878, %v3876
        %v4035 = vpack.c.b16 %v3881, %v3879
        %v4036 = vpack.c.b16 %v3882, %v3880
        %v4037 = vpack.c.b16 %v3885, %v3883
        %v4038 = vpack.c.b16 %v3886, %v3884
        %v4039 = vpack.c.b16 %v3889, %v3887
        %v4040 = vpack.c.b16 %v3890, %v3888
        %v4041 = vpack.c.b16 %v3893, %v3891
        %v4042 = vpack.c.b16 %v3894, %v3892
        %v4043 = vpack.c.b16 %v3897, %v3895
        %v4044 = vpack.c.b16 %v3898, %v3896
        %v4045 = vpack.c.b16 %v3901, %v3899
        %v4046 = vpack.c.b16 %v3902, %v3900
        %v4047 = vpack.c.b16 %v3905, %v3903
        %v4048 = vpack.c.b16 %v3906, %v3904
        %v4049 = vpack.c.b16 %v3909, %v3907
        %v4050 = vpack.c.b16 %v3910, %v3908
        %v4051 = vpack.c.b16 %v3913, %v3911
        %v4052 = vpack.c.b16 %v3914, %v3912
        %v4053 = vpack.c.b16 %v3917, %v3915
        %v4054 = vpack.c.b16 %v3918, %v3916
        %v4055 = vpack.c.b16 %v3921, %v3919
        %v4056 = vpack.c.b16 %v3922, %v3920
        %v4057 = vpack.c.b16 %v3925, %v3923
        %v4058 = vpack.c.b16 %v3926, %v3924
        %v4059 = vpack.c.b16 %v3929, %v3927
        %v4060 = vpack.c.b16 %v3930, %v3928
        %v4061 = vpack.c.b16 %v3933, %v3931
        %v4062 = vpack.c.b16 %v3934, %v3932
        %v4063 = vpack.c.b16 %v3937, %v3935
        %v4064 = vpack.c.b16 %v3938, %v3936
        %v4065 = vpack.c.b16 %v3941, %v3939
        %v4066 = vpack.c.b16 %v3942, %v3940
        %v4067 = vpack.c.b16 %v3945, %v3943
        %v4068 = vpack.c.b16 %v3946, %v3944
        %v4069 = vpack.c.b16 %v3949, %v3947
        %v4070 = vpack.c.b16 %v3950, %v3948
        %v4071 = vpack.c.b16 %v3953, %v3951
        %v4072 = vpack.c.b16 %v3954, %v3952
        %v4073 = vpack.c.b16 %v3957, %v3955
        %v4074 = vpack.c.b16 %v3958, %v3956
        %v4075 = vpack.c.b16 %v3961, %v3959
        %v4076 = vpack.c.b16 %v3962, %v3960
        %v4077 = vpack.c.b16 %v3965, %v3963
        %v4078 = vpack.c.b16 %v3966, %v3964
        %4191 = vmatprep.subr.bf16.mxu0 %v3968
        %4192 = vmatpush1.bf16.msra.mxu0 %v3967
        %4193 = vmatprep.subr.bf16.mxu0 %v3970
        %4194 = vmatpush1.bf16.msra.mxu0 %v3969
        %4195 = vmatprep.subr.bf16.mxu0 %v3972
        %4196 = vmatpush1.bf16.msra.mxu0 %v3971
        %4197 = vmatprep.subr.bf16.mxu0 %v3974
        %4198 = vmatpush1.bf16.msra.mxu0 %v3973
        %4199 = vmatprep.subr.bf16.mxu0 %v3976
        %4200 = vmatpush1.bf16.msra.mxu0 %v3975
        %4201 = vmatprep.subr.bf16.mxu0 %v3978
        %4202 = vmatpush1.bf16.msra.mxu0 %v3977
        %4203 = vmatprep.subr.bf16.mxu0 %v3980
        %4204 = vmatpush1.bf16.msra.mxu0 %v3979
        %4205 = vmatprep.subr.bf16.mxu0 %v3982
        %4206 = vmatpush1.bf16.msra.mxu0 %v3981
        %4207 = vmatprep.subr.bf16.mxu0 %v3984
        %4208 = vmatpush1.bf16.msra.mxu0 %v3983
        %4209 = vmatprep.subr.bf16.mxu0 %v3986
        %4210 = vmatpush1.bf16.msra.mxu0 %v3985
        %4211 = vmatprep.subr.bf16.mxu0 %v3988
        %4212 = vmatpush1.bf16.msra.mxu0 %v3987
        %4213 = vmatprep.subr.bf16.mxu0 %v3990
        %4214 = vmatpush1.bf16.msra.mxu0 %v3989
        %4215 = vmatprep.subr.bf16.mxu0 %v3992
        %4216 = vmatpush1.bf16.msra.mxu0 %v3991
        %4217 = vmatprep.subr.bf16.mxu0 %v3994
        %4218 = vmatpush1.bf16.msra.mxu0 %v3993
        %4219 = vmatprep.subr.bf16.mxu0 %v3996
        %4220 = vmatpush1.bf16.msra.mxu0 %v3995
        %4221 = vmatprep.subr.bf16.mxu0 %v3998
        %4222 = vmatpush1.bf16.msra.mxu0 %v3997
        %4223 = vmatprep.mubr.bf16.mxu0 %v3494
        %4224 = vmatmul.mubr.bf16.gmra.mrb[0].mxu0 %v3493
        %v4225 = vpop.f32.mrb[0].mxu0
        %v4226 = vadd.f32 %v3624, %v4225
        %v4227 = vpop.f32.mrb[0].mxu0
        %v4228 = vadd.f32 %v3628, %v4227
        %v4229 = vpop.f32.mrb[0].mxu0
        %v4230 = vadd.f32 %v3624, %v4229
        %v4231 = vpop.f32.mrb[0].mxu0
        %v4232 = vadd.f32 %v3628, %v4231
        %4233 = vmatprep.mubr.bf16.mxu0 %v3501
        %4234 = vmatmul.mubr.bf16.gmra.mrb[0].mxu0 %v3500
        %v4235 = vpop.f32.mrb[0].mxu0
        %v4236 = vadd.f32 %v3624, %v4235
        %v4237 = vpop.f32.mrb[0].mxu0
        %v4238 = vadd.f32 %v3628, %v4237
        %v4239 = vpop.f32.mrb[0].mxu0
        %v4240 = vadd.f32 %v3624, %v4239
        %v4241 = vpop.f32.mrb[0].mxu0
        %v4242 = vadd.f32 %v3628, %v4241
        %4243 = vdwg.mxu0
        %4244 = vmatprep.subr.bf16.mxu0 %v4000
        %4245 = vmatpush1.bf16.msra.mxu0 %v3999
        %4246 = vmatprep.subr.bf16.mxu0 %v4002
        %4247 = vmatpush1.bf16.msra.mxu0 %v4001
        %4248 = vmatprep.subr.bf16.mxu0 %v4004
        %4249 = vmatpush1.bf16.msra.mxu0 %v4003
        %4250 = vmatprep.subr.bf16.mxu0 %v4006
        %4251 = vmatpush1.bf16.msra.mxu0 %v4005
        %4252 = vmatprep.subr.bf16.mxu0 %v4008
        %4253 = vmatpush1.bf16.msra.mxu0 %v4007
        %4254 = vmatprep.subr.bf16.mxu0 %v4010
        %4255 = vmatpush1.bf16.msra.mxu0 %v4009
        %4256 = vmatprep.subr.bf16.mxu0 %v4012
        %4257 = vmatpush1.bf16.msra.mxu0 %v4011
        %4258 = vmatprep.subr.bf16.mxu0 %v4014
        %4259 = vmatpush1.bf16.msra.mxu0 %v4013
        %4260 = vmatprep.subr.bf16.mxu0 %v4016
        %4261 = vmatpush1.bf16.msra.mxu0 %v4015
        %4262 = vmatprep.subr.bf16.mxu0 %v4018
        %4263 = vmatpush1.bf16.msra.mxu0 %v4017
        %4264 = vmatprep.subr.bf16.mxu0 %v4020
        %4265 = vmatpush1.bf16.msra.mxu0 %v4019
        %4266 = vmatprep.subr.bf16.mxu0 %v4022
        %4267 = vmatpush1.bf16.msra.mxu0 %v4021
        %4268 = vmatprep.subr.bf16.mxu0 %v4024
        %4269 = vmatpush1.bf16.msra.mxu0 %v4023
        %4270 = vmatprep.subr.bf16.mxu0 %v4026
        %4271 = vmatpush1.bf16.msra.mxu0 %v4025
        %4272 = vmatprep.subr.bf16.mxu0 %v4028
        %4273 = vmatpush1.bf16.msra.mxu0 %v4027
        %4274 = vmatprep.subr.bf16.mxu0 %v4030
        %4275 = vmatpush1.bf16.msra.mxu0 %v4029
        %4276 = vmatprep.mubr.bf16.mxu0 %v3496
        %4277 = vmatmul.mubr.bf16.gmra.mrb[0].mxu0 %v3495
        %v4278 = vpop.f32.mrb[0].mxu0
        %v4279 = vadd.f32 %v4226, %v4278
        %v4280 = vpop.f32.mrb[0].mxu0
        %v4281 = vadd.f32 %v4228, %v4280
        %v4282 = vpop.f32.mrb[0].mxu0
        %v4283 = vadd.f32 %v4230, %v4282
        %v4284 = vpop.f32.mrb[0].mxu0
        %v4285 = vadd.f32 %v4232, %v4284
        %4286 = vmatprep.mubr.bf16.mxu0 %v3503
        %4287 = vmatmul.mubr.bf16.gmra.mrb[0].mxu0 %v3502
        %v4288 = vpop.f32.mrb[0].mxu0
        %v4289 = vadd.f32 %v4236, %v4288
        %v4290 = vpop.f32.mrb[0].mxu0
        %v4291 = vadd.f32 %v4238, %v4290
        %v4292 = vpop.f32.mrb[0].mxu0
        %v4293 = vadd.f32 %v4240, %v4292
        %v4294 = vpop.f32.mrb[0].mxu0
        %v4295 = vadd.f32 %v4242, %v4294
        %4296 = vdwg.mxu0
        %4297 = vmatprep.subr.bf16.mxu0 %v4032
        %4298 = vmatpush1.bf16.msra.mxu0 %v4031
        %4299 = vmatprep.subr.bf16.mxu0 %v4034
        %4300 = vmatpush1.bf16.msra.mxu0 %v4033
        %4301 = vmatprep.subr.bf16.mxu0 %v4036
        %4302 = vmatpush1.bf16.msra.mxu0 %v4035
        %4303 = vmatprep.subr.bf16.mxu0 %v4038
        %4304 = vmatpush1.bf16.msra.mxu0 %v4037
        %4305 = vmatprep.subr.bf16.mxu0 %v4040
        %4306 = vmatpush1.bf16.msra.mxu0 %v4039
        %4307 = vmatprep.subr.bf16.mxu0 %v4042
        %4308 = vmatpush1.bf16.msra.mxu0 %v4041
        %4309 = vmatprep.subr.bf16.mxu0 %v4044
        %4310 = vmatpush1.bf16.msra.mxu0 %v4043
        %4311 = vmatprep.subr.bf16.mxu0 %v4046
        %4312 = vmatpush1.bf16.msra.mxu0 %v4045
        %4313 = vmatprep.subr.bf16.mxu0 %v4048
        %4314 = vmatpush1.bf16.msra.mxu0 %v4047
        %4315 = vmatprep.subr.bf16.mxu0 %v4050
        %4316 = vmatpush1.bf16.msra.mxu0 %v4049
        %4317 = vmatprep.subr.bf16.mxu0 %v4052
        %4318 = vmatpush1.bf16.msra.mxu0 %v4051
        %4319 = vmatprep.subr.bf16.mxu0 %v4054
        %4320 = vmatpush1.bf16.msra.mxu0 %v4053
        %4321 = vmatprep.subr.bf16.mxu0 %v4056
        %4322 = vmatpush1.bf16.msra.mxu0 %v4055
        %4323 = vmatprep.subr.bf16.mxu0 %v4058
        %4324 = vmatpush1.bf16.msra.mxu0 %v4057
        %4325 = vmatprep.subr.bf16.mxu0 %v4060
        %4326 = vmatpush1.bf16.msra.mxu0 %v4059
        %4327 = vmatprep.subr.bf16.mxu0 %v4062
        %4328 = vmatpush1.bf16.msra.mxu0 %v4061
        %4329 = vmatprep.mubr.bf16.mxu0 %v3498
        %4330 = vmatmul.mubr.bf16.gmra.mrb[0].mxu0 %v3497
        %v4331 = vpop.f32.mrb[0].mxu0
        %v4332 = vadd.f32 %v4279, %v4331
        %v4333 = vpop.f32.mrb[0].mxu0
        %v4334 = vadd.f32 %v4281, %v4333
        %v4335 = vpop.f32.mrb[0].mxu0
        %v4336 = vadd.f32 %v4283, %v4335
        %v4337 = vpop.f32.mrb[0].mxu0
        %v4338 = vadd.f32 %v4285, %v4337
        %4339 = vmatprep.mubr.bf16.mxu0 %v3505
        %4340 = vmatmul.mubr.bf16.gmra.mrb[0].mxu0 %v3504
        %v4341 = vpop.f32.mrb[0].mxu0
        %v4342 = vadd.f32 %v4289, %v4341
        %v4343 = vpop.f32.mrb[0].mxu0
        %v4344 = vadd.f32 %v4291, %v4343
        %v4345 = vpop.f32.mrb[0].mxu0
        %v4346 = vadd.f32 %v4293, %v4345
        %v4347 = vpop.f32.mrb[0].mxu0
        %v4348 = vadd.f32 %v4295, %v4347
        %4349 = vdwg.mxu0
        %4350 = vmatprep.subr.bf16.mxu0 %v4064
        %4351 = vmatpush1.bf16.msra.mxu0 %v4063
        %4352 = vmatprep.subr.bf16.mxu0 %v4066
        %4353 = vmatpush1.bf16.msra.mxu0 %v4065
        %4354 = vmatprep.subr.bf16.mxu0 %v4068
        %4355 = vmatpush1.bf16.msra.mxu0 %v4067
        %4356 = vmatprep.subr.bf16.mxu0 %v4070
        %4357 = vmatpush1.bf16.msra.mxu0 %v4069
        %4358 = vmatprep.subr.bf16.mxu0 %v4072
        %4359 = vmatpush1.bf16.msra.mxu0 %v4071
        %4360 = vmatprep.subr.bf16.mxu0 %v4074
        %4361 = vmatpush1.bf16.msra.mxu0 %v4073
        %4362 = vmatprep.subr.bf16.mxu0 %v4076
        %4363 = vmatpush1.bf16.msra.mxu0 %v4075
        %4364 = vmatprep.subr.bf16.mxu0 %v4078
        %4365 = vmatpush1.bf16.msra.mxu0 %v4077
        %4366 = vmatprep.subr.bf16.mxu0 0
        %4367 = vmatpush1.bf16.msra.mxu0 0
        %4368 = vmatprep.subr.bf16.mxu0 0
        %4369 = vmatpush1.bf16.msra.mxu0 0
        %4370 = vmatprep.subr.bf16.mxu0 0
        %4371 = vmatpush1.bf16.msra.mxu0 0
        %4372 = vmatprep.subr.bf16.mxu0 0
        %4373 = vmatpush1.bf16.msra.mxu0 0
        %4374 = vmatprep.subr.bf16.mxu0 0
        %4375 = vmatpush1.bf16.msra.mxu0 0
        %4376 = vmatprep.subr.bf16.mxu0 0
        %4377 = vmatpush1.bf16.msra.mxu0 0
        %4378 = vmatprep.subr.bf16.mxu0 0
        %4379 = vmatpush1.bf16.msra.mxu0 0
        %4380 = vmatprep.subr.bf16.mxu0 0
        %4381 = vmatpush1.bf16.msra.mxu0 0
        %4382 = vmatprep.mubr.bf16.mxu0 0
        %4383 = vmatmul.mubr.bf16.gmra.mrb[0].mxu0 %v3499
        %v4384 = vpop.f32.mrb[0].mxu0
        %v4385 = vadd.f32 %v4332, %v4384
        %v4386 = vpop.f32.mrb[0].mxu0
        %v4387 = vadd.f32 %v4334, %v4386
        %v4388 = vpop.f32.mrb[0].mxu0
        %v4389 = vadd.f32 %v4336, %v4388
        %v4390 = vpop.f32.mrb[0].mxu0
        %v4391 = vadd.f32 %v4338, %v4390
        %4392 = vmatprep.mubr.bf16.mxu0 0
        %4393 = vmatmul.mubr.bf16.gmra.mrb[0].mxu0 %v3506
        %v4394 = vpop.f32.mrb[0].mxu0
        %v4395 = vadd.f32 %v4342, %v4394
        %v4396 = vpop.f32.mrb[0].mxu0
        %v4397 = vadd.f32 %v4344, %v4396
        %v4398 = vpop.f32.mrb[0].mxu0
        %v4399 = vadd.f32 %v4346, %v4398
        %v4400 = vpop.f32.mrb[0].mxu0
        %v4401 = vadd.f32 %v4348, %v4400
        %4402 = vdwg.mxu0
        %v4403 = vmax.f32 %v4385, 0.0
        %v4404 = vmax.f32 %v4387, 0.0
        %v4405 = vmax.f32 %v4389, 0.0
        %v4406 = vmax.f32 %v4391, 0.0
        %v4407 = vmax.f32 %v4395, 0.0
        %v4408 = vmax.f32 %v4397, 0.0
        %v4409 = vmax.f32 %v4399, 0.0
        %v4410 = vmax.f32 %v4401, 0.0
        %v4411 = vpack.c.bf16 %v4405, %v4403
        %v4412 = vpack.c.bf16 %v4406, %v4404
        %v4413 = vpack.c.bf16 %v4409, %v4407
        %v4414 = vpack.c.bf16 %v4410, %v4408
        %v4415 = vld [vmem:[#allocation9] sm:$0xf]
        %v4416 = vld [vmem:[#allocation9 + $0x4] sm:$0xf]
        %v4417 = vld [vmem:[#allocation9 + $0x8] sm:$0xf]
        %v4418 = vld [vmem:[#allocation9 + $0xc] sm:$0xf]
        %v4419 = vld [vmem:[#allocation9 + $0x10] sm:$0xf]
        %v4420 = vld [vmem:[#allocation9 + $0x14] sm:$0xf]
        %v4421 = vld [vmem:[#allocation9 + $0x18] sm:$0xf]
        %v4422 = vld [vmem:[#allocation9 + $0x1c] sm:$0xf]
        %v4423 = vld [vmem:[#allocation9 + $0x20] sm:$0xf]
        %v4424 = vld [vmem:[#allocation9 + $0x24] sm:$0xf]
        %v4425 = vld [vmem:[#allocation9 + $0x28] sm:$0xf]
        %v4426 = vld [vmem:[#allocation9 + $0x2c] sm:$0xf]
        %v4427 = vld [vmem:[#allocation9 + $0x30] sm:$0xf]
        %v4428 = vld [vmem:[#allocation9 + $0x34] sm:$0xf]
        %v4429 = vld [vmem:[#allocation9 + $0x38] sm:$0xf]
        %v4430 = vld [vmem:[#allocation9 + $0x3c] sm:$0xf]
        %v4431 = vld [vmem:[#allocation9 + $0x40] sm:$0xf]
        %v4432 = vld [vmem:[#allocation9 + $0x44] sm:$0xf]
        %v4433 = vld [vmem:[#allocation9 + $0x48] sm:$0xf]
        %v4434 = vld [vmem:[#allocation9 + $0x4c] sm:$0xf]
        %v4435 = vld [vmem:[#allocation9 + $0x50] sm:$0xf]
        %v4436 = vld [vmem:[#allocation9 + $0x54] sm:$0xf]
        %v4437 = vld [vmem:[#allocation9 + $0x58] sm:$0xf]
        %v4438 = vld [vmem:[#allocation9 + $0x5c] sm:$0xf]
        %v4439 = vld [vmem:[#allocation9 + $0x60] sm:$0xf]
        %v4440 = vld [vmem:[#allocation9 + $0x64] sm:$0xf]
        %v4441 = vld [vmem:[#allocation9 + $0x68] sm:$0xf]
        %v4442 = vld [vmem:[#allocation9 + $0x6c] sm:$0xf]
        %v4443 = vld [vmem:[#allocation9 + $0x70] sm:$0xf]
        %v4444 = vld [vmem:[#allocation9 + $0x74] sm:$0xf]
        %v4445 = vld [vmem:[#allocation9 + $0x78] sm:$0xf]
        %v4446 = vld [vmem:[#allocation9 + $0x7c] sm:$0xf]
        %v4447 = vld [vmem:[#allocation10] sm:$0x1]
        %v4449 = vlaneseq
        %v4450 = vshrl.u32 %v4449, 7
        %v4451 = vsub.s32 0, %v4450
        %v4452 = vrot.slane %v4447, %v4451
        %v4486 = vunpack.c.l.b16 %v4415
        %v4487 = vunpack.c.l.b16 %v4416
        %v4488 = vunpack.c.l.b16 %v4417
        %v4489 = vunpack.c.l.b16 %v4418
        %v4490 = vunpack.c.l.b16 %v4419
        %v4491 = vunpack.c.l.b16 %v4420
        %v4492 = vunpack.c.l.b16 %v4421
        %v4493 = vunpack.c.l.b16 %v4422
        %v4494 = vunpack.c.l.b16 %v4423
        %v4495 = vunpack.c.l.b16 %v4424
        %v4496 = vunpack.c.l.b16 %v4425
        %v4497 = vunpack.c.l.b16 %v4426
        %v4498 = vunpack.c.l.b16 %v4427
        %v4499 = vunpack.c.l.b16 %v4428
        %v4500 = vunpack.c.l.b16 %v4429
        %v4501 = vunpack.c.l.b16 %v4430
        %v4502 = vunpack.c.l.b16 %v4431
        %v4503 = vunpack.c.l.b16 %v4432
        %v4504 = vunpack.c.l.b16 %v4433
        %v4505 = vunpack.c.l.b16 %v4434
        %v4506 = vunpack.c.l.b16 %v4435
        %v4507 = vunpack.c.l.b16 %v4436
        %v4508 = vunpack.c.l.b16 %v4437
        %v4509 = vunpack.c.l.b16 %v4438
        %v4510 = vunpack.c.l.b16 %v4439
        %v4511 = vunpack.c.l.b16 %v4440
        %v4512 = vunpack.c.l.b16 %v4441
        %v4513 = vunpack.c.l.b16 %v4442
        %v4514 = vunpack.c.l.b16 %v4443
        %v4515 = vunpack.c.l.b16 %v4444
        %v4516 = vunpack.c.l.b16 %v4445
        %v4517 = vunpack.c.l.b16 %v4446
        %v4518 = vpack.c.b16 %v4487, %v4486
        %v4519 = vpack.c.b16 %v4489, %v4488
        %v4520 = vpack.c.b16 %v4491, %v4490
        %v4521 = vpack.c.b16 %v4493, %v4492
        %v4522 = vpack.c.b16 %v4495, %v4494
        %v4523 = vpack.c.b16 %v4497, %v4496
        %v4524 = vpack.c.b16 %v4499, %v4498
        %v4525 = vpack.c.b16 %v4501, %v4500
        %v4526 = vpack.c.b16 %v4503, %v4502
        %v4527 = vpack.c.b16 %v4505, %v4504
        %v4528 = vpack.c.b16 %v4507, %v4506
        %v4529 = vpack.c.b16 %v4509, %v4508
        %v4530 = vpack.c.b16 %v4511, %v4510
        %v4531 = vpack.c.b16 %v4513, %v4512
        %v4532 = vpack.c.b16 %v4515, %v4514
        %v4533 = vpack.c.b16 %v4517, %v4516
        %4550 = vmatprep.subr.bf16.mxu0 0
        %4551 = vmatpush1.bf16.msra.mxu0 %v4518
        %4552 = vmatprep.subr.bf16.mxu0 0
        %4553 = vmatpush1.bf16.msra.mxu0 %v4519
        %4554 = vmatprep.subr.bf16.mxu0 0
        %4555 = vmatpush1.bf16.msra.mxu0 %v4520
        %4556 = vmatprep.subr.bf16.mxu0 0
        %4557 = vmatpush1.bf16.msra.mxu0 %v4521
        %4558 = vmatprep.subr.bf16.mxu0 0
        %4559 = vmatpush1.bf16.msra.mxu0 %v4522
        %4560 = vmatprep.subr.bf16.mxu0 0
        %4561 = vmatpush1.bf16.msra.mxu0 %v4523
        %4562 = vmatprep.subr.bf16.mxu0 0
        %4563 = vmatpush1.bf16.msra.mxu0 %v4524
        %4564 = vmatprep.subr.bf16.mxu0 0
        %4565 = vmatpush1.bf16.msra.mxu0 %v4525
        %4566 = vmatprep.subr.bf16.mxu0 0
        %4567 = vmatpush1.bf16.msra.mxu0 %v4526
        %4568 = vmatprep.subr.bf16.mxu0 0
        %4569 = vmatpush1.bf16.msra.mxu0 %v4527
        %4570 = vmatprep.subr.bf16.mxu0 0
        %4571 = vmatpush1.bf16.msra.mxu0 %v4528
        %4572 = vmatprep.subr.bf16.mxu0 0
        %4573 = vmatpush1.bf16.msra.mxu0 %v4529
        %4574 = vmatprep.subr.bf16.mxu0 0
        %4575 = vmatpush1.bf16.msra.mxu0 %v4530
        %4576 = vmatprep.subr.bf16.mxu0 0
        %4577 = vmatpush1.bf16.msra.mxu0 %v4531
        %4578 = vmatprep.subr.bf16.mxu0 0
        %4579 = vmatpush1.bf16.msra.mxu0 %v4532
        %4580 = vmatprep.subr.bf16.mxu0 0
        %4581 = vmatpush1.bf16.msra.mxu0 %v4533
        %4582 = vmatprep.mubr.bf16.mxu0 %v4412
        %4583 = vmatmul.mubr.bf16.gmra.mrb[0].mxu0 %v4411
        %v4584 = vpop.f32.mrb[0].mxu0
        %v4585 = vadd.f32 %v4452, %v4584
        %v4586 = vpop.f32.mrb[0].mxu0
        %v4587 = vpop.f32.mrb[0].mxu0
        %v4588 = vadd.f32 %v4452, %v4587
        %v4589 = vpop.f32.mrb[0].mxu0
        %4590 = vmatprep.mubr.bf16.mxu0 %v4414
        %4591 = vmatmul.mubr.bf16.gmra.mrb[0].mxu0 %v4413
        %v4592 = vpop.f32.mrb[0].mxu0
        %v4593 = vadd.f32 %v4452, %v4592
        %v4594 = vpop.f32.mrb[0].mxu0
        %v4595 = vpop.f32.mrb[0].mxu0
        %v4596 = vadd.f32 %v4452, %v4595
        %v4597 = vpop.f32.mrb[0].mxu0
        %4598 = vdwg.mxu0
        %4599 = vst [vmem:[%s367] sm:$0xff] %v4585
        %4600 = vst [vmem:[%s367 + $0x8] sm:$0xff] %v4588
        %4601 = vst [vmem:[%s367 + $0x10] sm:$0xff] %v4593
        %4602 = vst [vmem:[%s367 + $0x18] sm:$0xff] %v4596
        %s4603 = sand.u32 %s182, 1
        %s4604 = sand.u32 %s182, 1
        %s4605 = smul.addr %s4604, 32
        %s4606 = scalar_lea.vmem [#allocation12], %s4605
        // Predicated region
        $region73: #{net_forward.1} parent=47 // pred_check
          %p4607 = pneg %p192
        $region74: #{net_forward.1} parent=47 // pred_check_branch
          %4609 = sbr.rel (%p4607) target = $region76
        $region75: #{net_forward.1} parent=47 // pred_region
          %s4610 = smul.u32 4, %s22
          %s4611 = ssub.s32 6, %s4610
          %p4612 = scmp.lt.s32.totalorder %s4611, 4
          %s4613 = scalar_select %p4612, %s4611, 4
          %s4614 = smul.u32 128, %s4613
          %p4615 = scmp.ne.s32.totalorder 0, %s4614
          %s4616 = smul.addr %s4610, 8
          %s4617 = scalar_lea.vmem %s7, %s4616
          // Predicated region
          $region77: #{net_forward.1} parent=75 // pred_check
            %p4618 = pneg %p4615
          $region78: #{net_forward.1} parent=75 // pred_check_branch
            %4620 = sbr.rel (%p4618) target = $region80
          $region79: #{net_forward.1} parent=75 // pred_region
            // Predicated region
            $region81: #{net_forward.1} parent=79 // pred_check
              _
            $region82: #{net_forward.1} parent=79 // pred_check_branch
              %4622 = sbr.rel (0) target = $region84
            $region83: #{net_forward.1} parent=79 // pred_region
              // Predicated region
              $region103: #{net_forward.1} parent=83 // pred_check
                _
              $region104: #{net_forward.1} parent=83 // pred_check_branch
                %4677 = sbr.rel (0) target = $region106
              $region105: #{net_forward.1} parent=83 // pred_region
                %s4678 = sshrl.u32 %s4613, 2
                // While loop
                $region107: #{net_forward.1} parent=105 // loop_pre_header
                  _
                $region108: #{net_forward.1} parent=105 // loop_header
                  %s4680 = sphi 0, %s4682
                  %p4681 = scmp.ge.s32.totalorder %s4680, %s4678
                  %s4685 = sphi 0, %s4698
                  %s4686 = sphi %s4606, %s4701
                  %s4687 = sphi %s4617, %s4702
                $region109: #{net_forward.1} parent=105 // loop_header_branch
                  %4684 = sbr.rel (%p4681) target = $region113
                $region110: #{net_forward.1} parent=105 // loop_body
                  %v4688 = vld [vmem:[%s4686] sm:$0xff]
                  %4689 = vst [vmem:[%s4687] sm:$0xff] %v4688
                  %v4690 = vld [vmem:[%s4686 + $0x8] sm:$0xff]
                  %4691 = vst [vmem:[%s4687 + $0x8] sm:$0xff] %v4690
                  %v4692 = vld [vmem:[%s4686 + $0x10] sm:$0xff]
                  %4693 = vst [vmem:[%s4687 + $0x10] sm:$0xff] %v4692
                  %v4694 = vld [vmem:[%s4686 + $0x18] sm:$0xff]
                  %4695 = vst [vmem:[%s4687 + $0x18] sm:$0xff] %v4694
                  %s4696 = sadd.s32 1, %s4685
                  %p4697 = scmp.ge.s32.totalorder %s4696, %s4678
                  %s4698 = scalar_select %p4697, 0, %s4696
                  %s4699 = smul.u32 %s4698, 32
                  %s4700 = smul.u32 %s4698, 32
                  %s4701 = scalar_lea.vmem %s4606, %s4699 [#allocation12]
                  %s4702 = scalar_lea.vmem %s4617, %s4700
                $region111: #{net_forward.1} parent=105 // loop_footer
                  %s4682 = sadd.s32 %s4680, 1
                $region112: #{net_forward.1} parent=105 // loop_footer_branch
                  %4679 = sbr.rel target = $region108
                $region113: #{net_forward.1} parent=105 // loop_exit
                  _
                %s4703 = sshrl.u32 %s4613, 2
                %s4704 = sand.u32 %s4613, 3
                %s4705 = smul.u32 %s4703, 4
                %s4706 = smul.u32 8, %s4705
                %s4707 = scalar_lea.vmem %s4606, %s4706 [#allocation12]
                %s4708 = smul.u32 8, %s4705
                %s4709 = scalar_lea.vmem %s4617, %s4708
                // While loop
                $region114: #{net_forward.1} parent=105 // loop_pre_header
                  _
                $region115: #{net_forward.1} parent=105 // loop_header
                  %s4711 = sphi 0, %s4713
                  %p4712 = scmp.ge.s32.totalorder %s4711, %s4704
                  %s4716 = sphi 0, %s4723
                  %s4717 = sphi %s4707, %s4726
                  %s4718 = sphi %s4709, %s4727
                $region116: #{net_forward.1} parent=105 // loop_header_branch
                  %4715 = sbr.rel (%p4712) target = $region120
                $region117: #{net_forward.1} parent=105 // loop_body
                  %v4719 = vld [vmem:[%s4717] sm:$0xff]
                  %4720 = vst [vmem:[%s4718] sm:$0xff] %v4719
                  %s4721 = sadd.s32 1, %s4716
                  %p4722 = scmp.ge.s32.totalorder %s4721, %s4704
                  %s4723 = scalar_select %p4722, 0, %s4721
                  %s4724 = smul.u32 %s4723, 8
                  %s4725 = smul.u32 %s4723, 8
                  %s4726 = scalar_lea.vmem %s4707, %s4724 [#allocation12]
                  %s4727 = scalar_lea.vmem %s4709, %s4725
                $region118: #{net_forward.1} parent=105 // loop_footer
                  %s4713 = sadd.s32 %s4711, 1
                $region119: #{net_forward.1} parent=105 // loop_footer_branch
                  %4710 = sbr.rel target = $region115
                $region120: #{net_forward.1} parent=105 // loop_exit
                  _
              $region106: #{net_forward.1} parent=83 // pred_fallthru
                _
              // Predicated region
              $region121: #{net_forward.1} parent=83 // pred_check
                _
              $region122: #{net_forward.1} parent=83 // pred_check_branch
                %4729 = sbr.rel target = $region124
              $region123: #{net_forward.1} parent=83 // pred_region
                _
              $region124: #{net_forward.1} parent=83 // pred_fallthru
                _
            $region84: #{net_forward.1} parent=79 // pred_fallthru
              _
            // Predicated region
            $region85: #{net_forward.1} parent=79 // pred_check
              _
            $region86: #{net_forward.1} parent=79 // pred_check_branch
              %4624 = sbr.rel target = $region88
            $region87: #{net_forward.1} parent=79 // pred_region
              %s4626 = sshrl.u32 %s4613, 2
              // While loop
              $region89: #{net_forward.1} parent=87 // loop_pre_header
                _
              $region90: #{net_forward.1} parent=87 // loop_header
                %s4628 = sphi 0, %s4630
                %p4629 = scmp.ge.s32.totalorder %s4628, %s4626
                %s4633 = sphi 0, %s4646
                %s4634 = sphi %s4606, %s4649
                %s4635 = sphi %s4617, %s4650
              $region91: #{net_forward.1} parent=87 // loop_header_branch
                %4632 = sbr.rel (%p4629) target = $region95
              $region92: #{net_forward.1} parent=87 // loop_body
                %v4636 = vld [vmem:[%s4634] sm:$0xff]
                %4637 = vst [vmem:[%s4635] sm:$0xff] %v4636
                %v4638 = vld [vmem:[%s4634 + $0x8] sm:$0xff]
                %4639 = vst [vmem:[%s4635 + $0x8] sm:$0xff] %v4638
                %v4640 = vld [vmem:[%s4634 + $0x10] sm:$0xff]
                %4641 = vst [vmem:[%s4635 + $0x10] sm:$0xff] %v4640
                %v4642 = vld [vmem:[%s4634 + $0x18] sm:$0xff]
                %4643 = vst [vmem:[%s4635 + $0x18] sm:$0xff] %v4642
                %s4644 = sadd.s32 1, %s4633
                %p4645 = scmp.ge.s32.totalorder %s4644, %s4626
                %s4646 = scalar_select %p4645, 0, %s4644
                %s4647 = smul.u32 %s4646, 32
                %s4648 = smul.u32 %s4646, 32
                %s4649 = scalar_lea.vmem %s4606, %s4647 [#allocation12]
                %s4650 = scalar_lea.vmem %s4617, %s4648
              $region93: #{net_forward.1} parent=87 // loop_footer
                %s4630 = sadd.s32 %s4628, 1
              $region94: #{net_forward.1} parent=87 // loop_footer_branch
                %4627 = sbr.rel target = $region90
              $region95: #{net_forward.1} parent=87 // loop_exit
                _
              %s4651 = sshrl.u32 %s4613, 2
              %s4652 = sand.u32 %s4613, 3
              %s4653 = smul.u32 %s4651, 4
              %s4654 = smul.u32 8, %s4653
              %s4655 = scalar_lea.vmem %s4606, %s4654 [#allocation12]
              %s4656 = smul.u32 8, %s4653
              %s4657 = scalar_lea.vmem %s4617, %s4656
              // While loop
              $region96: #{net_forward.1} parent=87 // loop_pre_header
                _
              $region97: #{net_forward.1} parent=87 // loop_header
                %s4659 = sphi 0, %s4661
                %p4660 = scmp.ge.s32.totalorder %s4659, %s4652
                %s4664 = sphi 0, %s4671
                %s4665 = sphi %s4655, %s4674
                %s4666 = sphi %s4657, %s4675
              $region98: #{net_forward.1} parent=87 // loop_header_branch
                %4663 = sbr.rel (%p4660) target = $region102
              $region99: #{net_forward.1} parent=87 // loop_body
                %v4667 = vld [vmem:[%s4665] sm:$0xff]
                %4668 = vst [vmem:[%s4666] sm:$0xff] %v4667
                %s4669 = sadd.s32 1, %s4664
                %p4670 = scmp.ge.s32.totalorder %s4669, %s4652
                %s4671 = scalar_select %p4670, 0, %s4669
                %s4672 = smul.u32 %s4671, 8
                %s4673 = smul.u32 %s4671, 8
                %s4674 = scalar_lea.vmem %s4655, %s4672 [#allocation12]
                %s4675 = scalar_lea.vmem %s4657, %s4673
              $region100: #{net_forward.1} parent=87 // loop_footer
                %s4661 = sadd.s32 %s4659, 1
              $region101: #{net_forward.1} parent=87 // loop_footer_branch
                %4658 = sbr.rel target = $region97
              $region102: #{net_forward.1} parent=87 // loop_exit
                _
            $region88: #{net_forward.1} parent=79 // pred_fallthru
              _
          $region80: #{net_forward.1} parent=75 // pred_fallthru
            _
          %4730 = vnop
        $region76: #{net_forward.1} parent=47 // pred_fallthru
          _
      $region48: #{net_forward.1} parent=5 // pred_fallthru
        _
      %p4731 = scmp.le.s32.totalorder 2, %s17
      // Predicated region
      $region125: #{net_forward.1} parent=5 // pred_check
        %p4732 = pneg %p4731
      $region126: #{net_forward.1} parent=5 // pred_check_branch
        %4734 = sbr.rel (%p4732) target = $region128
      $region127: #{net_forward.1} parent=5 // pred_region
        %s4735 = ssub.s32 %s17, 2
        // Predicated region
        $region129: #{net_forward.1} parent=127 // pred_check
          %p4736 = pneg %p198
        $region130: #{net_forward.1} parent=127 // pred_check_branch
          %4738 = sbr.rel (%p4736) target = $region132
        $region131: #{net_forward.1} parent=127 // pred_region
          %s4739 = sand.u32 %s183, 1
          %s4740 = sand.u32 %s183, 1
          %s4741 = smul.addr %s4740, 32
          %s4742 = scalar_lea.vmem [#allocation12], %s4741
        $region132: #{net_forward.1} parent=127 // pred_fallthru
          _
      $region128: #{net_forward.1} parent=5 // pred_fallthru
        _
    $region6: #{net_forward.1} parent=1 // loop_footer
      %s21 = sadd.s32 1, %s17
    $region7: #{net_forward.1} parent=1 // loop_footer_branch
      %16 = sbr.rel target = $region3
    $region8: #{net_forward.1} parent=1 // loop_exit
      _
    %4743 = vsyncpa [#allocation3], 1
    %s4744 = scalar_lea.sflag [#allocation3], 1
    %4745 = vsyncpa %s4744, 1
    %4746 = vsyncpa [#allocation5], 1
    %4747 = vsyncpa [#allocation8], 1
    %4748 = vsyncpa [#allocation11], 1

</llo_original>
